<compile_context>
chip_gen: v7x
topology: tpu7x:2x2x1
jax: 0.10.0
libtpu: 0.0.40
codegen_flags: <defaults>
</compile_context>

<pallas_src>
import functools
import math

import jax
import jax.numpy as jnp
from jax.experimental import pallas as pl
from jax.experimental.pallas import tpu as pltpu


# ----------------------------- small helpers -------------------------------
def _round_up(x, m):
    return (x + m - 1) // m * m


def _layernorm(v, w, b, eps=1e-5):
    mu = jnp.mean(v, axis=-1, keepdims=True)
    var = jnp.mean((v - mu) ** 2, axis=-1, keepdims=True)
    return (v - mu) * jax.lax.rsqrt(var + eps) * w + b


# ------------------------------ fused kernel --------------------------------
def clip_stack_kernel(x_ref, pos_ref,
                      ln1_w_ref, ln1_b_ref,
                      in_w_ref, in_b_ref,
                      out_w_ref, out_b_ref,
                      ln2_w_ref, ln2_b_ref,
                      fc1_w_ref, fc1_b_ref,
                      fc2_w_ref, fc2_b_ref,
                      lnf_w_ref, lnf_b_ref,
                      o_ref, x_sc, *, n_head):
    l = pl.program_id(0)

    # l == 0: load embeddings into the resident activation scratch and add the
    # position embedding (fused embedding add).
    @pl.when(l == 0)
    def _():
        x_sc[...] = x_ref[...] + pos_ref[...]

    x3 = x_sc[...]                                    # (B, Tp, D) float32
    B, Tp, D = x3.shape
    H = n_head
    dh = D // H
    BT = B * Tp
    BH = B * H
    scale = 1.0 / math.sqrt(dh)

    x = x3.reshape(BT, D)

    # --- attention block -----------------------------------------------------
    residue = x
    h = _layernorm(x, ln1_w_ref[0], ln1_b_ref[0])
    qkv = jnp.dot(h.astype(jnp.bfloat16), in_w_ref[0],
                  preferred_element_type=jnp.float32) + in_b_ref[0]

    # fold 1/sqrt(dh) into Q once (mask-then-scale is scale-invariant for -inf)
    q = (qkv[:, :D] * scale).astype(jnp.bfloat16)
    k = qkv[:, D:2 * D].astype(jnp.bfloat16)
    v = qkv[:, 2 * D:3 * D].astype(jnp.bfloat16)

    def heads(t):                                    # (BT, D) -> (B*H, Tp, dh)
        return jnp.swapaxes(t.reshape(B, Tp, H, dh), 1, 2).reshape(BH, Tp, dh)

    q3, k3, v3 = heads(q), heads(k), heads(v)

    s = jnp.einsum('hqd,hkd->hqk', q3, k3,
                   preferred_element_type=jnp.float32)        # (B*H, Tp, Tp)
    qi = jax.lax.broadcasted_iota(jnp.int32, (1, Tp, Tp), 1)
    ki = jax.lax.broadcasted_iota(jnp.int32, (1, Tp, Tp), 2)
    s = jnp.where(ki > qi, -jnp.inf, s)                       # causal mask
    m = jnp.max(s, axis=-1, keepdims=True)
    e = jnp.exp(s - m)
    p = e * pl.reciprocal(jnp.sum(e, axis=-1, keepdims=True), approx=True)

    o = jnp.einsum('hqk,hkd->hqd', p.astype(jnp.bfloat16), v3,
                   preferred_element_type=jnp.float32)        # (B*H, Tp, dh)
    o2 = jnp.swapaxes(o.reshape(B, H, Tp, dh), 1, 2).reshape(BT, D)
    attn = jnp.dot(o2.astype(jnp.bfloat16), out_w_ref[0],
                   preferred_element_type=jnp.float32) + out_b_ref[0]
    x = attn + residue

    # --- MLP block (quick-GELU) ----------------------------------------------
    residue = x
    h = _layernorm(x, ln2_w_ref[0], ln2_b_ref[0])
    h = jnp.dot(h.astype(jnp.bfloat16), fc1_w_ref[0],
                preferred_element_type=jnp.float32) + fc1_b_ref[0]
    h = h * jax.nn.sigmoid(1.702 * h)
    h = jnp.dot(h.astype(jnp.bfloat16), fc2_w_ref[0],
                preferred_element_type=jnp.float32) + fc2_b_ref[0]
    y = h + residue

    x_sc[...] = y.reshape(B, Tp, D)                  # carry to next layer

    # l == L-1: fused final LayerNorm + single HBM writeback of the output.
    @pl.when(l == pl.num_programs(0) - 1)
    def _():
        o_ref[...] = _layernorm(y, lnf_w_ref[...], lnf_b_ref[...]).reshape(B, Tp, D)


# ----------------------------- pallas_call wrapper ---------------------------
def make_clip_stack_call(B, Tp, D, n_head, n_layers):
    dh = D // n_head
    f32, bf16 = jnp.float32, jnp.bfloat16

    def _bytes(shape, dt):
        return math.prod(shape) * jnp.dtype(dt).itemsize

    # Per-layer weight blocks (leading layer dim is 1 in the block; the grid
    # index selects the layer, so double buffering prefetches layer l+1).
    w_blocks = [
        ((1, 1, D), f32), ((1, 1, D), f32),              # layernorm_1
        ((1, D, 3 * D), bf16), ((1, 1, 3 * D), f32),     # attention in_proj
        ((1, D, D), bf16), ((1, 1, D), f32),             # attention out_proj
        ((1, 1, D), f32), ((1, 1, D), f32),              # layernorm_2
        ((1, D, 4 * D), bf16), ((1, 1, 4 * D), f32),     # linear_1
        ((1, 4 * D, D), bf16), ((1, 1, D), f32),         # linear_2
    ]

    in_specs = [
        pl.BlockSpec((B, Tp, D), lambda l: (0, 0, 0)),   # token embeddings
        pl.BlockSpec((Tp, D), lambda l: (0, 0)),         # position embedding
    ]
    in_specs += [pl.BlockSpec(shape, lambda l: (l, 0, 0)) for shape, _ in w_blocks]
    in_specs += [pl.BlockSpec((1, D), lambda l: (0, 0)),  # final LN weight
                 pl.BlockSpec((1, D), lambda l: (0, 0))]  # final LN bias

    # VMEM budget from actual buffer footprints: double-buffered weight /
    # activation blocks + resident scratch + in-kernel f32/bf16 intermediates,
    # plus headroom, capped well under the smallest physical VMEM (v7x 64 MiB).
    BT, BH = B * Tp, B * n_head
    act = _bytes((B, Tp, D), f32)
    w_bytes = sum(_bytes(s, dt) for s, dt in w_blocks)
    interm = (_bytes((BT, 3 * D), f32)                 # qkv
              + 3 * _bytes((BT, D), bf16)              # q, k, v
              + 3 * _bytes((BH, Tp, dh), bf16)         # head-major q3/k3/v3
              + 2 * _bytes((BH, Tp, Tp), f32)          # scores, exp
              + _bytes((BH, Tp, Tp), bf16)             # softmax probs
              + _bytes((BH, Tp, dh), f32)              # attention out (heads)
              + _bytes((BT, D), bf16)                  # merged attention out
              + 2 * _bytes((BT, 4 * D), f32)           # MLP hidden (pre/post)
              + 4 * _bytes((BT, D), f32))              # residuals / LN temps
    const_in = _bytes((Tp, D), f32) + 2 * _bytes((1, D), f32)
    vmem_limit = int(min(2 * (w_bytes + 2 * act + const_in) + act + interm + (8 << 20),
                         48 << 20))

    kern = functools.partial(clip_stack_kernel, n_head=n_head)
    return pl.pallas_call(
        kern,
        out_shape=jax.ShapeDtypeStruct((B, Tp, D), f32),
        grid=(n_layers,),
        in_specs=in_specs,
        out_specs=pl.BlockSpec((B, Tp, D), lambda l: (0, 0, 0)),
        scratch_shapes=[pltpu.VMEM((B, Tp, D), f32)],   # resident activation
        compiler_params=pltpu.CompilerParams(
            # Sequential dependency across layers; whole batch is in-block so
            # weights are streamed once (no cross-core weight duplication).
            dimension_semantics=("arbitrary",),
            vmem_limit_bytes=vmem_limit),
    )


# ------------------------------ parameters ----------------------------------
def _stacked_linear_init(key, L, fan_in, fan_out):
    kw, kb = jax.random.split(key)
    bound = 1.0 / math.sqrt(fan_in)
    w = jax.random.uniform(kw, (L, fan_in, fan_out), jnp.float32, -bound, bound)
    b = jax.random.uniform(kb, (L, 1, fan_out), jnp.float32, -bound, bound)
    return w.astype(jnp.bfloat16), b          # weights bf16 (MXU), biases f32


def init_params(key, V, T, D, n_head, n_layers):
    k_tok, k_in, k_out, k_fc1, k_fc2 = jax.random.split(key, 5)
    params = {
        "token_embedding": 0.02 * jax.random.normal(k_tok, (V, D), jnp.float32),
        "position_embedding": jnp.zeros((T, D), jnp.float32),   # torch.zeros param
        "ln_w": jnp.ones((1, D), jnp.float32),
        "ln_b": jnp.zeros((1, D), jnp.float32),
        # per-layer params stacked along a leading L dim for the fused grid
        "ln1_w": jnp.ones((n_layers, 1, D), jnp.float32),
        "ln1_b": jnp.zeros((n_layers, 1, D), jnp.float32),
        "ln2_w": jnp.ones((n_layers, 1, D), jnp.float32),
        "ln2_b": jnp.zeros((n_layers, 1, D), jnp.float32),
    }
    params["in_w"], params["in_b"] = _stacked_linear_init(k_in, n_layers, D, 3 * D)
    params["out_w"], params["out_b"] = _stacked_linear_init(k_out, n_layers, D, D)
    params["fc1_w"], params["fc1_b"] = _stacked_linear_init(k_fc1, n_layers, D, 4 * D)
    params["fc2_w"], params["fc2_b"] = _stacked_linear_init(k_fc2, n_layers, 4 * D, D)
    return params
    # TODO(synk): v7x-only lever from the review (fp8 weights + per-channel
    # scales folded into the bias epilogue) not applied; bf16 kept for parity.


# ------------------------------ forward pass ---------------------------------
def build_clip_forward(B, T, V, D, n_head, n_layers):
    # Pad T up to a sublane multiple of 8 (real CLIP: 77 -> 80). Pad keys are
    # causally masked (ki >= T > qi) for real query rows and pad rows are
    # sliced off at the end, so results match the unpadded computation.
    # TODO(synk): optionally pad to 128 for lane-dense (Tp,Tp) score tiles and
    # measure; attention is a small share of FLOPs so this is a wash on paper.
    Tp = _round_up(T, 8)
    fused_call = make_clip_stack_call(B, Tp, D, n_head, n_layers)

    def forward(params, tokens):
        tok = tokens.astype(jnp.int32)
        tok = jnp.pad(tok, ((0, 0), (0, Tp - T)))
        pos = jnp.pad(params["position_embedding"], ((0, Tp - T), (0, 0)))
        # Token-embedding gather in XLA (per perf review a per-token Pallas
        # grid is pipeline-overhead dominated); the position add is fused into
        # the Pallas kernel at layer 0.
        tok_emb = jnp.take(params["token_embedding"], tok, axis=0)   # (B, Tp, D)
        x = fused_call(tok_emb, pos,
                       params["ln1_w"], params["ln1_b"],
                       params["in_w"], params["in_b"],
                       params["out_w"], params["out_b"],
                       params["ln2_w"], params["ln2_b"],
                       params["fc1_w"], params["fc1_b"],
                       params["fc2_w"], params["fc2_b"],
                       params["ln_w"], params["ln_b"])
        return x[:, :T, :]

    return forward


# ---------------------------------- main -------------------------------------
if __name__ == "__main__":
    # Small, self-consistent config (real CLIP: V=49408, T=77, D=768, H=12, L=12)
    B, T, V, D, H, L = 2, 8, 100, 32, 4, 12

    key = jax.random.PRNGKey(0)
    pkey, tkey = jax.random.split(key)
    params = init_params(pkey, V, T, D, H, L)
    tokens = jax.random.randint(tkey, (B, T), 0, V, dtype=jnp.int32)

    fwd = jax.jit(build_clip_forward(B, T, V, D, H, L))
    out = fwd(params, tokens)
    jax.block_until_ready(out)

    assert out.shape == (B, T, D), out.shape
    assert bool(jnp.all(jnp.isfinite(out)))
    print("KERNEL_OK")
</pallas_src>

<mosaic_0001>
module attributes {stable_mosaic.version = 11 : i64} {
  func.func @clip_stack_kernel(%arg0: i32, %arg1: memref<2x8x32xf32, #tpu.memory_space<vmem>>, %arg2: memref<8x32xf32, #tpu.memory_space<vmem>>, %arg3: memref<1x1x32xf32, #tpu.memory_space<vmem>>, %arg4: memref<1x1x32xf32, #tpu.memory_space<vmem>>, %arg5: memref<1x32x96xbf16, #tpu.memory_space<vmem>>, %arg6: memref<1x1x96xf32, #tpu.memory_space<vmem>>, %arg7: memref<1x32x32xbf16, #tpu.memory_space<vmem>>, %arg8: memref<1x1x32xf32, #tpu.memory_space<vmem>>, %arg9: memref<1x1x32xf32, #tpu.memory_space<vmem>>, %arg10: memref<1x1x32xf32, #tpu.memory_space<vmem>>, %arg11: memref<1x32x128xbf16, #tpu.memory_space<vmem>>, %arg12: memref<1x1x128xf32, #tpu.memory_space<vmem>>, %arg13: memref<1x128x32xbf16, #tpu.memory_space<vmem>>, %arg14: memref<1x1x32xf32, #tpu.memory_space<vmem>>, %arg15: memref<1x32xf32, #tpu.memory_space<vmem>>, %arg16: memref<1x32xf32, #tpu.memory_space<vmem>>, %arg17: memref<2x8x32xf32, #tpu.memory_space<vmem>>, %arg18: memref<2x8x32xf32, #tpu.memory_space<vmem>>) attributes {dimension_semantics = [#tpu.dimension_semantics<arbitrary>], iteration_bounds = array<i64: 12>, scalar_prefetch = 0 : i64, scratch_operands = 1 : i64, tpu.core_type = #tpu.core_type<tc>, window_params = [{pipeline_mode = #tpu.pipeline_mode<synchronous>, transform_indices = @transform_0, window_bounds = array<i64: 2, 8, 32>}, {pipeline_mode = #tpu.pipeline_mode<synchronous>, transform_indices = @transform_1, window_bounds = array<i64: 8, 32>}, {transform_indices = @transform_2, window_bounds = array<i64: 1, 1, 32>}, {transform_indices = @transform_3, window_bounds = array<i64: 1, 1, 32>}, {transform_indices = @transform_4, window_bounds = array<i64: 1, 32, 96>}, {transform_indices = @transform_5, window_bounds = array<i64: 1, 1, 96>}, {transform_indices = @transform_6, window_bounds = array<i64: 1, 32, 32>}, {transform_indices = @transform_7, window_bounds = array<i64: 1, 1, 32>}, {transform_indices = @transform_8, window_bounds = array<i64: 1, 1, 32>}, {transform_indices = @transform_9, window_bounds = array<i64: 1, 1, 32>}, {transform_indices = @transform_10, window_bounds = array<i64: 1, 32, 128>}, {transform_indices = @transform_11, window_bounds = array<i64: 1, 1, 128>}, {transform_indices = @transform_12, window_bounds = array<i64: 1, 128, 32>}, {transform_indices = @transform_13, window_bounds = array<i64: 1, 1, 32>}, {pipeline_mode = #tpu.pipeline_mode<synchronous>, transform_indices = @transform_14, window_bounds = array<i64: 1, 32>}, {pipeline_mode = #tpu.pipeline_mode<synchronous>, transform_indices = @transform_15, window_bounds = array<i64: 1, 32>}, {pipeline_mode = #tpu.pipeline_mode<synchronous>, transform_indices = @transform_16, window_bounds = array<i64: 2, 8, 32>}]} {
    %c0_i32 = arith.constant 0 : i32
    %0 = arith.cmpi eq, %arg0, %c0_i32 : i32
    %1 = arith.extui %0 : i1 to i32
    %c0_i32_0 = arith.constant 0 : i32
    %2 = arith.cmpi ne, %1, %c0_i32_0 : i32
    scf.if %2 {
      %c0_64 = arith.constant 0 : index
      %c0_65 = arith.constant 0 : index
      %c0_66 = arith.constant 0 : index
      %144 = vector.load %arg1[%c0_64, %c0_65, %c0_66] : memref<2x8x32xf32, #tpu.memory_space<vmem>>, vector<2x8x32xf32>
      %c0_67 = arith.constant 0 : index
      %c0_68 = arith.constant 0 : index
      %145 = vector.load %arg2[%c0_67, %c0_68] : memref<8x32xf32, #tpu.memory_space<vmem>>, vector<8x32xf32>
      %146 = vector.shape_cast %145 : vector<8x32xf32> to vector<1x8x32xf32>
      %147 = vector.broadcast %146 : vector<1x8x32xf32> to vector<2x8x32xf32>
      %148 = arith.addf %144, %147 : vector<2x8x32xf32>
      %c0_69 = arith.constant 0 : index
      %c0_70 = arith.constant 0 : index
      %c0_71 = arith.constant 0 : index
      %149 = vector.load %arg18[%c0_69, %c0_70, %c0_71] : memref<2x8x32xf32, #tpu.memory_space<vmem>>, vector<2x8x32xf32>
      tpu.vector_store %arg18[%c0_69, %c0_70, %c0_71], %148 {strides = array<i32>} : memref<2x8x32xf32, #tpu.memory_space<vmem>>, vector<2x8x32xf32>,
    } else {
    }
    %c0 = arith.constant 0 : index
    %c0_1 = arith.constant 0 : index
    %c0_2 = arith.constant 0 : index
    %3 = vector.load %arg18[%c0, %c0_1, %c0_2] : memref<2x8x32xf32, #tpu.memory_space<vmem>>, vector<2x8x32xf32>
    %4 = vector.shape_cast %3 : vector<2x8x32xf32> to vector<16x32xf32>
    %c0_3 = arith.constant 0 : index
    %c0_4 = arith.constant 0 : index
    %c0_5 = arith.constant 0 : index
    %5 = vector.load %arg3[%c0_3, %c0_4, %c0_5] : memref<1x1x32xf32, #tpu.memory_space<vmem>>, vector<1x1x32xf32>
    %6 = vector.shape_cast %5 : vector<1x1x32xf32> to vector<1x32xf32>
    %c0_6 = arith.constant 0 : index
    %c0_7 = arith.constant 0 : index
    %c0_8 = arith.constant 0 : index
    %7 = vector.load %arg4[%c0_6, %c0_7, %c0_8] : memref<1x1x32xf32, #tpu.memory_space<vmem>>, vector<1x1x32xf32>
    %8 = vector.shape_cast %7 : vector<1x1x32xf32> to vector<1x32xf32>
    %cst = arith.constant dense<0.000000e+00> : vector<16xf32>
    %9 = vector.multi_reduction <add>, %4, %cst [1] : vector<16x32xf32> to vector<16xf32>
    %10 = vector.shape_cast %9 : vector<16xf32> to vector<16x1xf32>
    %cst_9 = arith.constant 3.200000e+01 : f32
    %11 = vector.broadcast %cst_9 : f32 to vector<16x1xf32>
    %12 = arith.divf %10, %11 : vector<16x1xf32>
    %13 = vector.broadcast %12 : vector<16x1xf32> to vector<16x32xf32>
    %14 = arith.subf %4, %13 : vector<16x32xf32>
    %15 = arith.mulf %14, %14 : vector<16x32xf32>
    %cst_10 = arith.constant dense<0.000000e+00> : vector<16xf32>
    %16 = vector.multi_reduction <add>, %15, %cst_10 [1] : vector<16x32xf32> to vector<16xf32>
    %17 = vector.shape_cast %16 : vector<16xf32> to vector<16x1xf32>
    %cst_11 = arith.constant 3.200000e+01 : f32
    %18 = vector.broadcast %cst_11 : f32 to vector<16x1xf32>
    %19 = arith.divf %17, %18 : vector<16x1xf32>
    %20 = vector.broadcast %12 : vector<16x1xf32> to vector<16x32xf32>
    %21 = arith.subf %4, %20 : vector<16x32xf32>
    %cst_12 = arith.constant 9.99999974E-6 : f32
    %22 = vector.broadcast %cst_12 : f32 to vector<16x1xf32>
    %23 = arith.addf %19, %22 : vector<16x1xf32>
    %24 = math.rsqrt %23 : vector<16x1xf32>
    %25 = vector.broadcast %24 : vector<16x1xf32> to vector<16x32xf32>
    %26 = arith.mulf %21, %25 : vector<16x32xf32>
    %27 = vector.broadcast %6 : vector<1x32xf32> to vector<16x32xf32>
    %28 = arith.mulf %26, %27 : vector<16x32xf32>
    %29 = vector.broadcast %8 : vector<1x32xf32> to vector<16x32xf32>
    %30 = arith.addf %28, %29 : vector<16x32xf32>
    %31 = arith.truncf %30 : vector<16x32xf32> to vector<16x32xbf16>
    %c0_13 = arith.constant 0 : index
    %c0_14 = arith.constant 0 : index
    %c0_15 = arith.constant 0 : index
    %32 = vector.load %arg5[%c0_13, %c0_14, %c0_15] : memref<1x32x96xbf16, #tpu.memory_space<vmem>>, vector<1x32x96xbf16>
    %33 = vector.shape_cast %32 : vector<1x32x96xbf16> to vector<32x96xbf16>
    %cst_16 = arith.constant dense<0.000000e+00> : vector<16x96xf32>
    %34 = tpu.matmul %31, %33, %cst_16 {dimension_numbers = #tpu.dot_dimension_numbers<[1], [0], [0], [1], [0, 0, 1, 1], [], []>} : vector<16x32xbf16>, vector<32x96xbf16>, vector<16x96xf32> -> vector<16x96xf32>
    %c0_17 = arith.constant 0 : index
    %c0_18 = arith.constant 0 : index
    %c0_19 = arith.constant 0 : index
    %35 = vector.load %arg6[%c0_17, %c0_18, %c0_19] : memref<1x1x96xf32, #tpu.memory_space<vmem>>, vector<1x1x96xf32>
    %36 = vector.shape_cast %35 : vector<1x1x96xf32> to vector<1x96xf32>
    %37 = vector.broadcast %36 : vector<1x96xf32> to vector<16x96xf32>
    %38 = arith.addf %34, %37 : vector<16x96xf32>
    %39 = vector.extract_strided_slice %38 {offsets = [0, 0], sizes = [16, 32], strides = [1, 1]} : vector<16x96xf32> to vector<16x32xf32>
    %cst_20 = arith.constant 0.353553385 : f32
    %40 = vector.broadcast %cst_20 : f32 to vector<16x32xf32>
    %41 = arith.mulf %39, %40 : vector<16x32xf32>
    %42 = arith.truncf %41 : vector<16x32xf32> to vector<16x32xbf16>
    %43 = vector.extract_strided_slice %38 {offsets = [0, 32], sizes = [16, 32], strides = [1, 1]} : vector<16x96xf32> to vector<16x32xf32>
    %44 = arith.truncf %43 : vector<16x32xf32> to vector<16x32xbf16>
    %45 = vector.extract_strided_slice %38 {offsets = [0, 64], sizes = [16, 32], strides = [1, 1]} : vector<16x96xf32> to vector<16x32xf32>
    %46 = arith.truncf %45 : vector<16x32xf32> to vector<16x32xbf16>
    %47 = vector.shape_cast %42 : vector<16x32xbf16> to vector<2x8x4x8xbf16>
    %48 = tpu.transpose %47, [0, 2, 1, 3] : vector<2x8x4x8xbf16> -> vector<2x4x8x8xbf16>
    %49 = vector.shape_cast %48 : vector<2x4x8x8xbf16> to vector<8x8x8xbf16>
    %50 = vector.shape_cast %44 : vector<16x32xbf16> to vector<2x8x4x8xbf16>
    %51 = tpu.transpose %50, [0, 2, 1, 3] : vector<2x8x4x8xbf16> -> vector<2x4x8x8xbf16>
    %52 = vector.shape_cast %51 : vector<2x4x8x8xbf16> to vector<8x8x8xbf16>
    %53 = vector.shape_cast %46 : vector<16x32xbf16> to vector<2x8x4x8xbf16>
    %54 = tpu.transpose %53, [0, 2, 1, 3] : vector<2x8x4x8xbf16> -> vector<2x4x8x8xbf16>
    %55 = vector.shape_cast %54 : vector<2x4x8x8xbf16> to vector<8x8x8xbf16>
    "tpu.trace_start"() <{level = 10 : i32, message = "hqd,hkd->hqk"}> : () -> ()
    %cst_21 = arith.constant dense<0.000000e+00> : vector<8x8x8xf32>
    %56 = tpu.matmul %49, %52, %cst_21 {dimension_numbers = #tpu.dot_dimension_numbers<[2], [2], [1], [1], [0, 0, 0, 1, 1, 1], [0], [0]>} : vector<8x8x8xbf16>, vector<8x8x8xbf16>, vector<8x8x8xf32> -> vector<8x8x8xf32>
    "tpu.trace_stop"() : () -> ()
    %57 = tpu.iota {dimensions = array<i32: 1>} : vector<1x8x8xi32>
    %58 = tpu.iota {dimensions = array<i32: 2>} : vector<1x8x8xi32>
    %59 = arith.cmpi sgt, %58, %57 : vector<1x8x8xi32>
    %cst_22 = arith.constant 0xFF800000 : f32
    %60 = vector.shape_cast %59 : vector<1x8x8xi1> to vector<1x8x8xi1>
    %61 = vector.broadcast %60 : vector<1x8x8xi1> to vector<8x8x8xi1>
    %62 = vector.broadcast %cst_22 : f32 to vector<8x8x8xf32>
    %63 = arith.select %61, %62, %56 : vector<8x8x8xi1>, vector<8x8x8xf32>
    %cst_23 = arith.constant dense<0xFF800000> : vector<8x8xf32>
    %64 = vector.multi_reduction <maximumf>, %63, %cst_23 [2] : vector<8x8x8xf32> to vector<8x8xf32>
    %65 = vector.shape_cast %64 : vector<8x8xf32> to vector<8x8x1xf32>
    %66 = vector.broadcast %65 : vector<8x8x1xf32> to vector<8x8x8xf32>
    %67 = arith.subf %63, %66 : vector<8x8x8xf32>
    %68 = math.exp %67 : vector<8x8x8xf32>
    %cst_24 = arith.constant dense<0.000000e+00> : vector<8x8xf32>
    %69 = vector.multi_reduction <add>, %68, %cst_24 [2] : vector<8x8x8xf32> to vector<8x8xf32>
    %70 = vector.shape_cast %69 : vector<8x8xf32> to vector<8x8x1xf32>
    %71 = tpu.reciprocal %70 {approx = true} : vector<8x8x1xf32> -> vector<8x8x1xf32>
    %72 = vector.broadcast %71 : vector<8x8x1xf32> to vector<8x8x8xf32>
    %73 = arith.mulf %68, %72 : vector<8x8x8xf32>
    %74 = arith.truncf %73 : vector<8x8x8xf32> to vector<8x8x8xbf16>
    "tpu.trace_start"() <{level = 10 : i32, message = "hqk,hkd->hqd"}> : () -> ()
    %cst_25 = arith.constant dense<0.000000e+00> : vector<8x8x8xf32>
    %75 = tpu.matmul %74, %55, %cst_25 {dimension_numbers = #tpu.dot_dimension_numbers<[2], [1], [1], [2], [0, 0, 0, 1, 1, 2], [0], [0]>} : vector<8x8x8xbf16>, vector<8x8x8xbf16>, vector<8x8x8xf32> -> vector<8x8x8xf32>
    "tpu.trace_stop"() : () -> ()
    %76 = vector.shape_cast %75 : vector<8x8x8xf32> to vector<2x4x8x8xf32>
    %77 = tpu.transpose %76, [0, 2, 1, 3] : vector<2x4x8x8xf32> -> vector<2x8x4x8xf32>
    %78 = vector.shape_cast %77 : vector<2x8x4x8xf32> to vector<16x32xf32>
    %79 = arith.truncf %78 : vector<16x32xf32> to vector<16x32xbf16>
    %c0_26 = arith.constant 0 : index
    %c0_27 = arith.constant 0 : index
    %c0_28 = arith.constant 0 : index
    %80 = vector.load %arg7[%c0_26, %c0_27, %c0_28] : memref<1x32x32xbf16, #tpu.memory_space<vmem>>, vector<1x32x32xbf16>
    %81 = vector.shape_cast %80 : vector<1x32x32xbf16> to vector<32x32xbf16>
    %cst_29 = arith.constant dense<0.000000e+00> : vector<16x32xf32>
    %82 = tpu.matmul %79, %81, %cst_29 {dimension_numbers = #tpu.dot_dimension_numbers<[1], [0], [0], [1], [0, 0, 1, 1], [], []>} : vector<16x32xbf16>, vector<32x32xbf16>, vector<16x32xf32> -> vector<16x32xf32>
    %c0_30 = arith.constant 0 : index
    %c0_31 = arith.constant 0 : index
    %c0_32 = arith.constant 0 : index
    %83 = vector.load %arg8[%c0_30, %c0_31, %c0_32] : memref<1x1x32xf32, #tpu.memory_space<vmem>>, vector<1x1x32xf32>
    %84 = vector.shape_cast %83 : vector<1x1x32xf32> to vector<1x32xf32>
    %85 = vector.broadcast %84 : vector<1x32xf32> to vector<16x32xf32>
    %86 = arith.addf %82, %85 : vector<16x32xf32>
    %87 = arith.addf %86, %4 : vector<16x32xf32>
    %c0_33 = arith.constant 0 : index
    %c0_34 = arith.constant 0 : index
    %c0_35 = arith.constant 0 : index
    %88 = vector.load %arg9[%c0_33, %c0_34, %c0_35] : memref<1x1x32xf32, #tpu.memory_space<vmem>>, vector<1x1x32xf32>
    %89 = vector.shape_cast %88 : vector<1x1x32xf32> to vector<1x32xf32>
    %c0_36 = arith.constant 0 : index
    %c0_37 = arith.constant 0 : index
    %c0_38 = arith.constant 0 : index
    %90 = vector.load %arg10[%c0_36, %c0_37, %c0_38] : memref<1x1x32xf32, #tpu.memory_space<vmem>>, vector<1x1x32xf32>
    %91 = vector.shape_cast %90 : vector<1x1x32xf32> to vector<1x32xf32>
    %cst_39 = arith.constant dense<0.000000e+00> : vector<16xf32>
    %92 = vector.multi_reduction <add>, %87, %cst_39 [1] : vector<16x32xf32> to vector<16xf32>
    %93 = vector.shape_cast %92 : vector<16xf32> to vector<16x1xf32>
    %cst_40 = arith.constant 3.200000e+01 : f32
    %94 = vector.broadcast %cst_40 : f32 to vector<16x1xf32>
    %95 = arith.divf %93, %94 : vector<16x1xf32>
    %96 = vector.broadcast %95 : vector<16x1xf32> to vector<16x32xf32>
    %97 = arith.subf %87, %96 : vector<16x32xf32>
    %98 = arith.mulf %97, %97 : vector<16x32xf32>
    %cst_41 = arith.constant dense<0.000000e+00> : vector<16xf32>
    %99 = vector.multi_reduction <add>, %98, %cst_41 [1] : vector<16x32xf32> to vector<16xf32>
    %100 = vector.shape_cast %99 : vector<16xf32> to vector<16x1xf32>
    %cst_42 = arith.constant 3.200000e+01 : f32
    %101 = vector.broadcast %cst_42 : f32 to vector<16x1xf32>
    %102 = arith.divf %100, %101 : vector<16x1xf32>
    %103 = vector.broadcast %95 : vector<16x1xf32> to vector<16x32xf32>
    %104 = arith.subf %87, %103 : vector<16x32xf32>
    %cst_43 = arith.constant 9.99999974E-6 : f32
    %105 = vector.broadcast %cst_43 : f32 to vector<16x1xf32>
    %106 = arith.addf %102, %105 : vector<16x1xf32>
    %107 = math.rsqrt %106 : vector<16x1xf32>
    %108 = vector.broadcast %107 : vector<16x1xf32> to vector<16x32xf32>
    %109 = arith.mulf %104, %108 : vector<16x32xf32>
    %110 = vector.broadcast %89 : vector<1x32xf32> to vector<16x32xf32>
    %111 = arith.mulf %109, %110 : vector<16x32xf32>
    %112 = vector.broadcast %91 : vector<1x32xf32> to vector<16x32xf32>
    %113 = arith.addf %111, %112 : vector<16x32xf32>
    %114 = arith.truncf %113 : vector<16x32xf32> to vector<16x32xbf16>
    %c0_44 = arith.constant 0 : index
    %c0_45 = arith.constant 0 : index
    %c0_46 = arith.constant 0 : index
    %115 = vector.load %arg11[%c0_44, %c0_45, %c0_46] : memref<1x32x128xbf16, #tpu.memory_space<vmem>>, vector<1x32x128xbf16>
    %116 = vector.shape_cast %115 : vector<1x32x128xbf16> to vector<32x128xbf16>
    %cst_47 = arith.constant dense<0.000000e+00> : vector<16x128xf32>
    %117 = tpu.matmul %114, %116, %cst_47 {dimension_numbers = #tpu.dot_dimension_numbers<[1], [0], [0], [1], [0, 0, 1, 1], [], []>} : vector<16x32xbf16>, vector<32x128xbf16>, vector<16x128xf32> -> vector<16x128xf32>
    %c0_48 = arith.constant 0 : index
    %c0_49 = arith.constant 0 : index
    %c0_50 = arith.constant 0 : index
    %118 = vector.load %arg12[%c0_48, %c0_49, %c0_50] : memref<1x1x128xf32, #tpu.memory_space<vmem>>, vector<1x1x128xf32>
    %119 = vector.shape_cast %118 : vector<1x1x128xf32> to vector<1x128xf32>
    %120 = vector.broadcast %119 : vector<1x128xf32> to vector<16x128xf32>
    %121 = arith.addf %117, %120 : vector<16x128xf32>
    %cst_51 = arith.constant 1.702000e+00 : f32
    %122 = vector.broadcast %cst_51 : f32 to vector<16x128xf32>
    %123 = arith.mulf %122, %121 : vector<16x128xf32>
    %124 = arith.negf %123 : vector<16x128xf32>
    %125 = math.exp %124 : vector<16x128xf32>
    %cst_52 = arith.constant 1.000000e+00 : f32
    %126 = vector.broadcast %cst_52 : f32 to vector<16x128xf32>
    %127 = arith.addf %126, %125 : vector<16x128xf32>
    %128 = arith.divf %126, %127 : vector<16x128xf32>
    %129 = arith.mulf %121, %128 : vector<16x128xf32>
    %130 = arith.truncf %129 : vector<16x128xf32> to vector<16x128xbf16>
    %c0_53 = arith.constant 0 : index
    %c0_54 = arith.constant 0 : index
    %c0_55 = arith.constant 0 : index
    %131 = vector.load %arg13[%c0_53, %c0_54, %c0_55] : memref<1x128x32xbf16, #tpu.memory_space<vmem>>, vector<1x128x32xbf16>
    %132 = vector.shape_cast %131 : vector<1x128x32xbf16> to vector<128x32xbf16>
    %cst_56 = arith.constant dense<0.000000e+00> : vector<16x32xf32>
    %133 = tpu.matmul %130, %132, %cst_56 {dimension_numbers = #tpu.dot_dimension_numbers<[1], [0], [0], [1], [0, 0, 1, 1], [], []>} : vector<16x128xbf16>, vector<128x32xbf16>, vector<16x32xf32> -> vector<16x32xf32>
    %c0_57 = arith.constant 0 : index
    %c0_58 = arith.constant 0 : index
    %c0_59 = arith.constant 0 : index
    %134 = vector.load %arg14[%c0_57, %c0_58, %c0_59] : memref<1x1x32xf32, #tpu.memory_space<vmem>>, vector<1x1x32xf32>
    %135 = vector.shape_cast %134 : vector<1x1x32xf32> to vector<1x32xf32>
    %136 = vector.broadcast %135 : vector<1x32xf32> to vector<16x32xf32>
    %137 = arith.addf %133, %136 : vector<16x32xf32>
    %138 = arith.addf %137, %87 : vector<16x32xf32>
    %139 = vector.shape_cast %138 : vector<16x32xf32> to vector<2x8x32xf32>
    %c0_60 = arith.constant 0 : index
    %c0_61 = arith.constant 0 : index
    %c0_62 = arith.constant 0 : index
    %140 = vector.load %arg18[%c0_60, %c0_61, %c0_62] : memref<2x8x32xf32, #tpu.memory_space<vmem>>, vector<2x8x32xf32>
    tpu.vector_store %arg18[%c0_60, %c0_61, %c0_62], %139 {strides = array<i32>} : memref<2x8x32xf32, #tpu.memory_space<vmem>>, vector<2x8x32xf32>,
    %c11_i32 = arith.constant 11 : i32
    %141 = arith.cmpi eq, %arg0, %c11_i32 : i32
    %142 = arith.extui %141 : i1 to i32
    %c0_i32_63 = arith.constant 0 : i32
    %143 = arith.cmpi ne, %142, %c0_i32_63 : i32
    scf.if %143 {
      %c0_64 = arith.constant 0 : index
      %c0_65 = arith.constant 0 : index
      %144 = vector.load %arg15[%c0_64, %c0_65] : memref<1x32xf32, #tpu.memory_space<vmem>>, vector<1x32xf32>
      %c0_66 = arith.constant 0 : index
      %c0_67 = arith.constant 0 : index
      %145 = vector.load %arg16[%c0_66, %c0_67] : memref<1x32xf32, #tpu.memory_space<vmem>>, vector<1x32xf32>
      %cst_68 = arith.constant dense<0.000000e+00> : vector<16xf32>
      %146 = vector.multi_reduction <add>, %138, %cst_68 [1] : vector<16x32xf32> to vector<16xf32>
      %147 = vector.shape_cast %146 : vector<16xf32> to vector<16x1xf32>
      %cst_69 = arith.constant 3.200000e+01 : f32
      %148 = vector.broadcast %cst_69 : f32 to vector<16x1xf32>
      %149 = arith.divf %147, %148 : vector<16x1xf32>
      %150 = vector.broadcast %149 : vector<16x1xf32> to vector<16x32xf32>
      %151 = arith.subf %138, %150 : vector<16x32xf32>
      %152 = arith.mulf %151, %151 : vector<16x32xf32>
      %cst_70 = arith.constant dense<0.000000e+00> : vector<16xf32>
      %153 = vector.multi_reduction <add>, %152, %cst_70 [1] : vector<16x32xf32> to vector<16xf32>
      %154 = vector.shape_cast %153 : vector<16xf32> to vector<16x1xf32>
      %cst_71 = arith.constant 3.200000e+01 : f32
      %155 = vector.broadcast %cst_71 : f32 to vector<16x1xf32>
      %156 = arith.divf %154, %155 : vector<16x1xf32>
      %157 = vector.broadcast %149 : vector<16x1xf32> to vector<16x32xf32>
      %158 = arith.subf %138, %157 : vector<16x32xf32>
      %cst_72 = arith.constant 9.99999974E-6 : f32
      %159 = vector.broadcast %cst_72 : f32 to vector<16x1xf32>
      %160 = arith.addf %156, %159 : vector<16x1xf32>
      %161 = math.rsqrt %160 : vector<16x1xf32>
      %162 = vector.broadcast %161 : vector<16x1xf32> to vector<16x32xf32>
      %163 = arith.mulf %158, %162 : vector<16x32xf32>
      %164 = vector.broadcast %144 : vector<1x32xf32> to vector<16x32xf32>
      %165 = arith.mulf %163, %164 : vector<16x32xf32>
      %166 = vector.broadcast %145 : vector<1x32xf32> to vector<16x32xf32>
      %167 = arith.addf %165, %166 : vector<16x32xf32>
      %168 = vector.shape_cast %167 : vector<16x32xf32> to vector<2x8x32xf32>
      %c0_73 = arith.constant 0 : index
      %c0_74 = arith.constant 0 : index
      %c0_75 = arith.constant 0 : index
      %169 = vector.load %arg17[%c0_73, %c0_74, %c0_75] : memref<2x8x32xf32, #tpu.memory_space<vmem>>, vector<2x8x32xf32>
      tpu.vector_store %arg17[%c0_73, %c0_74, %c0_75], %168 {strides = array<i32>} : memref<2x8x32xf32, #tpu.memory_space<vmem>>, vector<2x8x32xf32>,
    } else {
    }
    return
  }
  func.func @transform_0(%arg0: i32) -> (i32, i32, i32) {
    %c0_i32 = arith.constant 0 : i32
    %c0_i32_0 = arith.constant 0 : i32
    %c0_i32_1 = arith.constant 0 : i32
    %c0_i32_2 = arith.constant 0 : i32
    return %c0_i32, %c0_i32_0, %c0_i32_1 : i32, i32, i32
  }
  func.func @transform_1(%arg0: i32) -> (i32, i32) {
    %c0_i32 = arith.constant 0 : i32
    %c0_i32_0 = arith.constant 0 : i32
    %c0_i32_1 = arith.constant 0 : i32
    return %c0_i32, %c0_i32_0 : i32, i32
  }
  func.func @transform_2(%arg0: i32) -> (i32, i32, i32) {
    %c0_i32 = arith.constant 0 : i32
    %c0_i32_0 = arith.constant 0 : i32
    %c0_i32_1 = arith.constant 0 : i32
    return %arg0, %c0_i32, %c0_i32_0 : i32, i32, i32
  }
  func.func @transform_3(%arg0: i32) -> (i32, i32, i32) {
    %c0_i32 = arith.constant 0 : i32
    %c0_i32_0 = arith.constant 0 : i32
    %c0_i32_1 = arith.constant 0 : i32
    return %arg0, %c0_i32, %c0_i32_0 : i32, i32, i32
  }
  func.func @transform_4(%arg0: i32) -> (i32, i32, i32) {
    %c0_i32 = arith.constant 0 : i32
    %c0_i32_0 = arith.constant 0 : i32
    %c0_i32_1 = arith.constant 0 : i32
    return %arg0, %c0_i32, %c0_i32_0 : i32, i32, i32
  }
  func.func @transform_5(%arg0: i32) -> (i32, i32, i32) {
    %c0_i32 = arith.constant 0 : i32
    %c0_i32_0 = arith.constant 0 : i32
    %c0_i32_1 = arith.constant 0 : i32
    return %arg0, %c0_i32, %c0_i32_0 : i32, i32, i32
  }
  func.func @transform_6(%arg0: i32) -> (i32, i32, i32) {
    %c0_i32 = arith.constant 0 : i32
    %c0_i32_0 = arith.constant 0 : i32
    %c0_i32_1 = arith.constant 0 : i32
    return %arg0, %c0_i32, %c0_i32_0 : i32, i32, i32
  }
  func.func @transform_7(%arg0: i32) -> (i32, i32, i32) {
    %c0_i32 = arith.constant 0 : i32
    %c0_i32_0 = arith.constant 0 : i32
    %c0_i32_1 = arith.constant 0 : i32
    return %arg0, %c0_i32, %c0_i32_0 : i32, i32, i32
  }
  func.func @transform_8(%arg0: i32) -> (i32, i32, i32) {
    %c0_i32 = arith.constant 0 : i32
    %c0_i32_0 = arith.constant 0 : i32
    %c0_i32_1 = arith.constant 0 : i32
    return %arg0, %c0_i32, %c0_i32_0 : i32, i32, i32
  }
  func.func @transform_9(%arg0: i32) -> (i32, i32, i32) {
    %c0_i32 = arith.constant 0 : i32
    %c0_i32_0 = arith.constant 0 : i32
    %c0_i32_1 = arith.constant 0 : i32
    return %arg0, %c0_i32, %c0_i32_0 : i32, i32, i32
  }
  func.func @transform_10(%arg0: i32) -> (i32, i32, i32) {
    %c0_i32 = arith.constant 0 : i32
    %c0_i32_0 = arith.constant 0 : i32
    %c0_i32_1 = arith.constant 0 : i32
    return %arg0, %c0_i32, %c0_i32_0 : i32, i32, i32
  }
  func.func @transform_11(%arg0: i32) -> (i32, i32, i32) {
    %c0_i32 = arith.constant 0 : i32
    %c0_i32_0 = arith.constant 0 : i32
    %c0_i32_1 = arith.constant 0 : i32
    return %arg0, %c0_i32, %c0_i32_0 : i32, i32, i32
  }
  func.func @transform_12(%arg0: i32) -> (i32, i32, i32) {
    %c0_i32 = arith.constant 0 : i32
    %c0_i32_0 = arith.constant 0 : i32
    %c0_i32_1 = arith.constant 0 : i32
    return %arg0, %c0_i32, %c0_i32_0 : i32, i32, i32
  }
  func.func @transform_13(%arg0: i32) -> (i32, i32, i32) {
    %c0_i32 = arith.constant 0 : i32
    %c0_i32_0 = arith.constant 0 : i32
    %c0_i32_1 = arith.constant 0 : i32
    return %arg0, %c0_i32, %c0_i32_0 : i32, i32, i32
  }
  func.func @transform_14(%arg0: i32) -> (i32, i32) {
    %c0_i32 = arith.constant 0 : i32
    %c0_i32_0 = arith.constant 0 : i32
    %c0_i32_1 = arith.constant 0 : i32
    return %c0_i32, %c0_i32_0 : i32, i32
  }
  func.func @transform_15(%arg0: i32) -> (i32, i32) {
    %c0_i32 = arith.constant 0 : i32
    %c0_i32_0 = arith.constant 0 : i32
    %c0_i32_1 = arith.constant 0 : i32
    return %c0_i32, %c0_i32_0 : i32, i32
  }
  func.func @transform_16(%arg0: i32) -> (i32, i32, i32) {
    %c0_i32 = arith.constant 0 : i32
    %c0_i32_0 = arith.constant 0 : i32
    %c0_i32_1 = arith.constant 0 : i32
    %c0_i32_2 = arith.constant 0 : i32
    return %c0_i32, %c0_i32_0, %c0_i32_1 : i32, i32, i32
  }
}

</mosaic_0001>

<llo_original>
// kernel: forward.1
$region0: #{forward.1}
  #allocation0 [shape = 'u32[]', space=smem, size = 0x4, offset = 0x4, fixed_abs, tag = 'smem constant byte address 0x4 - core index']
  #allocation1 [shape = 'u32[144,128]{1,0:T(1,128)}', space=vmem, size = 0x12000, scoped, tag = 'internal scratch']
  #allocation2 [shape = 'f32[2,8,32]{2,1,0:T(8,128)}', space=vmem, size = 0x2000, scoped, tag = 'scratch operand']
  %s0 = inlined_call_operand.vmem [shape: f32[2,8,32], index: 0, kind: input, shape index: {}]
  %s1 = inlined_call_operand.vmem [shape: f32[8,32], index: 1, kind: input, shape index: {}]
  %s2 = inlined_call_operand.vmem [shape: f32[12,1,32], index: 2, kind: input, shape index: {}]
  %s3 = inlined_call_operand.vmem [shape: f32[12,1,32], index: 3, kind: input, shape index: {}]
  %s4 = inlined_call_operand.vmem [shape: bf16[12,32,96], index: 4, kind: input, shape index: {}]
  %s5 = inlined_call_operand.vmem [shape: f32[12,1,96], index: 5, kind: input, shape index: {}]
  %s6 = inlined_call_operand.vmem [shape: bf16[12,32,32], index: 6, kind: input, shape index: {}]
  %s7 = inlined_call_operand.vmem [shape: f32[12,1,32], index: 7, kind: input, shape index: {}]
  %s8 = inlined_call_operand.vmem [shape: f32[12,1,32], index: 8, kind: input, shape index: {}]
  %s9 = inlined_call_operand.vmem [shape: f32[12,1,32], index: 9, kind: input, shape index: {}]
  %s10 = inlined_call_operand.vmem [shape: bf16[12,32,128], index: 10, kind: input, shape index: {}]
  %s11 = inlined_call_operand.vmem [shape: f32[12,1,128], index: 11, kind: input, shape index: {}]
  %s12 = inlined_call_operand.vmem [shape: bf16[12,128,32], index: 12, kind: input, shape index: {}]
  %s13 = inlined_call_operand.vmem [shape: f32[12,1,32], index: 13, kind: input, shape index: {}]
  %s14 = inlined_call_operand.vmem [shape: f32[1,32], index: 14, kind: input, shape index: {}]
  %s15 = inlined_call_operand.vmem [shape: f32[1,32], index: 15, kind: input, shape index: {}]
  %s16 = inlined_call_operand.hbm [shape: f32[2,8,32], index: 16, kind: output, shape index: {}]
  %s17 = sld [smem:[#allocation0]]
  $region105: #{forward.1} parent=0
    _
  %s19 = ssub.s32 1, %s17
  %s20 = scalar_select 0, %s19, %s17
  $region1: #{forward.1} parent=0
    #allocation3 [shape = 'u8[8192]{0}', space=vmem, size = 0x2000, scoped, tag = 'output window, operand 0, single buffered']
    #allocation4 [shape = 's32[2]{0}', space=sflag, size = 0x8, scoped, tag = 'scoped memory for forward.1']
    %21 = vsyncpa [#allocation4], 0
    loop: start=0, step=1, limit=14
    $region2: #{forward.1} parent=1 // loop_pre_header
      _
    $region3: #{forward.1} parent=1 // loop_header
      %s23 = sphi 0, %s27
      %p24 = scmp.ge.s32.totalorder %s23, 14
      %s31 = sphi 0, %s31
      %s33 = sphi 0, %s31
      %s34 = sphi 0, %s33
      %s48 = sphi 0, %s34
      %s52 = sphi 0, %s52
      %s54 = sphi 0, %s52
      %s55 = sphi 0, %s54
      %s69 = sphi 0, %s55
      %s75 = sphi 0, %s77
      %s78 = sphi 0, %s75
      %s79 = sphi 0, %s78
      %s95 = sphi 0, %s79
      %s101 = sphi 0, %s103
      %s104 = sphi 0, %s101
      %s105 = sphi 0, %s104
      %s121 = sphi 0, %s105
      %s127 = sphi 0, %s129
      %s130 = sphi 0, %s127
      %s131 = sphi 0, %s130
      %s147 = sphi 0, %s131
      %s153 = sphi 0, %s155
      %s156 = sphi 0, %s153
      %s157 = sphi 0, %s156
      %s173 = sphi 0, %s157
      %s179 = sphi 0, %s181
      %s182 = sphi 0, %s179
      %s183 = sphi 0, %s182
      %s199 = sphi 0, %s183
      %s205 = sphi 0, %s207
      %s208 = sphi 0, %s205
      %s209 = sphi 0, %s208
      %s225 = sphi 0, %s209
      %s231 = sphi 0, %s233
      %s234 = sphi 0, %s231
      %s235 = sphi 0, %s234
      %s251 = sphi 0, %s235
      %s257 = sphi 0, %s259
      %s260 = sphi 0, %s257
      %s261 = sphi 0, %s260
      %s277 = sphi 0, %s261
      %s283 = sphi 0, %s285
      %s286 = sphi 0, %s283
      %s287 = sphi 0, %s286
      %s303 = sphi 0, %s287
      %s309 = sphi 0, %s311
      %s312 = sphi 0, %s309
      %s313 = sphi 0, %s312
      %s329 = sphi 0, %s313
      %s335 = sphi 0, %s337
      %s338 = sphi 0, %s335
      %s339 = sphi 0, %s338
      %s355 = sphi 0, %s339
      %s361 = sphi 0, %s363
      %s364 = sphi 0, %s361
      %s365 = sphi 0, %s364
      %s381 = sphi 0, %s365
      %s385 = sphi 0, %s385
      %s387 = sphi 0, %s385
      %s388 = sphi 0, %s387
      %s402 = sphi 0, %s388
      %s406 = sphi 0, %s406
      %s408 = sphi 0, %s406
      %s409 = sphi 0, %s408
      %s423 = sphi 0, %s409
      %s427 = sphi 0, %s427
      %s429 = sphi 0, %s427
      %s430 = sphi 0, %s429
      %s444 = sphi 0, %s430
    $region4: #{forward.1} parent=1 // loop_header_branch
      %26 = sbr.rel (%p24) target = $region8
    $region5: #{forward.1} parent=1 // loop_body
      %s28 = ssub.s32 %s23, 1
      %s29 = ssub.s32 %s23, 2
      %s30 = sadd.s32 %s23, 1
      %s32 = sadd.s32 %s31, 1
      %p35 = scmp.eq.s32.totalorder %s23, 11
      %p36 = scmp.ne.s32.totalorder %s31, %s33
      %p37 = scmp.eq.s32.totalorder %s23, 0
      %p38 = por %p36, %p37
      %p39 = scmp.ne.s32.totalorder %s31, %s33
      %p40 = scmp.eq.s32.totalorder %s28, 11
      %p41 = por %p39, %p40
      %p42 = scmp.ne.s32.totalorder %s33, %s34
      %p43 = scmp.eq.s32.totalorder %s28, 0
      %p44 = por %p42, %p43
      %p45 = scmp.ne.s32.totalorder %s33, %s34
      %p46 = scmp.eq.s32.totalorder %s29, 11
      %p47 = por %p45, %p46
      %p49 = scmp.ne.s32.totalorder %s34, %s48
      %p50 = scmp.eq.s32.totalorder %s29, 0
      %p51 = por %p49, %p50
      %s53 = sadd.s32 %s52, 1
      %p56 = scmp.eq.s32.totalorder %s23, 11
      %p57 = scmp.ne.s32.totalorder %s52, %s54
      %p58 = scmp.eq.s32.totalorder %s23, 0
      %p59 = por %p57, %p58
      %p60 = scmp.ne.s32.totalorder %s52, %s54
      %p61 = scmp.eq.s32.totalorder %s28, 11
      %p62 = por %p60, %p61
      %p63 = scmp.ne.s32.totalorder %s54, %s55
      %p64 = scmp.eq.s32.totalorder %s28, 0
      %p65 = por %p63, %p64
      %p66 = scmp.ne.s32.totalorder %s54, %s55
      %p67 = scmp.eq.s32.totalorder %s29, 11
      %p68 = por %p66, %p67
      %p70 = scmp.ne.s32.totalorder %s55, %s69
      %p71 = scmp.eq.s32.totalorder %s29, 0
      %p72 = por %p70, %p71
      %s73 = ssub.s32 %s23, %s30
      %p74 = scmp.eq.s32.totalorder %s73, 0
      %s76 = sadd.s32 %s75, 1
      %s77 = scalar_select %p74, %s75, %s76
      %p80 = pneg %p74
      %p81 = scmp.eq.s32.totalorder %s23, 11
      %p82 = por %p80, %p81
      %p83 = scmp.ne.s32.totalorder %s75, %s78
      %p84 = scmp.eq.s32.totalorder %s23, 0
      %p85 = por %p83, %p84
      %p86 = scmp.ne.s32.totalorder %s75, %s78
      %p87 = scmp.eq.s32.totalorder %s28, 11
      %p88 = por %p86, %p87
      %p89 = scmp.ne.s32.totalorder %s78, %s79
      %p90 = scmp.eq.s32.totalorder %s28, 0
      %p91 = por %p89, %p90
      %p92 = scmp.ne.s32.totalorder %s78, %s79
      %p93 = scmp.eq.s32.totalorder %s29, 11
      %p94 = por %p92, %p93
      %p96 = scmp.ne.s32.totalorder %s79, %s95
      %p97 = scmp.eq.s32.totalorder %s29, 0
      %p98 = por %p96, %p97
      %s99 = ssub.s32 %s23, %s30
      %p100 = scmp.eq.s32.totalorder %s99, 0
      %s102 = sadd.s32 %s101, 1
      %s103 = scalar_select %p100, %s101, %s102
      %p106 = pneg %p100
      %p107 = scmp.eq.s32.totalorder %s23, 11
      %p108 = por %p106, %p107
      %p109 = scmp.ne.s32.totalorder %s101, %s104
      %p110 = scmp.eq.s32.totalorder %s23, 0
      %p111 = por %p109, %p110
      %p112 = scmp.ne.s32.totalorder %s101, %s104
      %p113 = scmp.eq.s32.totalorder %s28, 11
      %p114 = por %p112, %p113
      %p115 = scmp.ne.s32.totalorder %s104, %s105
      %p116 = scmp.eq.s32.totalorder %s28, 0
      %p117 = por %p115, %p116
      %p118 = scmp.ne.s32.totalorder %s104, %s105
      %p119 = scmp.eq.s32.totalorder %s29, 11
      %p120 = por %p118, %p119
      %p122 = scmp.ne.s32.totalorder %s105, %s121
      %p123 = scmp.eq.s32.totalorder %s29, 0
      %p124 = por %p122, %p123
      %s125 = ssub.s32 %s23, %s30
      %p126 = scmp.eq.s32.totalorder %s125, 0
      %s128 = sadd.s32 %s127, 1
      %s129 = scalar_select %p126, %s127, %s128
      %p132 = pneg %p126
      %p133 = scmp.eq.s32.totalorder %s23, 11
      %p134 = por %p132, %p133
      %p135 = scmp.ne.s32.totalorder %s127, %s130
      %p136 = scmp.eq.s32.totalorder %s23, 0
      %p137 = por %p135, %p136
      %p138 = scmp.ne.s32.totalorder %s127, %s130
      %p139 = scmp.eq.s32.totalorder %s28, 11
      %p140 = por %p138, %p139
      %p141 = scmp.ne.s32.totalorder %s130, %s131
      %p142 = scmp.eq.s32.totalorder %s28, 0
      %p143 = por %p141, %p142
      %p144 = scmp.ne.s32.totalorder %s130, %s131
      %p145 = scmp.eq.s32.totalorder %s29, 11
      %p146 = por %p144, %p145
      %p148 = scmp.ne.s32.totalorder %s131, %s147
      %p149 = scmp.eq.s32.totalorder %s29, 0
      %p150 = por %p148, %p149
      %s151 = ssub.s32 %s23, %s30
      %p152 = scmp.eq.s32.totalorder %s151, 0
      %s154 = sadd.s32 %s153, 1
      %s155 = scalar_select %p152, %s153, %s154
      %p158 = pneg %p152
      %p159 = scmp.eq.s32.totalorder %s23, 11
      %p160 = por %p158, %p159
      %p161 = scmp.ne.s32.totalorder %s153, %s156
      %p162 = scmp.eq.s32.totalorder %s23, 0
      %p163 = por %p161, %p162
      %p164 = scmp.ne.s32.totalorder %s153, %s156
      %p165 = scmp.eq.s32.totalorder %s28, 11
      %p166 = por %p164, %p165
      %p167 = scmp.ne.s32.totalorder %s156, %s157
      %p168 = scmp.eq.s32.totalorder %s28, 0
      %p169 = por %p167, %p168
      %p170 = scmp.ne.s32.totalorder %s156, %s157
      %p171 = scmp.eq.s32.totalorder %s29, 11
      %p172 = por %p170, %p171
      %p174 = scmp.ne.s32.totalorder %s157, %s173
      %p175 = scmp.eq.s32.totalorder %s29, 0
      %p176 = por %p174, %p175
      %s177 = ssub.s32 %s23, %s30
      %p178 = scmp.eq.s32.totalorder %s177, 0
      %s180 = sadd.s32 %s179, 1
      %s181 = scalar_select %p178, %s179, %s180
      %p184 = pneg %p178
      %p185 = scmp.eq.s32.totalorder %s23, 11
      %p186 = por %p184, %p185
      %p187 = scmp.ne.s32.totalorder %s179, %s182
      %p188 = scmp.eq.s32.totalorder %s23, 0
      %p189 = por %p187, %p188
      %p190 = scmp.ne.s32.totalorder %s179, %s182
      %p191 = scmp.eq.s32.totalorder %s28, 11
      %p192 = por %p190, %p191
      %p193 = scmp.ne.s32.totalorder %s182, %s183
      %p194 = scmp.eq.s32.totalorder %s28, 0
      %p195 = por %p193, %p194
      %p196 = scmp.ne.s32.totalorder %s182, %s183
      %p197 = scmp.eq.s32.totalorder %s29, 11
      %p198 = por %p196, %p197
      %p200 = scmp.ne.s32.totalorder %s183, %s199
      %p201 = scmp.eq.s32.totalorder %s29, 0
      %p202 = por %p200, %p201
      %s203 = ssub.s32 %s23, %s30
      %p204 = scmp.eq.s32.totalorder %s203, 0
      %s206 = sadd.s32 %s205, 1
      %s207 = scalar_select %p204, %s205, %s206
      %p210 = pneg %p204
      %p211 = scmp.eq.s32.totalorder %s23, 11
      %p212 = por %p210, %p211
      %p213 = scmp.ne.s32.totalorder %s205, %s208
      %p214 = scmp.eq.s32.totalorder %s23, 0
      %p215 = por %p213, %p214
      %p216 = scmp.ne.s32.totalorder %s205, %s208
      %p217 = scmp.eq.s32.totalorder %s28, 11
      %p218 = por %p216, %p217
      %p219 = scmp.ne.s32.totalorder %s208, %s209
      %p220 = scmp.eq.s32.totalorder %s28, 0
      %p221 = por %p219, %p220
      %p222 = scmp.ne.s32.totalorder %s208, %s209
      %p223 = scmp.eq.s32.totalorder %s29, 11
      %p224 = por %p222, %p223
      %p226 = scmp.ne.s32.totalorder %s209, %s225
      %p227 = scmp.eq.s32.totalorder %s29, 0
      %p228 = por %p226, %p227
      %s229 = ssub.s32 %s23, %s30
      %p230 = scmp.eq.s32.totalorder %s229, 0
      %s232 = sadd.s32 %s231, 1
      %s233 = scalar_select %p230, %s231, %s232
      %p236 = pneg %p230
      %p237 = scmp.eq.s32.totalorder %s23, 11
      %p238 = por %p236, %p237
      %p239 = scmp.ne.s32.totalorder %s231, %s234
      %p240 = scmp.eq.s32.totalorder %s23, 0
      %p241 = por %p239, %p240
      %p242 = scmp.ne.s32.totalorder %s231, %s234
      %p243 = scmp.eq.s32.totalorder %s28, 11
      %p244 = por %p242, %p243
      %p245 = scmp.ne.s32.totalorder %s234, %s235
      %p246 = scmp.eq.s32.totalorder %s28, 0
      %p247 = por %p245, %p246
      %p248 = scmp.ne.s32.totalorder %s234, %s235
      %p249 = scmp.eq.s32.totalorder %s29, 11
      %p250 = por %p248, %p249
      %p252 = scmp.ne.s32.totalorder %s235, %s251
      %p253 = scmp.eq.s32.totalorder %s29, 0
      %p254 = por %p252, %p253
      %s255 = ssub.s32 %s23, %s30
      %p256 = scmp.eq.s32.totalorder %s255, 0
      %s258 = sadd.s32 %s257, 1
      %s259 = scalar_select %p256, %s257, %s258
      %p262 = pneg %p256
      %p263 = scmp.eq.s32.totalorder %s23, 11
      %p264 = por %p262, %p263
      %p265 = scmp.ne.s32.totalorder %s257, %s260
      %p266 = scmp.eq.s32.totalorder %s23, 0
      %p267 = por %p265, %p266
      %p268 = scmp.ne.s32.totalorder %s257, %s260
      %p269 = scmp.eq.s32.totalorder %s28, 11
      %p270 = por %p268, %p269
      %p271 = scmp.ne.s32.totalorder %s260, %s261
      %p272 = scmp.eq.s32.totalorder %s28, 0
      %p273 = por %p271, %p272
      %p274 = scmp.ne.s32.totalorder %s260, %s261
      %p275 = scmp.eq.s32.totalorder %s29, 11
      %p276 = por %p274, %p275
      %p278 = scmp.ne.s32.totalorder %s261, %s277
      %p279 = scmp.eq.s32.totalorder %s29, 0
      %p280 = por %p278, %p279
      %s281 = ssub.s32 %s23, %s30
      %p282 = scmp.eq.s32.totalorder %s281, 0
      %s284 = sadd.s32 %s283, 1
      %s285 = scalar_select %p282, %s283, %s284
      %p288 = pneg %p282
      %p289 = scmp.eq.s32.totalorder %s23, 11
      %p290 = por %p288, %p289
      %p291 = scmp.ne.s32.totalorder %s283, %s286
      %p292 = scmp.eq.s32.totalorder %s23, 0
      %p293 = por %p291, %p292
      %p294 = scmp.ne.s32.totalorder %s283, %s286
      %p295 = scmp.eq.s32.totalorder %s28, 11
      %p296 = por %p294, %p295
      %p297 = scmp.ne.s32.totalorder %s286, %s287
      %p298 = scmp.eq.s32.totalorder %s28, 0
      %p299 = por %p297, %p298
      %p300 = scmp.ne.s32.totalorder %s286, %s287
      %p301 = scmp.eq.s32.totalorder %s29, 11
      %p302 = por %p300, %p301
      %p304 = scmp.ne.s32.totalorder %s287, %s303
      %p305 = scmp.eq.s32.totalorder %s29, 0
      %p306 = por %p304, %p305
      %s307 = ssub.s32 %s23, %s30
      %p308 = scmp.eq.s32.totalorder %s307, 0
      %s310 = sadd.s32 %s309, 1
      %s311 = scalar_select %p308, %s309, %s310
      %p314 = pneg %p308
      %p315 = scmp.eq.s32.totalorder %s23, 11
      %p316 = por %p314, %p315
      %p317 = scmp.ne.s32.totalorder %s309, %s312
      %p318 = scmp.eq.s32.totalorder %s23, 0
      %p319 = por %p317, %p318
      %p320 = scmp.ne.s32.totalorder %s309, %s312
      %p321 = scmp.eq.s32.totalorder %s28, 11
      %p322 = por %p320, %p321
      %p323 = scmp.ne.s32.totalorder %s312, %s313
      %p324 = scmp.eq.s32.totalorder %s28, 0
      %p325 = por %p323, %p324
      %p326 = scmp.ne.s32.totalorder %s312, %s313
      %p327 = scmp.eq.s32.totalorder %s29, 11
      %p328 = por %p326, %p327
      %p330 = scmp.ne.s32.totalorder %s313, %s329
      %p331 = scmp.eq.s32.totalorder %s29, 0
      %p332 = por %p330, %p331
      %s333 = ssub.s32 %s23, %s30
      %p334 = scmp.eq.s32.totalorder %s333, 0
      %s336 = sadd.s32 %s335, 1
      %s337 = scalar_select %p334, %s335, %s336
      %p340 = pneg %p334
      %p341 = scmp.eq.s32.totalorder %s23, 11
      %p342 = por %p340, %p341
      %p343 = scmp.ne.s32.totalorder %s335, %s338
      %p344 = scmp.eq.s32.totalorder %s23, 0
      %p345 = por %p343, %p344
      %p346 = scmp.ne.s32.totalorder %s335, %s338
      %p347 = scmp.eq.s32.totalorder %s28, 11
      %p348 = por %p346, %p347
      %p349 = scmp.ne.s32.totalorder %s338, %s339
      %p350 = scmp.eq.s32.totalorder %s28, 0
      %p351 = por %p349, %p350
      %p352 = scmp.ne.s32.totalorder %s338, %s339
      %p353 = scmp.eq.s32.totalorder %s29, 11
      %p354 = por %p352, %p353
      %p356 = scmp.ne.s32.totalorder %s339, %s355
      %p357 = scmp.eq.s32.totalorder %s29, 0
      %p358 = por %p356, %p357
      %s359 = ssub.s32 %s23, %s30
      %p360 = scmp.eq.s32.totalorder %s359, 0
      %s362 = sadd.s32 %s361, 1
      %s363 = scalar_select %p360, %s361, %s362
      %p366 = pneg %p360
      %p367 = scmp.eq.s32.totalorder %s23, 11
      %p368 = por %p366, %p367
      %p369 = scmp.ne.s32.totalorder %s361, %s364
      %p370 = scmp.eq.s32.totalorder %s23, 0
      %p371 = por %p369, %p370
      %p372 = scmp.ne.s32.totalorder %s361, %s364
      %p373 = scmp.eq.s32.totalorder %s28, 11
      %p374 = por %p372, %p373
      %p375 = scmp.ne.s32.totalorder %s364, %s365
      %p376 = scmp.eq.s32.totalorder %s28, 0
      %p377 = por %p375, %p376
      %p378 = scmp.ne.s32.totalorder %s364, %s365
      %p379 = scmp.eq.s32.totalorder %s29, 11
      %p380 = por %p378, %p379
      %p382 = scmp.ne.s32.totalorder %s365, %s381
      %p383 = scmp.eq.s32.totalorder %s29, 0
      %p384 = por %p382, %p383
      %s386 = sadd.s32 %s385, 1
      %p389 = scmp.eq.s32.totalorder %s23, 11
      %p390 = scmp.ne.s32.totalorder %s385, %s387
      %p391 = scmp.eq.s32.totalorder %s23, 0
      %p392 = por %p390, %p391
      %p393 = scmp.ne.s32.totalorder %s385, %s387
      %p394 = scmp.eq.s32.totalorder %s28, 11
      %p395 = por %p393, %p394
      %p396 = scmp.ne.s32.totalorder %s387, %s388
      %p397 = scmp.eq.s32.totalorder %s28, 0
      %p398 = por %p396, %p397
      %p399 = scmp.ne.s32.totalorder %s387, %s388
      %p400 = scmp.eq.s32.totalorder %s29, 11
      %p401 = por %p399, %p400
      %p403 = scmp.ne.s32.totalorder %s388, %s402
      %p404 = scmp.eq.s32.totalorder %s29, 0
      %p405 = por %p403, %p404
      %s407 = sadd.s32 %s406, 1
      %p410 = scmp.eq.s32.totalorder %s23, 11
      %p411 = scmp.ne.s32.totalorder %s406, %s408
      %p412 = scmp.eq.s32.totalorder %s23, 0
      %p413 = por %p411, %p412
      %p414 = scmp.ne.s32.totalorder %s406, %s408
      %p415 = scmp.eq.s32.totalorder %s28, 11
      %p416 = por %p414, %p415
      %p417 = scmp.ne.s32.totalorder %s408, %s409
      %p418 = scmp.eq.s32.totalorder %s28, 0
      %p419 = por %p417, %p418
      %p420 = scmp.ne.s32.totalorder %s408, %s409
      %p421 = scmp.eq.s32.totalorder %s29, 11
      %p422 = por %p420, %p421
      %p424 = scmp.ne.s32.totalorder %s409, %s423
      %p425 = scmp.eq.s32.totalorder %s29, 0
      %p426 = por %p424, %p425
      %s428 = sadd.s32 %s427, 1
      %p431 = scmp.eq.s32.totalorder %s23, 11
      %p432 = scmp.ne.s32.totalorder %s427, %s429
      %p433 = scmp.eq.s32.totalorder %s23, 0
      %p434 = por %p432, %p433
      %p435 = scmp.ne.s32.totalorder %s427, %s429
      %p436 = scmp.eq.s32.totalorder %s28, 11
      %p437 = por %p435, %p436
      %p438 = scmp.ne.s32.totalorder %s429, %s430
      %p439 = scmp.eq.s32.totalorder %s28, 0
      %p440 = por %p438, %p439
      %p441 = scmp.ne.s32.totalorder %s429, %s430
      %p442 = scmp.eq.s32.totalorder %s29, 11
      %p443 = por %p441, %p442
      %p445 = scmp.ne.s32.totalorder %s430, %s444
      %p446 = scmp.eq.s32.totalorder %s29, 0
      %p447 = por %p445, %p446
      %p448 = scmp.le.s32.totalorder 1, %s23
      %p449 = scmp.lt.s32.totalorder %s23, 13
      %p450 = pnand %p448, %p449
      %p451 = pneg %p450
      // Predicated region
      $region9: #{forward.1} parent=5 // pred_check
        _
      $region10: #{forward.1} parent=5 // pred_check_branch
        %453 = sbr.rel (%p450) target = $region12
      $region11: #{forward.1} parent=5 // pred_region
        %s454 = ssub.s32 %s23, 1
        // Predicated region
        $region13: #{forward.1} parent=11 // pred_check
          %p455 = pneg %p44
        $region14: #{forward.1} parent=11 // pred_check_branch
          %457 = sbr.rel (%p455) target = $region16
        $region15: #{forward.1} parent=11 // pred_region
          _
        $region16: #{forward.1} parent=11 // pred_fallthru
          _
        // Predicated region
        $region17: #{forward.1} parent=11 // pred_check
          %p458 = pneg %p65
        $region18: #{forward.1} parent=11 // pred_check_branch
          %460 = sbr.rel (%p458) target = $region20
        $region19: #{forward.1} parent=11 // pred_region
          _
        $region20: #{forward.1} parent=11 // pred_fallthru
          _
        // Predicated region
        $region21: #{forward.1} parent=11 // pred_check
          %p461 = pneg %p398
        $region22: #{forward.1} parent=11 // pred_check_branch
          %463 = sbr.rel (%p461) target = $region24
        $region23: #{forward.1} parent=11 // pred_region
          _
        $region24: #{forward.1} parent=11 // pred_fallthru
          _
        // Predicated region
        $region25: #{forward.1} parent=11 // pred_check
          %p464 = pneg %p419
        $region26: #{forward.1} parent=11 // pred_check_branch
          %466 = sbr.rel (%p464) target = $region28
        $region27: #{forward.1} parent=11 // pred_region
          _
        $region28: #{forward.1} parent=11 // pred_fallthru
          _
      $region12: #{forward.1} parent=5 // pred_fallthru
        _
      %p467 = scmp.lt.s32.totalorder %s23, 12
      // Predicated region
      $region29: #{forward.1} parent=5 // pred_check
        %p468 = pneg %p467
      $region30: #{forward.1} parent=5 // pred_check_branch
        %470 = sbr.rel (%p468) target = $region32
      $region31: #{forward.1} parent=5 // pred_region
        // Predicated region
        $region33: #{forward.1} parent=31 // pred_check
          %p471 = pneg %p85
        $region34: #{forward.1} parent=31 // pred_check_branch
          %473 = sbr.rel (%p471) target = $region36
        $region35: #{forward.1} parent=31 // pred_region
          %p474 = scmp.lt.s32.totalorder %s23, 11
          %s475 = scalar_select %p474, %s23, 11
          %s476 = scalar_lea.vmem %s2, %s475
        $region36: #{forward.1} parent=31 // pred_fallthru
          _
        // Predicated region
        $region37: #{forward.1} parent=31 // pred_check
          %p477 = pneg %p111
        $region38: #{forward.1} parent=31 // pred_check_branch
          %479 = sbr.rel (%p477) target = $region40
        $region39: #{forward.1} parent=31 // pred_region
          %p480 = scmp.lt.s32.totalorder %s23, 11
          %s481 = scalar_select %p480, %s23, 11
          %s482 = scalar_lea.vmem %s3, %s481
        $region40: #{forward.1} parent=31 // pred_fallthru
          _
        // Predicated region
        $region41: #{forward.1} parent=31 // pred_check
          %p483 = pneg %p137
        $region42: #{forward.1} parent=31 // pred_check_branch
          %485 = sbr.rel (%p483) target = $region44
        $region43: #{forward.1} parent=31 // pred_region
          %p486 = scmp.lt.s32.totalorder %s23, 11
          %s487 = scalar_select %p486, %s23, 11
          %s488 = smul.addr %s487, 4
          %s489 = smul.addr %s488, 4
          %s490 = scalar_lea.vmem %s4, %s489
        $region44: #{forward.1} parent=31 // pred_fallthru
          _
        // Predicated region
        $region45: #{forward.1} parent=31 // pred_check
          %p491 = pneg %p163
        $region46: #{forward.1} parent=31 // pred_check_branch
          %493 = sbr.rel (%p491) target = $region48
        $region47: #{forward.1} parent=31 // pred_region
          %p494 = scmp.lt.s32.totalorder %s23, 11
          %s495 = scalar_select %p494, %s23, 11
          %s496 = scalar_lea.vmem %s5, %s495
        $region48: #{forward.1} parent=31 // pred_fallthru
          _
        // Predicated region
        $region49: #{forward.1} parent=31 // pred_check
          %p497 = pneg %p189
        $region50: #{forward.1} parent=31 // pred_check_branch
          %499 = sbr.rel (%p497) target = $region52
        $region51: #{forward.1} parent=31 // pred_region
          %p500 = scmp.lt.s32.totalorder %s23, 11
          %s501 = scalar_select %p500, %s23, 11
          %s502 = smul.addr %s501, 4
          %s503 = smul.addr %s502, 4
          %s504 = scalar_lea.vmem %s6, %s503
        $region52: #{forward.1} parent=31 // pred_fallthru
          _
        // Predicated region
        $region53: #{forward.1} parent=31 // pred_check
          %p505 = pneg %p215
        $region54: #{forward.1} parent=31 // pred_check_branch
          %507 = sbr.rel (%p505) target = $region56
        $region55: #{forward.1} parent=31 // pred_region
          %p508 = scmp.lt.s32.totalorder %s23, 11
          %s509 = scalar_select %p508, %s23, 11
          %s510 = scalar_lea.vmem %s7, %s509
        $region56: #{forward.1} parent=31 // pred_fallthru
          _
        // Predicated region
        $region57: #{forward.1} parent=31 // pred_check
          %p511 = pneg %p241
        $region58: #{forward.1} parent=31 // pred_check_branch
          %513 = sbr.rel (%p511) target = $region60
        $region59: #{forward.1} parent=31 // pred_region
          %p514 = scmp.lt.s32.totalorder %s23, 11
          %s515 = scalar_select %p514, %s23, 11
          %s516 = scalar_lea.vmem %s8, %s515
        $region60: #{forward.1} parent=31 // pred_fallthru
          _
        // Predicated region
        $region61: #{forward.1} parent=31 // pred_check
          %p517 = pneg %p267
        $region62: #{forward.1} parent=31 // pred_check_branch
          %519 = sbr.rel (%p517) target = $region64
        $region63: #{forward.1} parent=31 // pred_region
          %p520 = scmp.lt.s32.totalorder %s23, 11
          %s521 = scalar_select %p520, %s23, 11
          %s522 = scalar_lea.vmem %s9, %s521
        $region64: #{forward.1} parent=31 // pred_fallthru
          _
        // Predicated region
        $region65: #{forward.1} parent=31 // pred_check
          %p523 = pneg %p293
        $region66: #{forward.1} parent=31 // pred_check_branch
          %525 = sbr.rel (%p523) target = $region68
        $region67: #{forward.1} parent=31 // pred_region
          %p526 = scmp.lt.s32.totalorder %s23, 11
          %s527 = scalar_select %p526, %s23, 11
          %s528 = smul.addr %s527, 4
          %s529 = smul.addr %s528, 4
          %s530 = scalar_lea.vmem %s10, %s529
        $region68: #{forward.1} parent=31 // pred_fallthru
          _
        // Predicated region
        $region69: #{forward.1} parent=31 // pred_check
          %p531 = pneg %p319
        $region70: #{forward.1} parent=31 // pred_check_branch
          %533 = sbr.rel (%p531) target = $region72
        $region71: #{forward.1} parent=31 // pred_region
          %p534 = scmp.lt.s32.totalorder %s23, 11
          %s535 = scalar_select %p534, %s23, 11
          %s536 = scalar_lea.vmem %s11, %s535
        $region72: #{forward.1} parent=31 // pred_fallthru
          _
        // Predicated region
        $region73: #{forward.1} parent=31 // pred_check
          %p537 = pneg %p345
        $region74: #{forward.1} parent=31 // pred_check_branch
          %539 = sbr.rel (%p537) target = $region76
        $region75: #{forward.1} parent=31 // pred_region
          %p540 = scmp.lt.s32.totalorder %s23, 11
          %s541 = scalar_select %p540, %s23, 11
          %s542 = smul.addr %s541, 16
          %s543 = smul.addr %s542, 4
          %s544 = scalar_lea.vmem %s12, %s543
        $region76: #{forward.1} parent=31 // pred_fallthru
          _
        // Predicated region
        $region77: #{forward.1} parent=31 // pred_check
          %p545 = pneg %p371
        $region78: #{forward.1} parent=31 // pred_check_branch
          %547 = sbr.rel (%p545) target = $region80
        $region79: #{forward.1} parent=31 // pred_region
          %p548 = scmp.lt.s32.totalorder %s23, 11
          %s549 = scalar_select %p548, %s23, 11
          %s550 = scalar_lea.vmem %s13, %s549
        $region80: #{forward.1} parent=31 // pred_fallthru
          _
      $region32: #{forward.1} parent=5 // pred_fallthru
        _
      %p551 = scmp.le.s32.totalorder 1, %s23
      %p552 = scmp.lt.s32.totalorder %s23, 13
      %p553 = pnand %p551, %p552
      %p554 = pneg %p553
      // Predicated region
      $region81: #{forward.1} parent=5 // pred_check
        _
      $region82: #{forward.1} parent=5 // pred_check_branch
        %556 = sbr.rel (%p553) target = $region84
      $region83: #{forward.1} parent=5 // pred_region
        %s557 = ssub.s32 %s23, 1
        %p558 = pneg %p44
        %p559 = pneg %p41
        %p560 = pneg %p65
        %p561 = pneg %p62
        %p562 = scmp.lt.s32.totalorder %s28, 11
        %s563 = scalar_select %p562, %s28, 11
        %s564 = scalar_lea.vmem %s2, %s563
        %p565 = pneg %p91
        %p566 = pneg %p88
        %p567 = scmp.lt.s32.totalorder %s28, 11
        %s568 = scalar_select %p567, %s28, 11
        %s569 = scalar_lea.vmem %s3, %s568
        %p570 = pneg %p117
        %p571 = pneg %p114
        %p572 = scmp.lt.s32.totalorder %s28, 11
        %s573 = scalar_select %p572, %s28, 11
        %s574 = smul.addr %s573, 4
        %s575 = smul.addr %s574, 4
        %s576 = scalar_lea.vmem %s4, %s575
        %p577 = pneg %p143
        %p578 = pneg %p140
        %p579 = scmp.lt.s32.totalorder %s28, 11
        %s580 = scalar_select %p579, %s28, 11
        %s581 = scalar_lea.vmem %s5, %s580
        %p582 = pneg %p169
        %p583 = pneg %p166
        %p584 = scmp.lt.s32.totalorder %s28, 11
        %s585 = scalar_select %p584, %s28, 11
        %s586 = smul.addr %s585, 4
        %s587 = smul.addr %s586, 4
        %s588 = scalar_lea.vmem %s6, %s587
        %p589 = pneg %p195
        %p590 = pneg %p192
        %p591 = scmp.lt.s32.totalorder %s28, 11
        %s592 = scalar_select %p591, %s28, 11
        %s593 = scalar_lea.vmem %s7, %s592
        %p594 = pneg %p221
        %p595 = pneg %p218
        %p596 = scmp.lt.s32.totalorder %s28, 11
        %s597 = scalar_select %p596, %s28, 11
        %s598 = scalar_lea.vmem %s8, %s597
        %p599 = pneg %p247
        %p600 = pneg %p244
        %p601 = scmp.lt.s32.totalorder %s28, 11
        %s602 = scalar_select %p601, %s28, 11
        %s603 = scalar_lea.vmem %s9, %s602
        %p604 = pneg %p273
        %p605 = pneg %p270
        %p606 = scmp.lt.s32.totalorder %s28, 11
        %s607 = scalar_select %p606, %s28, 11
        %s608 = smul.addr %s607, 4
        %s609 = smul.addr %s608, 4
        %s610 = scalar_lea.vmem %s10, %s609
        %p611 = pneg %p299
        %p612 = pneg %p296
        %p613 = scmp.lt.s32.totalorder %s28, 11
        %s614 = scalar_select %p613, %s28, 11
        %s615 = scalar_lea.vmem %s11, %s614
        %p616 = pneg %p325
        %p617 = pneg %p322
        %p618 = scmp.lt.s32.totalorder %s28, 11
        %s619 = scalar_select %p618, %s28, 11
        %s620 = smul.addr %s619, 16
        %s621 = smul.addr %s620, 4
        %s622 = scalar_lea.vmem %s12, %s621
        %p623 = pneg %p351
        %p624 = pneg %p348
        %p625 = scmp.lt.s32.totalorder %s28, 11
        %s626 = scalar_select %p625, %s28, 11
        %s627 = scalar_lea.vmem %s13, %s626
        %p628 = pneg %p377
        %p629 = pneg %p374
        %p630 = pneg %p398
        %p631 = pneg %p395
        %p632 = pneg %p419
        %p633 = pneg %p416
        %p634 = pneg %p440
        %p635 = pneg %p437
        %p636 = scmp.lt.s32.totalorder %s28, 11
        %s637 = scalar_select %p636, %s28, 11
        %s638 = scalar_lea.vmem %s2, %s637
        %p639 = scmp.lt.s32.totalorder %s28, 11
        %s640 = scalar_select %p639, %s28, 11
        %s641 = scalar_lea.vmem %s3, %s640
        %p642 = scmp.lt.s32.totalorder %s28, 11
        %s643 = scalar_select %p642, %s28, 11
        %s644 = smul.addr %s643, 4
        %s645 = smul.addr %s644, 4
        %s646 = scalar_lea.vmem %s4, %s645
        %p647 = scmp.lt.s32.totalorder %s28, 11
        %s648 = scalar_select %p647, %s28, 11
        %s649 = scalar_lea.vmem %s5, %s648
        %p650 = scmp.lt.s32.totalorder %s28, 11
        %s651 = scalar_select %p650, %s28, 11
        %s652 = smul.addr %s651, 4
        %s653 = smul.addr %s652, 4
        %s654 = scalar_lea.vmem %s6, %s653
        %p655 = scmp.lt.s32.totalorder %s28, 11
        %s656 = scalar_select %p655, %s28, 11
        %s657 = scalar_lea.vmem %s7, %s656
        %p658 = scmp.lt.s32.totalorder %s28, 11
        %s659 = scalar_select %p658, %s28, 11
        %s660 = scalar_lea.vmem %s8, %s659
        %p661 = scmp.lt.s32.totalorder %s28, 11
        %s662 = scalar_select %p661, %s28, 11
        %s663 = scalar_lea.vmem %s9, %s662
        %p664 = scmp.lt.s32.totalorder %s28, 11
        %s665 = scalar_select %p664, %s28, 11
        %s666 = smul.addr %s665, 4
        %s667 = smul.addr %s666, 4
        %s668 = scalar_lea.vmem %s10, %s667
        %p669 = scmp.lt.s32.totalorder %s28, 11
        %s670 = scalar_select %p669, %s28, 11
        %s671 = scalar_lea.vmem %s11, %s670
        %p672 = scmp.lt.s32.totalorder %s28, 11
        %s673 = scalar_select %p672, %s28, 11
        %s674 = smul.addr %s673, 16
        %s675 = smul.addr %s674, 4
        %s676 = scalar_lea.vmem %s12, %s675
        %p677 = scmp.lt.s32.totalorder %s28, 11
        %s678 = scalar_select %p677, %s28, 11
        %s679 = scalar_lea.vmem %s13, %s678
        %p681 = scmp.eq.s32.totalorder %s28, 0
        // Predicated region
        $region85: #{forward.1} parent=83 // pred_check
          %p682 = pneg %p681
        $region86: #{forward.1} parent=83 // pred_check_branch
          %684 = sbr.rel (%p682) target = $region88
        $region87: #{forward.1} parent=83 // pred_region
          %v685 = vld [vmem:[%s0] sm:$0xff]
          %v686 = vld [vmem:[%s0 + $0x8] sm:$0xff]
          %v687 = vld [vmem:[%s1] sm:$0xff]
          %v688 = vadd.f32 %v685, %v687
          %v689 = vadd.f32 %v686, %v687
          %vm690 = vcmask 261120
          %691 = vst.msk [vmem:[#allocation2] sm:$0xff] %vm690, %v688
          %692 = vst.msk [vmem:[#allocation2 + $0x8] sm:$0xff] %vm690, %v689
        $region88: #{forward.1} parent=83 // pred_fallthru
          _
        %v693 = vld [vmem:[#allocation2] sm:$0xff]
        %v694 = vld [vmem:[#allocation2 + $0x8] sm:$0xff]
        %v695 = vld [vmem:[%s638] sm:$0x1]
        %v696 = vld [vmem:[%s641] sm:$0x1]
        %vm697 = vcmask 261120
        %v698 = vsel %vm697, %v693, 0.0
        %699 = vadd.xlane.f32.xlu0 %v698
        %v700 = vpop.xlane.xlu0 %699
        %v701 = vsel %vm697, %v694, 0.0
        %702 = vadd.xlane.f32.xlu0 %v701
        %v703 = vpop.xlane.xlu0 %702
        %v704 = vrcp.pop 32.0
        %v705 = vmul.f32 %v700, %v704
        %v706 = vmul.f32 %v703, %v704
        %v707 = vsub.f32 %v693, %v705
        %v708 = vsub.f32 %v694, %v706
        %v709 = vmul.f32 %v707, %v707
        %v710 = vmul.f32 %v708, %v708
        %v711 = vsel %vm697, %v709, 0.0
        %712 = vadd.xlane.f32.xlu0 %v711
        %v713 = vpop.xlane.xlu0 %712
        %v714 = vsel %vm697, %v710, 0.0
        %715 = vadd.xlane.f32.xlu0 %v714
        %v716 = vpop.xlane.xlu0 %715
        %v717 = vmul.f32 %v713, %v704
        %v718 = vmul.f32 %v716, %v704
        %v719 = vadd.f32 %v717, 1e-05
        %v720 = vadd.f32 %v718, 1e-05
        %v721 = vrsqrt.pop %v719
        %v722 = vrsqrt.pop %v720
        %v723 = vmul.f32 %v707, %v721
        %v724 = vmul.f32 %v708, %v722
        %v726 = vlaneseq
        %v727 = vshrl.u32 %v726, 7
        %v728 = vsub.s32 0, %v727
        %v729 = vrot.slane %v695, %v728
        %v731 = vmul.f32 %v723, %v729
        %v732 = vmul.f32 %v724, %v729
        %v734 = vlaneseq
        %v735 = vshrl.u32 %v734, 7
        %v736 = vsub.s32 0, %v735
        %v737 = vrot.slane %v696, %v736
        %v739 = vadd.f32 %v731, %v737
        %v740 = vadd.f32 %v732, %v737
        %v741 = vpack.c.bf16 %v740, %v739
        %v742 = vld [vmem:[%s646] sm:$0xf]
        %v743 = vld [vmem:[%s646 + $0x4] sm:$0xf]
        %v744 = vld [vmem:[%s646 + $0x8] sm:$0xf]
        %v745 = vld [vmem:[%s646 + $0xc] sm:$0xf]
        %v746 = vld [vmem:[%s649] sm:$0x1]
        %v748 = vlaneseq
        %v749 = vshrl.u32 %v748, 7
        %v750 = vsub.s32 0, %v749
        %v751 = vrot.slane %v746, %v750
        %v757 = vunpack.c.l.b16 %v742
        %v758 = vunpack.c.l.b16 %v743
        %v759 = vunpack.c.l.b16 %v744
        %v760 = vunpack.c.l.b16 %v745
        %v761 = vpack.c.b16 %v758, %v757
        %v762 = vpack.c.b16 %v760, %v759
        %v766 = vsel %vm697, %v741, 0
        %768 = vmatprep.subr.bf16.mxu0 0
        %769 = vmatpush1.bf16.msra.mxu0 %v761
        %770 = vmatprep.subr.bf16.mxu0 0
        %771 = vmatpush1.bf16.msra.mxu0 %v762
        %772 = vmatprep.subr.bf16.mxu0 0
        %773 = vmatpush1.bf16.msra.mxu0 0
        %774 = vmatprep.subr.bf16.mxu0 0
        %775 = vmatpush1.bf16.msra.mxu0 0
        %776 = vmatprep.subr.bf16.mxu0 0
        %777 = vmatpush1.bf16.msra.mxu0 0
        %778 = vmatprep.subr.bf16.mxu0 0
        %779 = vmatpush1.bf16.msra.mxu0 0
        %780 = vmatprep.subr.bf16.mxu0 0
        %781 = vmatpush1.bf16.msra.mxu0 0
        %782 = vmatprep.subr.bf16.mxu0 0
        %783 = vmatpush1.bf16.msra.mxu0 0
        %784 = vmatprep.subr.bf16.mxu0 0
        %785 = vmatpush1.bf16.msra.mxu0 0
        %786 = vmatprep.subr.bf16.mxu0 0
        %787 = vmatpush1.bf16.msra.mxu0 0
        %788 = vmatprep.subr.bf16.mxu0 0
        %789 = vmatpush1.bf16.msra.mxu0 0
        %790 = vmatprep.subr.bf16.mxu0 0
        %791 = vmatpush1.bf16.msra.mxu0 0
        %792 = vmatprep.subr.bf16.mxu0 0
        %793 = vmatpush1.bf16.msra.mxu0 0
        %794 = vmatprep.subr.bf16.mxu0 0
        %795 = vmatpush1.bf16.msra.mxu0 0
        %796 = vmatprep.subr.bf16.mxu0 0
        %797 = vmatpush1.bf16.msra.mxu0 0
        %798 = vmatprep.subr.bf16.mxu0 0
        %799 = vmatpush1.bf16.msra.mxu0 0
        %800 = vmatprep.mubr.bf16.mxu0 0
        %801 = vmatmul.mubr.bf16.gmra.mrb[0].mxu0 %v766
        %v802 = vpop.f32.mrb[0].mxu0
        %v803 = vadd.f32 %v751, %v802
        %v804 = vpop.f32.mrb[0].mxu0
        %v805 = vpop.f32.mrb[0].mxu0
        %v806 = vadd.f32 %v751, %v805
        %v807 = vpop.f32.mrb[0].mxu0
        %808 = vdwg.mxu0
        %v809 = vmul.f32 %v803, 0.35355338
        %v810 = vmul.f32 %v806, 0.35355338
        %v811 = vpack.c.bf16 %v810, %v809
        %v812 = vpack.c.bf16 %v806, %v803
        %814 = vrot.lane.b32.xlu0 %v811, 120
        %v815 = vpop.permute.xlu0 %814
        %816 = vrot.lane.b32.xlu0 %v811, 112
        %v817 = vpop.permute.xlu0 %816
        %818 = vrot.lane.b32.xlu0 %v811, 104
        %v819 = vpop.permute.xlu0 %818
        %v822 = vpack.i.b16 %v815, %v811
        %v824 = vshrl.u32 %v811, 16
        %v825 = vshrl.u32 %v815, 16
        %v826 = vpack.i.b16 %v825, %v824
        %v830 = vpack.i.b16 %v819, %v817
        %v832 = vshrl.u32 %v817, 16
        %v833 = vshrl.u32 %v819, 16
        %v834 = vpack.i.b16 %v833, %v832
        %v837 = vpack.i.b16 0, 0
        %v839 = vshrl.u32 0, 16
        %v840 = vpack.i.b16 %v839, %v839
        %v842 = vcombine.high %v822, %v837
        %v844 = vunpack.c.l.s4 1983009808
        %v845 = vunpack.c.0.s8 %v844
        %v846 = vlaneseq
        %v847 = vshrl.u32 %v846, 7
        %v848 = vsub.s32 %v845, %v847
        %v849 = vrot.slane %v822, %v848
        %v851 = vunpack.c.l.s4 1983009808
        %v852 = vunpack.c.0.s8 %v851
        %v853 = vlaneseq
        %v854 = vshrl.u32 %v853, 7
        %v855 = vsub.s32 %v852, %v854
        %v856 = vrot.slane %v842, %v855
        %v857 = vcombine.high %v830, %v837
        %v859 = vunpack.c.l.s4 1983009808
        %v860 = vunpack.c.0.s8 %v859
        %v861 = vlaneseq
        %v862 = vshrl.u32 %v861, 7
        %v863 = vsub.s32 %v860, %v862
        %v864 = vrot.slane %v830, %v863
        %v866 = vunpack.c.l.s4 1983009808
        %v867 = vunpack.c.0.s8 %v866
        %v868 = vlaneseq
        %v869 = vshrl.u32 %v868, 7
        %v870 = vsub.s32 %v867, %v869
        %v871 = vrot.slane %v857, %v870
        %v872 = vcombine.low %v849, %v864
        %v873 = vcombine.high %v849, %v864
        %v875 = vunpack.c.l.s4 1934713408
        %v876 = vunpack.c.0.s8 %v875
        %v877 = vlaneseq
        %v878 = vshrl.u32 %v877, 7
        %v879 = vsub.s32 %v876, %v878
        %v880 = vrot.slane %v872, %v879
        %v882 = vunpack.c.l.s4 1934713408
        %v883 = vunpack.c.0.s8 %v882
        %v884 = vlaneseq
        %v885 = vshrl.u32 %v884, 7
        %v886 = vsub.s32 %v883, %v885
        %v887 = vrot.slane %v873, %v886
        %v888 = vcombine.low %v856, %v871
        %v889 = vcombine.high %v856, %v871
        %v891 = vunpack.c.l.s4 1934713408
        %v892 = vunpack.c.0.s8 %v891
        %v893 = vlaneseq
        %v894 = vshrl.u32 %v893, 7
        %v895 = vsub.s32 %v892, %v894
        %v896 = vrot.slane %v888, %v895
        %v898 = vunpack.c.l.s4 1934713408
        %v899 = vunpack.c.0.s8 %v898
        %v900 = vlaneseq
        %v901 = vshrl.u32 %v900, 7
        %v902 = vsub.s32 %v899, %v901
        %v903 = vrot.slane %v889, %v902
        %v904 = vcombine.high %v880, 0
        %v905 = vcombine.high %v887, 0
        %v906 = vcombine.high %v896, 0
        %v907 = vcombine.high %v903, 0
        %v908 = vcombine.high %v826, %v840
        %v910 = vunpack.c.l.s4 1983009808
        %v911 = vunpack.c.0.s8 %v910
        %v912 = vlaneseq
        %v913 = vshrl.u32 %v912, 7
        %v914 = vsub.s32 %v911, %v913
        %v915 = vrot.slane %v826, %v914
        %v917 = vunpack.c.l.s4 1983009808
        %v918 = vunpack.c.0.s8 %v917
        %v919 = vlaneseq
        %v920 = vshrl.u32 %v919, 7
        %v921 = vsub.s32 %v918, %v920
        %v922 = vrot.slane %v908, %v921
        %v923 = vcombine.high %v834, %v840
        %v925 = vunpack.c.l.s4 1983009808
        %v926 = vunpack.c.0.s8 %v925
        %v927 = vlaneseq
        %v928 = vshrl.u32 %v927, 7
        %v929 = vsub.s32 %v926, %v928
        %v930 = vrot.slane %v834, %v929
        %v932 = vunpack.c.l.s4 1983009808
        %v933 = vunpack.c.0.s8 %v932
        %v934 = vlaneseq
        %v935 = vshrl.u32 %v934, 7
        %v936 = vsub.s32 %v933, %v935
        %v937 = vrot.slane %v923, %v936
        %v938 = vcombine.low %v915, %v930
        %v939 = vcombine.high %v915, %v930
        %v941 = vunpack.c.l.s4 1934713408
        %v942 = vunpack.c.0.s8 %v941
        %v943 = vlaneseq
        %v944 = vshrl.u32 %v943, 7
        %v945 = vsub.s32 %v942, %v944
        %v946 = vrot.slane %v938, %v945
        %v948 = vunpack.c.l.s4 1934713408
        %v949 = vunpack.c.0.s8 %v948
        %v950 = vlaneseq
        %v951 = vshrl.u32 %v950, 7
        %v952 = vsub.s32 %v949, %v951
        %v953 = vrot.slane %v939, %v952
        %v954 = vcombine.low %v922, %v937
        %v955 = vcombine.high %v922, %v937
        %v957 = vunpack.c.l.s4 1934713408
        %v958 = vunpack.c.0.s8 %v957
        %v959 = vlaneseq
        %v960 = vshrl.u32 %v959, 7
        %v961 = vsub.s32 %v958, %v960
        %v962 = vrot.slane %v954, %v961
        %v964 = vunpack.c.l.s4 1934713408
        %v965 = vunpack.c.0.s8 %v964
        %v966 = vlaneseq
        %v967 = vshrl.u32 %v966, 7
        %v968 = vsub.s32 %v965, %v967
        %v969 = vrot.slane %v955, %v968
        %v970 = vcombine.high %v946, 0
        %v971 = vcombine.high %v953, 0
        %v972 = vcombine.high %v962, 0
        %v973 = vcombine.high %v969, 0
        %v974 = vcombine.low %v880, %v887
        %v976 = vunpack.c.l.s4 1983009808
        %v977 = vunpack.c.0.s8 %v976
        %v978 = vlaneseq
        %v979 = vshrl.u32 %v978, 7
        %v980 = vsub.s32 %v977, %v979
        %v981 = vrot.slane %v974, %v980
        %v982 = vcombine.low %v904, %v905
        %v984 = vunpack.c.l.s4 1983009808
        %v985 = vunpack.c.0.s8 %v984
        %v986 = vlaneseq
        %v987 = vshrl.u32 %v986, 7
        %v988 = vsub.s32 %v985, %v987
        %v989 = vrot.slane %v982, %v988
        %v990 = vcombine.low %v981, %v989
        %v992 = vunpack.c.l.s4 1934713408
        %v993 = vunpack.c.0.s8 %v992
        %v994 = vlaneseq
        %v995 = vshrl.u32 %v994, 7
        %v996 = vsub.s32 %v993, %v995
        %v997 = vrot.slane %v990, %v996
        %v998 = vcombine.high %v997, 0
        %v999 = vcombine.low %v946, %v953
        %v1001 = vunpack.c.l.s4 1983009808
        %v1002 = vunpack.c.0.s8 %v1001
        %v1003 = vlaneseq
        %v1004 = vshrl.u32 %v1003, 7
        %v1005 = vsub.s32 %v1002, %v1004
        %v1006 = vrot.slane %v999, %v1005
        %v1007 = vcombine.low %v970, %v971
        %v1009 = vunpack.c.l.s4 1983009808
        %v1010 = vunpack.c.0.s8 %v1009
        %v1011 = vlaneseq
        %v1012 = vshrl.u32 %v1011, 7
        %v1013 = vsub.s32 %v1010, %v1012
        %v1014 = vrot.slane %v1007, %v1013
        %v1015 = vcombine.low %v1006, %v1014
        %v1017 = vunpack.c.l.s4 1934713408
        %v1018 = vunpack.c.0.s8 %v1017
        %v1019 = vlaneseq
        %v1020 = vshrl.u32 %v1019, 7
        %v1021 = vsub.s32 %v1018, %v1020
        %v1022 = vrot.slane %v1015, %v1021
        %v1023 = vcombine.high %v1022, 0
        %v1024 = vcombine.low %v896, %v903
        %v1026 = vunpack.c.l.s4 1983009808
        %v1027 = vunpack.c.0.s8 %v1026
        %v1028 = vlaneseq
        %v1029 = vshrl.u32 %v1028, 7
        %v1030 = vsub.s32 %v1027, %v1029
        %v1031 = vrot.slane %v1024, %v1030
        %v1032 = vcombine.low %v906, %v907
        %v1034 = vunpack.c.l.s4 1983009808
        %v1035 = vunpack.c.0.s8 %v1034
        %v1036 = vlaneseq
        %v1037 = vshrl.u32 %v1036, 7
        %v1038 = vsub.s32 %v1035, %v1037
        %v1039 = vrot.slane %v1032, %v1038
        %v1040 = vcombine.low %v1031, %v1039
        %v1042 = vunpack.c.l.s4 1934713408
        %v1043 = vunpack.c.0.s8 %v1042
        %v1044 = vlaneseq
        %v1045 = vshrl.u32 %v1044, 7
        %v1046 = vsub.s32 %v1043, %v1045
        %v1047 = vrot.slane %v1040, %v1046
        %v1048 = vcombine.high %v1047, 0
        %v1049 = vcombine.low %v962, %v969
        %v1051 = vunpack.c.l.s4 1983009808
        %v1052 = vunpack.c.0.s8 %v1051
        %v1053 = vlaneseq
        %v1054 = vshrl.u32 %v1053, 7
        %v1055 = vsub.s32 %v1052, %v1054
        %v1056 = vrot.slane %v1049, %v1055
        %v1057 = vcombine.low %v972, %v973
        %v1059 = vunpack.c.l.s4 1983009808
        %v1060 = vunpack.c.0.s8 %v1059
        %v1061 = vlaneseq
        %v1062 = vshrl.u32 %v1061, 7
        %v1063 = vsub.s32 %v1060, %v1062
        %v1064 = vrot.slane %v1057, %v1063
        %v1065 = vcombine.low %v1056, %v1064
        %v1067 = vunpack.c.l.s4 1934713408
        %v1068 = vunpack.c.0.s8 %v1067
        %v1069 = vlaneseq
        %v1070 = vshrl.u32 %v1069, 7
        %v1071 = vsub.s32 %v1068, %v1070
        %v1072 = vrot.slane %v1065, %v1071
        %v1073 = vcombine.high %v1072, 0
        %v1076 = vpack.i.b16 %v1022, %v997
        %v1077 = vshrl.u32 %v997, 16
        %v1078 = vshrl.u32 %v1022, 16
        %v1079 = vpack.i.b16 %v1078, %v1077
        %v1082 = vpack.i.b16 %v1023, %v998
        %v1083 = vshrl.u32 %v998, 16
        %v1084 = vshrl.u32 %v1023, 16
        %v1085 = vpack.i.b16 %v1084, %v1083
        %v1088 = vpack.i.b16 %v1072, %v1047
        %v1089 = vshrl.u32 %v1047, 16
        %v1090 = vshrl.u32 %v1072, 16
        %v1091 = vpack.i.b16 %v1090, %v1089
        %v1094 = vpack.i.b16 %v1073, %v1048
        %v1095 = vshrl.u32 %v1048, 16
        %v1096 = vshrl.u32 %v1073, 16
        %v1097 = vpack.i.b16 %v1096, %v1095
        %1099 = vrot.lane.b32.xlu0 %v812, 120
        %v1100 = vpop.permute.xlu0 %1099
        %1101 = vrot.lane.b32.xlu0 %v812, 112
        %v1102 = vpop.permute.xlu0 %1101
        %1103 = vrot.lane.b32.xlu0 %v812, 104
        %v1104 = vpop.permute.xlu0 %1103
        %1105 = vrot.lane.b32.xlu0 %v812, 96
        %v1106 = vpop.permute.xlu0 %1105
        %1107 = vrot.lane.b32.xlu0 %v1100, 96
        %v1108 = vpop.permute.xlu0 %1107
        %1109 = vrot.lane.b32.xlu0 %v1102, 96
        %v1110 = vpop.permute.xlu0 %1109
        %1111 = vrot.lane.b32.xlu0 %v1104, 96
        %v1112 = vpop.permute.xlu0 %1111
        %v1115 = vpack.i.b16 %v1108, %v1106
        %v1117 = vshrl.u32 %v1106, 16
        %v1118 = vshrl.u32 %v1108, 16
        %v1119 = vpack.i.b16 %v1118, %v1117
        %v1123 = vpack.i.b16 %v1112, %v1110
        %v1125 = vshrl.u32 %v1110, 16
        %v1126 = vshrl.u32 %v1112, 16
        %v1127 = vpack.i.b16 %v1126, %v1125
        %v1129 = vcombine.high %v1115, %v837
        %v1131 = vunpack.c.l.s4 1983009808
        %v1132 = vunpack.c.0.s8 %v1131
        %v1133 = vlaneseq
        %v1134 = vshrl.u32 %v1133, 7
        %v1135 = vsub.s32 %v1132, %v1134
        %v1136 = vrot.slane %v1115, %v1135
        %v1138 = vunpack.c.l.s4 1983009808
        %v1139 = vunpack.c.0.s8 %v1138
        %v1140 = vlaneseq
        %v1141 = vshrl.u32 %v1140, 7
        %v1142 = vsub.s32 %v1139, %v1141
        %v1143 = vrot.slane %v1129, %v1142
        %v1144 = vcombine.high %v1123, %v837
        %v1146 = vunpack.c.l.s4 1983009808
        %v1147 = vunpack.c.0.s8 %v1146
        %v1148 = vlaneseq
        %v1149 = vshrl.u32 %v1148, 7
        %v1150 = vsub.s32 %v1147, %v1149
        %v1151 = vrot.slane %v1123, %v1150
        %v1153 = vunpack.c.l.s4 1983009808
        %v1154 = vunpack.c.0.s8 %v1153
        %v1155 = vlaneseq
        %v1156 = vshrl.u32 %v1155, 7
        %v1157 = vsub.s32 %v1154, %v1156
        %v1158 = vrot.slane %v1144, %v1157
        %v1159 = vcombine.low %v1136, %v1151
        %v1160 = vcombine.high %v1136, %v1151
        %v1162 = vunpack.c.l.s4 1934713408
        %v1163 = vunpack.c.0.s8 %v1162
        %v1164 = vlaneseq
        %v1165 = vshrl.u32 %v1164, 7
        %v1166 = vsub.s32 %v1163, %v1165
        %v1167 = vrot.slane %v1159, %v1166
        %v1169 = vunpack.c.l.s4 1934713408
        %v1170 = vunpack.c.0.s8 %v1169
        %v1171 = vlaneseq
        %v1172 = vshrl.u32 %v1171, 7
        %v1173 = vsub.s32 %v1170, %v1172
        %v1174 = vrot.slane %v1160, %v1173
        %v1175 = vcombine.low %v1143, %v1158
        %v1176 = vcombine.high %v1143, %v1158
        %v1178 = vunpack.c.l.s4 1934713408
        %v1179 = vunpack.c.0.s8 %v1178
        %v1180 = vlaneseq
        %v1181 = vshrl.u32 %v1180, 7
        %v1182 = vsub.s32 %v1179, %v1181
        %v1183 = vrot.slane %v1175, %v1182
        %v1185 = vunpack.c.l.s4 1934713408
        %v1186 = vunpack.c.0.s8 %v1185
        %v1187 = vlaneseq
        %v1188 = vshrl.u32 %v1187, 7
        %v1189 = vsub.s32 %v1186, %v1188
        %v1190 = vrot.slane %v1176, %v1189
        %v1191 = vcombine.high %v1167, 0
        %v1192 = vcombine.high %v1174, 0
        %v1193 = vcombine.high %v1183, 0
        %v1194 = vcombine.high %v1190, 0
        %v1195 = vcombine.high %v1119, %v840
        %v1197 = vunpack.c.l.s4 1983009808
        %v1198 = vunpack.c.0.s8 %v1197
        %v1199 = vlaneseq
        %v1200 = vshrl.u32 %v1199, 7
        %v1201 = vsub.s32 %v1198, %v1200
        %v1202 = vrot.slane %v1119, %v1201
        %v1204 = vunpack.c.l.s4 1983009808
        %v1205 = vunpack.c.0.s8 %v1204
        %v1206 = vlaneseq
        %v1207 = vshrl.u32 %v1206, 7
        %v1208 = vsub.s32 %v1205, %v1207
        %v1209 = vrot.slane %v1195, %v1208
        %v1210 = vcombine.high %v1127, %v840
        %v1212 = vunpack.c.l.s4 1983009808
        %v1213 = vunpack.c.0.s8 %v1212
        %v1214 = vlaneseq
        %v1215 = vshrl.u32 %v1214, 7
        %v1216 = vsub.s32 %v1213, %v1215
        %v1217 = vrot.slane %v1127, %v1216
        %v1219 = vunpack.c.l.s4 1983009808
        %v1220 = vunpack.c.0.s8 %v1219
        %v1221 = vlaneseq
        %v1222 = vshrl.u32 %v1221, 7
        %v1223 = vsub.s32 %v1220, %v1222
        %v1224 = vrot.slane %v1210, %v1223
        %v1225 = vcombine.low %v1202, %v1217
        %v1226 = vcombine.high %v1202, %v1217
        %v1228 = vunpack.c.l.s4 1934713408
        %v1229 = vunpack.c.0.s8 %v1228
        %v1230 = vlaneseq
        %v1231 = vshrl.u32 %v1230, 7
        %v1232 = vsub.s32 %v1229, %v1231
        %v1233 = vrot.slane %v1225, %v1232
        %v1235 = vunpack.c.l.s4 1934713408
        %v1236 = vunpack.c.0.s8 %v1235
        %v1237 = vlaneseq
        %v1238 = vshrl.u32 %v1237, 7
        %v1239 = vsub.s32 %v1236, %v1238
        %v1240 = vrot.slane %v1226, %v1239
        %v1241 = vcombine.low %v1209, %v1224
        %v1242 = vcombine.high %v1209, %v1224
        %v1244 = vunpack.c.l.s4 1934713408
        %v1245 = vunpack.c.0.s8 %v1244
        %v1246 = vlaneseq
        %v1247 = vshrl.u32 %v1246, 7
        %v1248 = vsub.s32 %v1245, %v1247
        %v1249 = vrot.slane %v1241, %v1248
        %v1251 = vunpack.c.l.s4 1934713408
        %v1252 = vunpack.c.0.s8 %v1251
        %v1253 = vlaneseq
        %v1254 = vshrl.u32 %v1253, 7
        %v1255 = vsub.s32 %v1252, %v1254
        %v1256 = vrot.slane %v1242, %v1255
        %v1257 = vcombine.high %v1233, 0
        %v1258 = vcombine.high %v1240, 0
        %v1259 = vcombine.high %v1249, 0
        %v1260 = vcombine.high %v1256, 0
        %v1261 = vcombine.low %v1167, %v1174
        %v1263 = vunpack.c.l.s4 1983009808
        %v1264 = vunpack.c.0.s8 %v1263
        %v1265 = vlaneseq
        %v1266 = vshrl.u32 %v1265, 7
        %v1267 = vsub.s32 %v1264, %v1266
        %v1268 = vrot.slane %v1261, %v1267
        %v1269 = vcombine.low %v1191, %v1192
        %v1271 = vunpack.c.l.s4 1983009808
        %v1272 = vunpack.c.0.s8 %v1271
        %v1273 = vlaneseq
        %v1274 = vshrl.u32 %v1273, 7
        %v1275 = vsub.s32 %v1272, %v1274
        %v1276 = vrot.slane %v1269, %v1275
        %v1277 = vcombine.low %v1268, %v1276
        %v1279 = vunpack.c.l.s4 1934713408
        %v1280 = vunpack.c.0.s8 %v1279
        %v1281 = vlaneseq
        %v1282 = vshrl.u32 %v1281, 7
        %v1283 = vsub.s32 %v1280, %v1282
        %v1284 = vrot.slane %v1277, %v1283
        %v1285 = vcombine.high %v1284, 0
        %v1286 = vcombine.low %v1233, %v1240
        %v1288 = vunpack.c.l.s4 1983009808
        %v1289 = vunpack.c.0.s8 %v1288
        %v1290 = vlaneseq
        %v1291 = vshrl.u32 %v1290, 7
        %v1292 = vsub.s32 %v1289, %v1291
        %v1293 = vrot.slane %v1286, %v1292
        %v1294 = vcombine.low %v1257, %v1258
        %v1296 = vunpack.c.l.s4 1983009808
        %v1297 = vunpack.c.0.s8 %v1296
        %v1298 = vlaneseq
        %v1299 = vshrl.u32 %v1298, 7
        %v1300 = vsub.s32 %v1297, %v1299
        %v1301 = vrot.slane %v1294, %v1300
        %v1302 = vcombine.low %v1293, %v1301
        %v1304 = vunpack.c.l.s4 1934713408
        %v1305 = vunpack.c.0.s8 %v1304
        %v1306 = vlaneseq
        %v1307 = vshrl.u32 %v1306, 7
        %v1308 = vsub.s32 %v1305, %v1307
        %v1309 = vrot.slane %v1302, %v1308
        %v1310 = vcombine.high %v1309, 0
        %v1311 = vcombine.low %v1183, %v1190
        %v1313 = vunpack.c.l.s4 1983009808
        %v1314 = vunpack.c.0.s8 %v1313
        %v1315 = vlaneseq
        %v1316 = vshrl.u32 %v1315, 7
        %v1317 = vsub.s32 %v1314, %v1316
        %v1318 = vrot.slane %v1311, %v1317
        %v1319 = vcombine.low %v1193, %v1194
        %v1321 = vunpack.c.l.s4 1983009808
        %v1322 = vunpack.c.0.s8 %v1321
        %v1323 = vlaneseq
        %v1324 = vshrl.u32 %v1323, 7
        %v1325 = vsub.s32 %v1322, %v1324
        %v1326 = vrot.slane %v1319, %v1325
        %v1327 = vcombine.low %v1318, %v1326
        %v1329 = vunpack.c.l.s4 1934713408
        %v1330 = vunpack.c.0.s8 %v1329
        %v1331 = vlaneseq
        %v1332 = vshrl.u32 %v1331, 7
        %v1333 = vsub.s32 %v1330, %v1332
        %v1334 = vrot.slane %v1327, %v1333
        %v1335 = vcombine.high %v1334, 0
        %v1336 = vcombine.low %v1249, %v1256
        %v1338 = vunpack.c.l.s4 1983009808
        %v1339 = vunpack.c.0.s8 %v1338
        %v1340 = vlaneseq
        %v1341 = vshrl.u32 %v1340, 7
        %v1342 = vsub.s32 %v1339, %v1341
        %v1343 = vrot.slane %v1336, %v1342
        %v1344 = vcombine.low %v1259, %v1260
        %v1346 = vunpack.c.l.s4 1983009808
        %v1347 = vunpack.c.0.s8 %v1346
        %v1348 = vlaneseq
        %v1349 = vshrl.u32 %v1348, 7
        %v1350 = vsub.s32 %v1347, %v1349
        %v1351 = vrot.slane %v1344, %v1350
        %v1352 = vcombine.low %v1343, %v1351
        %v1354 = vunpack.c.l.s4 1934713408
        %v1355 = vunpack.c.0.s8 %v1354
        %v1356 = vlaneseq
        %v1357 = vshrl.u32 %v1356, 7
        %v1358 = vsub.s32 %v1355, %v1357
        %v1359 = vrot.slane %v1352, %v1358
        %v1360 = vcombine.high %v1359, 0
        %v1363 = vpack.i.b16 %v1309, %v1284
        %v1364 = vshrl.u32 %v1284, 16
        %v1365 = vshrl.u32 %v1309, 16
        %v1366 = vpack.i.b16 %v1365, %v1364
        %v1369 = vpack.i.b16 %v1310, %v1285
        %v1370 = vshrl.u32 %v1285, 16
        %v1371 = vshrl.u32 %v1310, 16
        %v1372 = vpack.i.b16 %v1371, %v1370
        %v1375 = vpack.i.b16 %v1359, %v1334
        %v1376 = vshrl.u32 %v1334, 16
        %v1377 = vshrl.u32 %v1359, 16
        %v1378 = vpack.i.b16 %v1377, %v1376
        %v1381 = vpack.i.b16 %v1360, %v1335
        %v1382 = vshrl.u32 %v1335, 16
        %v1383 = vshrl.u32 %v1360, 16
        %v1384 = vpack.i.b16 %v1383, %v1382
        %1385 = vrot.lane.b32.xlu0 %v812, 64
        %v1386 = vpop.permute.xlu0 %1385
        %1387 = vrot.lane.b32.xlu0 %v1100, 64
        %v1388 = vpop.permute.xlu0 %1387
        %1389 = vrot.lane.b32.xlu0 %v1102, 64
        %v1390 = vpop.permute.xlu0 %1389
        %1391 = vrot.lane.b32.xlu0 %v1104, 64
        %v1392 = vpop.permute.xlu0 %1391
        %v1395 = vpack.i.b16 %v1388, %v1386
        %v1397 = vshrl.u32 %v1386, 16
        %v1398 = vshrl.u32 %v1388, 16
        %v1399 = vpack.i.b16 %v1398, %v1397
        %v1403 = vpack.i.b16 %v1392, %v1390
        %v1405 = vshrl.u32 %v1390, 16
        %v1406 = vshrl.u32 %v1392, 16
        %v1407 = vpack.i.b16 %v1406, %v1405
        %v1409 = vcombine.high %v1395, %v837
        %v1411 = vunpack.c.l.s4 1983009808
        %v1412 = vunpack.c.0.s8 %v1411
        %v1413 = vlaneseq
        %v1414 = vshrl.u32 %v1413, 7
        %v1415 = vsub.s32 %v1412, %v1414
        %v1416 = vrot.slane %v1395, %v1415
        %v1418 = vunpack.c.l.s4 1983009808
        %v1419 = vunpack.c.0.s8 %v1418
        %v1420 = vlaneseq
        %v1421 = vshrl.u32 %v1420, 7
        %v1422 = vsub.s32 %v1419, %v1421
        %v1423 = vrot.slane %v1409, %v1422
        %v1424 = vcombine.high %v1403, %v837
        %v1426 = vunpack.c.l.s4 1983009808
        %v1427 = vunpack.c.0.s8 %v1426
        %v1428 = vlaneseq
        %v1429 = vshrl.u32 %v1428, 7
        %v1430 = vsub.s32 %v1427, %v1429
        %v1431 = vrot.slane %v1403, %v1430
        %v1433 = vunpack.c.l.s4 1983009808
        %v1434 = vunpack.c.0.s8 %v1433
        %v1435 = vlaneseq
        %v1436 = vshrl.u32 %v1435, 7
        %v1437 = vsub.s32 %v1434, %v1436
        %v1438 = vrot.slane %v1424, %v1437
        %v1439 = vcombine.low %v1416, %v1431
        %v1440 = vcombine.high %v1416, %v1431
        %v1442 = vunpack.c.l.s4 1934713408
        %v1443 = vunpack.c.0.s8 %v1442
        %v1444 = vlaneseq
        %v1445 = vshrl.u32 %v1444, 7
        %v1446 = vsub.s32 %v1443, %v1445
        %v1447 = vrot.slane %v1439, %v1446
        %v1449 = vunpack.c.l.s4 1934713408
        %v1450 = vunpack.c.0.s8 %v1449
        %v1451 = vlaneseq
        %v1452 = vshrl.u32 %v1451, 7
        %v1453 = vsub.s32 %v1450, %v1452
        %v1454 = vrot.slane %v1440, %v1453
        %v1455 = vcombine.low %v1423, %v1438
        %v1456 = vcombine.high %v1423, %v1438
        %v1458 = vunpack.c.l.s4 1934713408
        %v1459 = vunpack.c.0.s8 %v1458
        %v1460 = vlaneseq
        %v1461 = vshrl.u32 %v1460, 7
        %v1462 = vsub.s32 %v1459, %v1461
        %v1463 = vrot.slane %v1455, %v1462
        %v1465 = vunpack.c.l.s4 1934713408
        %v1466 = vunpack.c.0.s8 %v1465
        %v1467 = vlaneseq
        %v1468 = vshrl.u32 %v1467, 7
        %v1469 = vsub.s32 %v1466, %v1468
        %v1470 = vrot.slane %v1456, %v1469
        %v1471 = vcombine.high %v1447, 0
        %v1472 = vcombine.high %v1454, 0
        %v1473 = vcombine.high %v1463, 0
        %v1474 = vcombine.high %v1470, 0
        %v1475 = vcombine.high %v1399, %v840
        %v1477 = vunpack.c.l.s4 1983009808
        %v1478 = vunpack.c.0.s8 %v1477
        %v1479 = vlaneseq
        %v1480 = vshrl.u32 %v1479, 7
        %v1481 = vsub.s32 %v1478, %v1480
        %v1482 = vrot.slane %v1399, %v1481
        %v1484 = vunpack.c.l.s4 1983009808
        %v1485 = vunpack.c.0.s8 %v1484
        %v1486 = vlaneseq
        %v1487 = vshrl.u32 %v1486, 7
        %v1488 = vsub.s32 %v1485, %v1487
        %v1489 = vrot.slane %v1475, %v1488
        %v1490 = vcombine.high %v1407, %v840
        %v1492 = vunpack.c.l.s4 1983009808
        %v1493 = vunpack.c.0.s8 %v1492
        %v1494 = vlaneseq
        %v1495 = vshrl.u32 %v1494, 7
        %v1496 = vsub.s32 %v1493, %v1495
        %v1497 = vrot.slane %v1407, %v1496
        %v1499 = vunpack.c.l.s4 1983009808
        %v1500 = vunpack.c.0.s8 %v1499
        %v1501 = vlaneseq
        %v1502 = vshrl.u32 %v1501, 7
        %v1503 = vsub.s32 %v1500, %v1502
        %v1504 = vrot.slane %v1490, %v1503
        %v1505 = vcombine.low %v1482, %v1497
        %v1506 = vcombine.high %v1482, %v1497
        %v1508 = vunpack.c.l.s4 1934713408
        %v1509 = vunpack.c.0.s8 %v1508
        %v1510 = vlaneseq
        %v1511 = vshrl.u32 %v1510, 7
        %v1512 = vsub.s32 %v1509, %v1511
        %v1513 = vrot.slane %v1505, %v1512
        %v1515 = vunpack.c.l.s4 1934713408
        %v1516 = vunpack.c.0.s8 %v1515
        %v1517 = vlaneseq
        %v1518 = vshrl.u32 %v1517, 7
        %v1519 = vsub.s32 %v1516, %v1518
        %v1520 = vrot.slane %v1506, %v1519
        %v1521 = vcombine.low %v1489, %v1504
        %v1522 = vcombine.high %v1489, %v1504
        %v1524 = vunpack.c.l.s4 1934713408
        %v1525 = vunpack.c.0.s8 %v1524
        %v1526 = vlaneseq
        %v1527 = vshrl.u32 %v1526, 7
        %v1528 = vsub.s32 %v1525, %v1527
        %v1529 = vrot.slane %v1521, %v1528
        %v1531 = vunpack.c.l.s4 1934713408
        %v1532 = vunpack.c.0.s8 %v1531
        %v1533 = vlaneseq
        %v1534 = vshrl.u32 %v1533, 7
        %v1535 = vsub.s32 %v1532, %v1534
        %v1536 = vrot.slane %v1522, %v1535
        %v1537 = vcombine.high %v1513, 0
        %v1538 = vcombine.high %v1520, 0
        %v1539 = vcombine.high %v1529, 0
        %v1540 = vcombine.high %v1536, 0
        %v1541 = vcombine.low %v1447, %v1454
        %v1543 = vunpack.c.l.s4 1983009808
        %v1544 = vunpack.c.0.s8 %v1543
        %v1545 = vlaneseq
        %v1546 = vshrl.u32 %v1545, 7
        %v1547 = vsub.s32 %v1544, %v1546
        %v1548 = vrot.slane %v1541, %v1547
        %v1549 = vcombine.low %v1471, %v1472
        %v1551 = vunpack.c.l.s4 1983009808
        %v1552 = vunpack.c.0.s8 %v1551
        %v1553 = vlaneseq
        %v1554 = vshrl.u32 %v1553, 7
        %v1555 = vsub.s32 %v1552, %v1554
        %v1556 = vrot.slane %v1549, %v1555
        %v1557 = vcombine.low %v1548, %v1556
        %v1559 = vunpack.c.l.s4 1934713408
        %v1560 = vunpack.c.0.s8 %v1559
        %v1561 = vlaneseq
        %v1562 = vshrl.u32 %v1561, 7
        %v1563 = vsub.s32 %v1560, %v1562
        %v1564 = vrot.slane %v1557, %v1563
        %v1565 = vcombine.high %v1564, 0
        %v1566 = vcombine.low %v1513, %v1520
        %v1568 = vunpack.c.l.s4 1983009808
        %v1569 = vunpack.c.0.s8 %v1568
        %v1570 = vlaneseq
        %v1571 = vshrl.u32 %v1570, 7
        %v1572 = vsub.s32 %v1569, %v1571
        %v1573 = vrot.slane %v1566, %v1572
        %v1574 = vcombine.low %v1537, %v1538
        %v1576 = vunpack.c.l.s4 1983009808
        %v1577 = vunpack.c.0.s8 %v1576
        %v1578 = vlaneseq
        %v1579 = vshrl.u32 %v1578, 7
        %v1580 = vsub.s32 %v1577, %v1579
        %v1581 = vrot.slane %v1574, %v1580
        %v1582 = vcombine.low %v1573, %v1581
        %v1584 = vunpack.c.l.s4 1934713408
        %v1585 = vunpack.c.0.s8 %v1584
        %v1586 = vlaneseq
        %v1587 = vshrl.u32 %v1586, 7
        %v1588 = vsub.s32 %v1585, %v1587
        %v1589 = vrot.slane %v1582, %v1588
        %v1590 = vcombine.high %v1589, 0
        %v1591 = vcombine.low %v1463, %v1470
        %v1593 = vunpack.c.l.s4 1983009808
        %v1594 = vunpack.c.0.s8 %v1593
        %v1595 = vlaneseq
        %v1596 = vshrl.u32 %v1595, 7
        %v1597 = vsub.s32 %v1594, %v1596
        %v1598 = vrot.slane %v1591, %v1597
        %v1599 = vcombine.low %v1473, %v1474
        %v1601 = vunpack.c.l.s4 1983009808
        %v1602 = vunpack.c.0.s8 %v1601
        %v1603 = vlaneseq
        %v1604 = vshrl.u32 %v1603, 7
        %v1605 = vsub.s32 %v1602, %v1604
        %v1606 = vrot.slane %v1599, %v1605
        %v1607 = vcombine.low %v1598, %v1606
        %v1609 = vunpack.c.l.s4 1934713408
        %v1610 = vunpack.c.0.s8 %v1609
        %v1611 = vlaneseq
        %v1612 = vshrl.u32 %v1611, 7
        %v1613 = vsub.s32 %v1610, %v1612
        %v1614 = vrot.slane %v1607, %v1613
        %v1615 = vcombine.high %v1614, 0
        %v1616 = vcombine.low %v1529, %v1536
        %v1618 = vunpack.c.l.s4 1983009808
        %v1619 = vunpack.c.0.s8 %v1618
        %v1620 = vlaneseq
        %v1621 = vshrl.u32 %v1620, 7
        %v1622 = vsub.s32 %v1619, %v1621
        %v1623 = vrot.slane %v1616, %v1622
        %v1624 = vcombine.low %v1539, %v1540
        %v1626 = vunpack.c.l.s4 1983009808
        %v1627 = vunpack.c.0.s8 %v1626
        %v1628 = vlaneseq
        %v1629 = vshrl.u32 %v1628, 7
        %v1630 = vsub.s32 %v1627, %v1629
        %v1631 = vrot.slane %v1624, %v1630
        %v1632 = vcombine.low %v1623, %v1631
        %v1634 = vunpack.c.l.s4 1934713408
        %v1635 = vunpack.c.0.s8 %v1634
        %v1636 = vlaneseq
        %v1637 = vshrl.u32 %v1636, 7
        %v1638 = vsub.s32 %v1635, %v1637
        %v1639 = vrot.slane %v1632, %v1638
        %v1640 = vcombine.high %v1639, 0
        %v1643 = vpack.i.b16 %v1589, %v1564
        %v1644 = vshrl.u32 %v1564, 16
        %v1645 = vshrl.u32 %v1589, 16
        %v1646 = vpack.i.b16 %v1645, %v1644
        %v1649 = vpack.i.b16 %v1590, %v1565
        %v1650 = vshrl.u32 %v1565, 16
        %v1651 = vshrl.u32 %v1590, 16
        %v1652 = vpack.i.b16 %v1651, %v1650
        %v1655 = vpack.i.b16 %v1639, %v1614
        %v1656 = vshrl.u32 %v1614, 16
        %v1657 = vshrl.u32 %v1639, 16
        %v1658 = vpack.i.b16 %v1657, %v1656
        %v1661 = vpack.i.b16 %v1640, %v1615
        %v1662 = vshrl.u32 %v1615, 16
        %v1663 = vshrl.u32 %v1640, 16
        %v1664 = vpack.i.b16 %v1663, %v1662
        %vm1665 = vcmask 64512
        %v1667 = vsel %vm1665, %v1076, 0
        %v1670 = vsel %vm1665, %v1363, 0
        %1672 = vmatprep.subr.bf16.mxu0 0
        %1673 = vmatpush1.bf16.xpose.msra.mxu0 %v1670
        %1674 = vmatprep.subr.bf16.mxu0 0
        %1675 = vmatpush1.bf16.xpose.msra.mxu0 0
        %1676 = vmatprep.subr.bf16.mxu0 0
        %1677 = vmatpush1.bf16.xpose.msra.mxu0 0
        %1678 = vmatprep.subr.bf16.mxu0 0
        %1679 = vmatpush1.bf16.xpose.msra.mxu0 0
        %1680 = vmatprep.subr.bf16.mxu0 0
        %1681 = vmatpush1.bf16.xpose.msra.mxu0 0
        %1682 = vmatprep.subr.bf16.mxu0 0
        %1683 = vmatpush1.bf16.xpose.msra.mxu0 0
        %1684 = vmatprep.subr.bf16.mxu0 0
        %1685 = vmatpush1.bf16.xpose.msra.mxu0 0
        %1686 = vmatprep.subr.bf16.mxu0 0
        %1687 = vmatpush1.bf16.xpose.msra.mxu0 0
        %1688 = vmatprep.subr.bf16.mxu0 0
        %1689 = vmatpush1.bf16.xpose.msra.mxu0 0
        %1690 = vmatprep.subr.bf16.mxu0 0
        %1691 = vmatpush1.bf16.xpose.msra.mxu0 0
        %1692 = vmatprep.subr.bf16.mxu0 0
        %1693 = vmatpush1.bf16.xpose.msra.mxu0 0
        %1694 = vmatprep.subr.bf16.mxu0 0
        %1695 = vmatpush1.bf16.xpose.msra.mxu0 0
        %1696 = vmatprep.subr.bf16.mxu0 0
        %1697 = vmatpush1.bf16.xpose.msra.mxu0 0
        %1698 = vmatprep.subr.bf16.mxu0 0
        %1699 = vmatpush1.bf16.xpose.msra.mxu0 0
        %1700 = vmatprep.subr.bf16.mxu0 0
        %1701 = vmatpush1.bf16.xpose.msra.mxu0 0
        %1702 = vmatprep.subr.bf16.mxu0 0
        %1703 = vmatpush1.bf16.xpose.msra.mxu0 0
        %1704 = vmatprep.mubr.bf16.mxu0 0
        %1705 = vmatmul.mubr.bf16.gmra.mrb[0].mxu0 %v1667
        %v1706 = vpop.f32.mrb[0].mxu0
        %v1707 = vadd.f32 0.0, %v1706
        %v1708 = vpop.f32.mrb[0].mxu0
        %v1709 = vpop.f32.mrb[0].mxu0
        %v1710 = vpop.f32.mrb[0].mxu0
        %1711 = vdwg.mxu0
        %v1713 = vsel %vm1665, %v1079, 0
        %v1716 = vsel %vm1665, %v1366, 0
        %1718 = vmatprep.subr.bf16.mxu0 0
        %1719 = vmatpush1.bf16.xpose.msra.mxu0 %v1716
        %1720 = vmatprep.subr.bf16.mxu0 0
        %1721 = vmatpush1.bf16.xpose.msra.mxu0 0
        %1722 = vmatprep.subr.bf16.mxu0 0
        %1723 = vmatpush1.bf16.xpose.msra.mxu0 0
        %1724 = vmatprep.subr.bf16.mxu0 0
        %1725 = vmatpush1.bf16.xpose.msra.mxu0 0
        %1726 = vmatprep.subr.bf16.mxu0 0
        %1727 = vmatpush1.bf16.xpose.msra.mxu0 0
        %1728 = vmatprep.subr.bf16.mxu0 0
        %1729 = vmatpush1.bf16.xpose.msra.mxu0 0
        %1730 = vmatprep.subr.bf16.mxu0 0
        %1731 = vmatpush1.bf16.xpose.msra.mxu0 0
        %1732 = vmatprep.subr.bf16.mxu0 0
        %1733 = vmatpush1.bf16.xpose.msra.mxu0 0
        %1734 = vmatprep.subr.bf16.mxu0 0
        %1735 = vmatpush1.bf16.xpose.msra.mxu0 0
        %1736 = vmatprep.subr.bf16.mxu0 0
        %1737 = vmatpush1.bf16.xpose.msra.mxu0 0
        %1738 = vmatprep.subr.bf16.mxu0 0
        %1739 = vmatpush1.bf16.xpose.msra.mxu0 0
        %1740 = vmatprep.subr.bf16.mxu0 0
        %1741 = vmatpush1.bf16.xpose.msra.mxu0 0
        %1742 = vmatprep.subr.bf16.mxu0 0
        %1743 = vmatpush1.bf16.xpose.msra.mxu0 0
        %1744 = vmatprep.subr.bf16.mxu0 0
        %1745 = vmatpush1.bf16.xpose.msra.mxu0 0
        %1746 = vmatprep.subr.bf16.mxu0 0
        %1747 = vmatpush1.bf16.xpose.msra.mxu0 0
        %1748 = vmatprep.subr.bf16.mxu0 0
        %1749 = vmatpush1.bf16.xpose.msra.mxu0 0
        %1750 = vmatprep.mubr.bf16.mxu0 0
        %1751 = vmatmul.mubr.bf16.gmra.mrb[0].mxu0 %v1713
        %v1752 = vpop.f32.mrb[0].mxu0
        %v1753 = vadd.f32 0.0, %v1752
        %v1754 = vpop.f32.mrb[0].mxu0
        %v1755 = vpop.f32.mrb[0].mxu0
        %v1756 = vpop.f32.mrb[0].mxu0
        %1757 = vdwg.mxu0
        %v1759 = vsel %vm1665, %v1082, 0
        %v1762 = vsel %vm1665, %v1369, 0
        %1764 = vmatprep.subr.bf16.mxu0 0
        %1765 = vmatpush1.bf16.xpose.msra.mxu0 %v1762
        %1766 = vmatprep.subr.bf16.mxu0 0
        %1767 = vmatpush1.bf16.xpose.msra.mxu0 0
        %1768 = vmatprep.subr.bf16.mxu0 0
        %1769 = vmatpush1.bf16.xpose.msra.mxu0 0
        %1770 = vmatprep.subr.bf16.mxu0 0
        %1771 = vmatpush1.bf16.xpose.msra.mxu0 0
        %1772 = vmatprep.subr.bf16.mxu0 0
        %1773 = vmatpush1.bf16.xpose.msra.mxu0 0
        %1774 = vmatprep.subr.bf16.mxu0 0
        %1775 = vmatpush1.bf16.xpose.msra.mxu0 0
        %1776 = vmatprep.subr.bf16.mxu0 0
        %1777 = vmatpush1.bf16.xpose.msra.mxu0 0
        %1778 = vmatprep.subr.bf16.mxu0 0
        %1779 = vmatpush1.bf16.xpose.msra.mxu0 0
        %1780 = vmatprep.subr.bf16.mxu0 0
        %1781 = vmatpush1.bf16.xpose.msra.mxu0 0
        %1782 = vmatprep.subr.bf16.mxu0 0
        %1783 = vmatpush1.bf16.xpose.msra.mxu0 0
        %1784 = vmatprep.subr.bf16.mxu0 0
        %1785 = vmatpush1.bf16.xpose.msra.mxu0 0
        %1786 = vmatprep.subr.bf16.mxu0 0
        %1787 = vmatpush1.bf16.xpose.msra.mxu0 0
        %1788 = vmatprep.subr.bf16.mxu0 0
        %1789 = vmatpush1.bf16.xpose.msra.mxu0 0
        %1790 = vmatprep.subr.bf16.mxu0 0
        %1791 = vmatpush1.bf16.xpose.msra.mxu0 0
        %1792 = vmatprep.subr.bf16.mxu0 0
        %1793 = vmatpush1.bf16.xpose.msra.mxu0 0
        %1794 = vmatprep.subr.bf16.mxu0 0
        %1795 = vmatpush1.bf16.xpose.msra.mxu0 0
        %1796 = vmatprep.mubr.bf16.mxu0 0
        %1797 = vmatmul.mubr.bf16.gmra.mrb[0].mxu0 %v1759
        %v1798 = vpop.f32.mrb[0].mxu0
        %v1799 = vadd.f32 0.0, %v1798
        %v1800 = vpop.f32.mrb[0].mxu0
        %v1801 = vpop.f32.mrb[0].mxu0
        %v1802 = vpop.f32.mrb[0].mxu0
        %1803 = vdwg.mxu0
        %v1805 = vsel %vm1665, %v1085, 0
        %v1808 = vsel %vm1665, %v1372, 0
        %1810 = vmatprep.subr.bf16.mxu0 0
        %1811 = vmatpush1.bf16.xpose.msra.mxu0 %v1808
        %1812 = vmatprep.subr.bf16.mxu0 0
        %1813 = vmatpush1.bf16.xpose.msra.mxu0 0
        %1814 = vmatprep.subr.bf16.mxu0 0
        %1815 = vmatpush1.bf16.xpose.msra.mxu0 0
        %1816 = vmatprep.subr.bf16.mxu0 0
        %1817 = vmatpush1.bf16.xpose.msra.mxu0 0
        %1818 = vmatprep.subr.bf16.mxu0 0
        %1819 = vmatpush1.bf16.xpose.msra.mxu0 0
        %1820 = vmatprep.subr.bf16.mxu0 0
        %1821 = vmatpush1.bf16.xpose.msra.mxu0 0
        %1822 = vmatprep.subr.bf16.mxu0 0
        %1823 = vmatpush1.bf16.xpose.msra.mxu0 0
        %1824 = vmatprep.subr.bf16.mxu0 0
        %1825 = vmatpush1.bf16.xpose.msra.mxu0 0
        %1826 = vmatprep.subr.bf16.mxu0 0
        %1827 = vmatpush1.bf16.xpose.msra.mxu0 0
        %1828 = vmatprep.subr.bf16.mxu0 0
        %1829 = vmatpush1.bf16.xpose.msra.mxu0 0
        %1830 = vmatprep.subr.bf16.mxu0 0
        %1831 = vmatpush1.bf16.xpose.msra.mxu0 0
        %1832 = vmatprep.subr.bf16.mxu0 0
        %1833 = vmatpush1.bf16.xpose.msra.mxu0 0
        %1834 = vmatprep.subr.bf16.mxu0 0
        %1835 = vmatpush1.bf16.xpose.msra.mxu0 0
        %1836 = vmatprep.subr.bf16.mxu0 0
        %1837 = vmatpush1.bf16.xpose.msra.mxu0 0
        %1838 = vmatprep.subr.bf16.mxu0 0
        %1839 = vmatpush1.bf16.xpose.msra.mxu0 0
        %1840 = vmatprep.subr.bf16.mxu0 0
        %1841 = vmatpush1.bf16.xpose.msra.mxu0 0
        %1842 = vmatprep.mubr.bf16.mxu0 0
        %1843 = vmatmul.mubr.bf16.gmra.mrb[0].mxu0 %v1805
        %v1844 = vpop.f32.mrb[0].mxu0
        %v1845 = vadd.f32 0.0, %v1844
        %v1846 = vpop.f32.mrb[0].mxu0
        %v1847 = vpop.f32.mrb[0].mxu0
        %v1848 = vpop.f32.mrb[0].mxu0
        %1849 = vdwg.mxu0
        %v1851 = vsel %vm1665, %v1088, 0
        %v1854 = vsel %vm1665, %v1375, 0
        %1856 = vmatprep.subr.bf16.mxu0 0
        %1857 = vmatpush1.bf16.xpose.msra.mxu0 %v1854
        %1858 = vmatprep.subr.bf16.mxu0 0
        %1859 = vmatpush1.bf16.xpose.msra.mxu0 0
        %1860 = vmatprep.subr.bf16.mxu0 0
        %1861 = vmatpush1.bf16.xpose.msra.mxu0 0
        %1862 = vmatprep.subr.bf16.mxu0 0
        %1863 = vmatpush1.bf16.xpose.msra.mxu0 0
        %1864 = vmatprep.subr.bf16.mxu0 0
        %1865 = vmatpush1.bf16.xpose.msra.mxu0 0
        %1866 = vmatprep.subr.bf16.mxu0 0
        %1867 = vmatpush1.bf16.xpose.msra.mxu0 0
        %1868 = vmatprep.subr.bf16.mxu0 0
        %1869 = vmatpush1.bf16.xpose.msra.mxu0 0
        %1870 = vmatprep.subr.bf16.mxu0 0
        %1871 = vmatpush1.bf16.xpose.msra.mxu0 0
        %1872 = vmatprep.subr.bf16.mxu0 0
        %1873 = vmatpush1.bf16.xpose.msra.mxu0 0
        %1874 = vmatprep.subr.bf16.mxu0 0
        %1875 = vmatpush1.bf16.xpose.msra.mxu0 0
        %1876 = vmatprep.subr.bf16.mxu0 0
        %1877 = vmatpush1.bf16.xpose.msra.mxu0 0
        %1878 = vmatprep.subr.bf16.mxu0 0
        %1879 = vmatpush1.bf16.xpose.msra.mxu0 0
        %1880 = vmatprep.subr.bf16.mxu0 0
        %1881 = vmatpush1.bf16.xpose.msra.mxu0 0
        %1882 = vmatprep.subr.bf16.mxu0 0
        %1883 = vmatpush1.bf16.xpose.msra.mxu0 0
        %1884 = vmatprep.subr.bf16.mxu0 0
        %1885 = vmatpush1.bf16.xpose.msra.mxu0 0
        %1886 = vmatprep.subr.bf16.mxu0 0
        %1887 = vmatpush1.bf16.xpose.msra.mxu0 0
        %1888 = vmatprep.mubr.bf16.mxu0 0
        %1889 = vmatmul.mubr.bf16.gmra.mrb[0].mxu0 %v1851
        %v1890 = vpop.f32.mrb[0].mxu0
        %v1891 = vadd.f32 0.0, %v1890
        %v1892 = vpop.f32.mrb[0].mxu0
        %v1893 = vpop.f32.mrb[0].mxu0
        %v1894 = vpop.f32.mrb[0].mxu0
        %1895 = vdwg.mxu0
        %v1897 = vsel %vm1665, %v1091, 0
        %v1900 = vsel %vm1665, %v1378, 0
        %1902 = vmatprep.subr.bf16.mxu0 0
        %1903 = vmatpush1.bf16.xpose.msra.mxu0 %v1900
        %1904 = vmatprep.subr.bf16.mxu0 0
        %1905 = vmatpush1.bf16.xpose.msra.mxu0 0
        %1906 = vmatprep.subr.bf16.mxu0 0
        %1907 = vmatpush1.bf16.xpose.msra.mxu0 0
        %1908 = vmatprep.subr.bf16.mxu0 0
        %1909 = vmatpush1.bf16.xpose.msra.mxu0 0
        %1910 = vmatprep.subr.bf16.mxu0 0
        %1911 = vmatpush1.bf16.xpose.msra.mxu0 0
        %1912 = vmatprep.subr.bf16.mxu0 0
        %1913 = vmatpush1.bf16.xpose.msra.mxu0 0
        %1914 = vmatprep.subr.bf16.mxu0 0
        %1915 = vmatpush1.bf16.xpose.msra.mxu0 0
        %1916 = vmatprep.subr.bf16.mxu0 0
        %1917 = vmatpush1.bf16.xpose.msra.mxu0 0
        %1918 = vmatprep.subr.bf16.mxu0 0
        %1919 = vmatpush1.bf16.xpose.msra.mxu0 0
        %1920 = vmatprep.subr.bf16.mxu0 0
        %1921 = vmatpush1.bf16.xpose.msra.mxu0 0
        %1922 = vmatprep.subr.bf16.mxu0 0
        %1923 = vmatpush1.bf16.xpose.msra.mxu0 0
        %1924 = vmatprep.subr.bf16.mxu0 0
        %1925 = vmatpush1.bf16.xpose.msra.mxu0 0
        %1926 = vmatprep.subr.bf16.mxu0 0
        %1927 = vmatpush1.bf16.xpose.msra.mxu0 0
        %1928 = vmatprep.subr.bf16.mxu0 0
        %1929 = vmatpush1.bf16.xpose.msra.mxu0 0
        %1930 = vmatprep.subr.bf16.mxu0 0
        %1931 = vmatpush1.bf16.xpose.msra.mxu0 0
        %1932 = vmatprep.subr.bf16.mxu0 0
        %1933 = vmatpush1.bf16.xpose.msra.mxu0 0
        %1934 = vmatprep.mubr.bf16.mxu0 0
        %1935 = vmatmul.mubr.bf16.gmra.mrb[0].mxu0 %v1897
        %v1936 = vpop.f32.mrb[0].mxu0
        %v1937 = vadd.f32 0.0, %v1936
        %v1938 = vpop.f32.mrb[0].mxu0
        %v1939 = vpop.f32.mrb[0].mxu0
        %v1940 = vpop.f32.mrb[0].mxu0
        %1941 = vdwg.mxu0
        %v1943 = vsel %vm1665, %v1094, 0
        %v1946 = vsel %vm1665, %v1381, 0
        %1948 = vmatprep.subr.bf16.mxu0 0
        %1949 = vmatpush1.bf16.xpose.msra.mxu0 %v1946
        %1950 = vmatprep.subr.bf16.mxu0 0
        %1951 = vmatpush1.bf16.xpose.msra.mxu0 0
        %1952 = vmatprep.subr.bf16.mxu0 0
        %1953 = vmatpush1.bf16.xpose.msra.mxu0 0
        %1954 = vmatprep.subr.bf16.mxu0 0
        %1955 = vmatpush1.bf16.xpose.msra.mxu0 0
        %1956 = vmatprep.subr.bf16.mxu0 0
        %1957 = vmatpush1.bf16.xpose.msra.mxu0 0
        %1958 = vmatprep.subr.bf16.mxu0 0
        %1959 = vmatpush1.bf16.xpose.msra.mxu0 0
        %1960 = vmatprep.subr.bf16.mxu0 0
        %1961 = vmatpush1.bf16.xpose.msra.mxu0 0
        %1962 = vmatprep.subr.bf16.mxu0 0
        %1963 = vmatpush1.bf16.xpose.msra.mxu0 0
        %1964 = vmatprep.subr.bf16.mxu0 0
        %1965 = vmatpush1.bf16.xpose.msra.mxu0 0
        %1966 = vmatprep.subr.bf16.mxu0 0
        %1967 = vmatpush1.bf16.xpose.msra.mxu0 0
        %1968 = vmatprep.subr.bf16.mxu0 0
        %1969 = vmatpush1.bf16.xpose.msra.mxu0 0
        %1970 = vmatprep.subr.bf16.mxu0 0
        %1971 = vmatpush1.bf16.xpose.msra.mxu0 0
        %1972 = vmatprep.subr.bf16.mxu0 0
        %1973 = vmatpush1.bf16.xpose.msra.mxu0 0
        %1974 = vmatprep.subr.bf16.mxu0 0
        %1975 = vmatpush1.bf16.xpose.msra.mxu0 0
        %1976 = vmatprep.subr.bf16.mxu0 0
        %1977 = vmatpush1.bf16.xpose.msra.mxu0 0
        %1978 = vmatprep.subr.bf16.mxu0 0
        %1979 = vmatpush1.bf16.xpose.msra.mxu0 0
        %1980 = vmatprep.mubr.bf16.mxu0 0
        %1981 = vmatmul.mubr.bf16.gmra.mrb[0].mxu0 %v1943
        %v1982 = vpop.f32.mrb[0].mxu0
        %v1983 = vadd.f32 0.0, %v1982
        %v1984 = vpop.f32.mrb[0].mxu0
        %v1985 = vpop.f32.mrb[0].mxu0
        %v1986 = vpop.f32.mrb[0].mxu0
        %1987 = vdwg.mxu0
        %v1989 = vsel %vm1665, %v1097, 0
        %v1992 = vsel %vm1665, %v1384, 0
        %1994 = vmatprep.subr.bf16.mxu0 0
        %1995 = vmatpush1.bf16.xpose.msra.mxu0 %v1992
        %1996 = vmatprep.subr.bf16.mxu0 0
        %1997 = vmatpush1.bf16.xpose.msra.mxu0 0
        %1998 = vmatprep.subr.bf16.mxu0 0
        %1999 = vmatpush1.bf16.xpose.msra.mxu0 0
        %2000 = vmatprep.subr.bf16.mxu0 0
        %2001 = vmatpush1.bf16.xpose.msra.mxu0 0
        %2002 = vmatprep.subr.bf16.mxu0 0
        %2003 = vmatpush1.bf16.xpose.msra.mxu0 0
        %2004 = vmatprep.subr.bf16.mxu0 0
        %2005 = vmatpush1.bf16.xpose.msra.mxu0 0
        %2006 = vmatprep.subr.bf16.mxu0 0
        %2007 = vmatpush1.bf16.xpose.msra.mxu0 0
        %2008 = vmatprep.subr.bf16.mxu0 0
        %2009 = vmatpush1.bf16.xpose.msra.mxu0 0
        %2010 = vmatprep.subr.bf16.mxu0 0
        %2011 = vmatpush1.bf16.xpose.msra.mxu0 0
        %2012 = vmatprep.subr.bf16.mxu0 0
        %2013 = vmatpush1.bf16.xpose.msra.mxu0 0
        %2014 = vmatprep.subr.bf16.mxu0 0
        %2015 = vmatpush1.bf16.xpose.msra.mxu0 0
        %2016 = vmatprep.subr.bf16.mxu0 0
        %2017 = vmatpush1.bf16.xpose.msra.mxu0 0
        %2018 = vmatprep.subr.bf16.mxu0 0
        %2019 = vmatpush1.bf16.xpose.msra.mxu0 0
        %2020 = vmatprep.subr.bf16.mxu0 0
        %2021 = vmatpush1.bf16.xpose.msra.mxu0 0
        %2022 = vmatprep.subr.bf16.mxu0 0
        %2023 = vmatpush1.bf16.xpose.msra.mxu0 0
        %2024 = vmatprep.subr.bf16.mxu0 0
        %2025 = vmatpush1.bf16.xpose.msra.mxu0 0
        %2026 = vmatprep.mubr.bf16.mxu0 0
        %2027 = vmatmul.mubr.bf16.gmra.mrb[0].mxu0 %v1989
        %v2028 = vpop.f32.mrb[0].mxu0
        %v2029 = vadd.f32 0.0, %v2028
        %v2030 = vpop.f32.mrb[0].mxu0
        %v2031 = vpop.f32.mrb[0].mxu0
        %v2032 = vpop.f32.mrb[0].mxu0
        %2033 = vdwg.mxu0
        %v2034 = vlaneseq
        %v2035 = vshrl.u32 %v2034, 7
        %v2036 = vlaneseq
        %v2037 = vand.u32 %v2036, 127
        %vm2038 = vcmp.gt.s32.totalorder %v2037, %v2035
        %v2039 = vsel %vm2038, 1, 0
        %vm2040 = vcmp.eq.s32.totalorder %v2039, 1
        %v2041 = vsel %vm2040, -inf, %v1707
        %v2042 = vsel %vm2040, -inf, %v1753
        %v2043 = vsel %vm2040, -inf, %v1799
        %v2044 = vsel %vm2040, -inf, %v1845
        %v2045 = vsel %vm2040, -inf, %v1891
        %v2046 = vsel %vm2040, -inf, %v1937
        %v2047 = vsel %vm2040, -inf, %v1983
        %v2048 = vsel %vm2040, -inf, %v2029
        %v2049 = vsel %vm1665, %v2041, -inf
        %2050 = vmax.xlane.f32.xlu0 %v2049
        %v2051 = vpop.xlane.xlu0 %2050
        %v2052 = vsel %vm1665, %v2042, -inf
        %2053 = vmax.xlane.f32.xlu0 %v2052
        %v2054 = vpop.xlane.xlu0 %2053
        %v2055 = vsel %vm1665, %v2043, -inf
        %2056 = vmax.xlane.f32.xlu0 %v2055
        %v2057 = vpop.xlane.xlu0 %2056
        %v2058 = vsel %vm1665, %v2044, -inf
        %2059 = vmax.xlane.f32.xlu0 %v2058
        %v2060 = vpop.xlane.xlu0 %2059
        %v2061 = vsel %vm1665, %v2045, -inf
        %2062 = vmax.xlane.f32.xlu0 %v2061
        %v2063 = vpop.xlane.xlu0 %2062
        %v2064 = vsel %vm1665, %v2046, -inf
        %2065 = vmax.xlane.f32.xlu0 %v2064
        %v2066 = vpop.xlane.xlu0 %2065
        %v2067 = vsel %vm1665, %v2047, -inf
        %2068 = vmax.xlane.f32.xlu0 %v2067
        %v2069 = vpop.xlane.xlu0 %2068
        %v2070 = vsel %vm1665, %v2048, -inf
        %2071 = vmax.xlane.f32.xlu0 %v2070
        %v2072 = vpop.xlane.xlu0 %2071
        %v2073 = vsub.f32 %v2041, %v2051
        %v2074 = vsub.f32 %v2042, %v2054
        %v2075 = vsub.f32 %v2043, %v2057
        %v2076 = vsub.f32 %v2044, %v2060
        %v2077 = vsub.f32 %v2045, %v2063
        %v2078 = vsub.f32 %v2046, %v2066
        %v2079 = vsub.f32 %v2047, %v2069
        %v2080 = vsub.f32 %v2048, %v2072
        %v2081 = vmul.f32 %v2073, 1.442695
        %v2082 = vpow.pop %v2081
        %v2083 = vmul.f32 %v2074, 1.442695
        %v2084 = vpow.pop %v2083
        %v2085 = vmul.f32 %v2075, 1.442695
        %v2086 = vpow.pop %v2085
        %v2087 = vmul.f32 %v2076, 1.442695
        %v2088 = vpow.pop %v2087
        %v2089 = vmul.f32 %v2077, 1.442695
        %v2090 = vpow.pop %v2089
        %v2091 = vmul.f32 %v2078, 1.442695
        %v2092 = vpow.pop %v2091
        %v2093 = vmul.f32 %v2079, 1.442695
        %v2094 = vpow.pop %v2093
        %v2095 = vmul.f32 %v2080, 1.442695
        %v2096 = vpow.pop %v2095
        %v2097 = vsel %vm1665, %v2082, 0.0
        %2098 = vadd.xlane.f32.xlu0 %v2097
        %v2099 = vpop.xlane.xlu0 %2098
        %v2100 = vsel %vm1665, %v2084, 0.0
        %2101 = vadd.xlane.f32.xlu0 %v2100
        %v2102 = vpop.xlane.xlu0 %2101
        %v2103 = vsel %vm1665, %v2086, 0.0
        %2104 = vadd.xlane.f32.xlu0 %v2103
        %v2105 = vpop.xlane.xlu0 %2104
        %v2106 = vsel %vm1665, %v2088, 0.0
        %2107 = vadd.xlane.f32.xlu0 %v2106
        %v2108 = vpop.xlane.xlu0 %2107
        %v2109 = vsel %vm1665, %v2090, 0.0
        %2110 = vadd.xlane.f32.xlu0 %v2109
        %v2111 = vpop.xlane.xlu0 %2110
        %v2112 = vsel %vm1665, %v2092, 0.0
        %2113 = vadd.xlane.f32.xlu0 %v2112
        %v2114 = vpop.xlane.xlu0 %2113
        %v2115 = vsel %vm1665, %v2094, 0.0
        %2116 = vadd.xlane.f32.xlu0 %v2115
        %v2117 = vpop.xlane.xlu0 %2116
        %v2118 = vsel %vm1665, %v2096, 0.0
        %2119 = vadd.xlane.f32.xlu0 %v2118
        %v2120 = vpop.xlane.xlu0 %2119
        %v2121 = vrcp.pop %v2099
        %v2122 = vrcp.pop %v2102
        %v2123 = vrcp.pop %v2105
        %v2124 = vrcp.pop %v2108
        %v2125 = vrcp.pop %v2111
        %v2126 = vrcp.pop %v2114
        %v2127 = vrcp.pop %v2117
        %v2128 = vrcp.pop %v2120
        %v2129 = vmul.f32 %v2082, %v2121
        %v2130 = vmul.f32 %v2084, %v2122
        %v2131 = vmul.f32 %v2086, %v2123
        %v2132 = vmul.f32 %v2088, %v2124
        %v2133 = vmul.f32 %v2090, %v2125
        %v2134 = vmul.f32 %v2092, %v2126
        %v2135 = vmul.f32 %v2094, %v2127
        %v2136 = vmul.f32 %v2096, %v2128
        %v2137 = vpack.c.bf16 %v2129, %v2129
        %v2138 = vpack.c.bf16 %v2130, %v2130
        %v2139 = vpack.c.bf16 %v2131, %v2131
        %v2140 = vpack.c.bf16 %v2132, %v2132
        %v2141 = vpack.c.bf16 %v2133, %v2133
        %v2142 = vpack.c.bf16 %v2134, %v2134
        %v2143 = vpack.c.bf16 %v2135, %v2135
        %v2144 = vpack.c.bf16 %v2136, %v2136
        %v2146 = vsel %vm1665, %v2137, 0
        %vm2148 = vcmask 1043456
        %v2150 = vsel %vm2148, %v1643, 0
        %2152 = vmatprep.subr.bf16.mxu0 0
        %2153 = vmatpush1.bf16.msra.mxu0 %v2150
        %2154 = vmatprep.subr.bf16.mxu0 0
        %2155 = vmatpush1.bf16.msra.mxu0 0
        %2156 = vmatprep.subr.bf16.mxu0 0
        %2157 = vmatpush1.bf16.msra.mxu0 0
        %2158 = vmatprep.subr.bf16.mxu0 0
        %2159 = vmatpush1.bf16.msra.mxu0 0
        %2160 = vmatprep.subr.bf16.mxu0 0
        %2161 = vmatpush1.bf16.msra.mxu0 0
        %2162 = vmatprep.subr.bf16.mxu0 0
        %2163 = vmatpush1.bf16.msra.mxu0 0
        %2164 = vmatprep.subr.bf16.mxu0 0
        %2165 = vmatpush1.bf16.msra.mxu0 0
        %2166 = vmatprep.subr.bf16.mxu0 0
        %2167 = vmatpush1.bf16.msra.mxu0 0
        %2168 = vmatprep.subr.bf16.mxu0 0
        %2169 = vmatpush1.bf16.msra.mxu0 0
        %2170 = vmatprep.subr.bf16.mxu0 0
        %2171 = vmatpush1.bf16.msra.mxu0 0
        %2172 = vmatprep.subr.bf16.mxu0 0
        %2173 = vmatpush1.bf16.msra.mxu0 0
        %2174 = vmatprep.subr.bf16.mxu0 0
        %2175 = vmatpush1.bf16.msra.mxu0 0
        %2176 = vmatprep.subr.bf16.mxu0 0
        %2177 = vmatpush1.bf16.msra.mxu0 0
        %2178 = vmatprep.subr.bf16.mxu0 0
        %2179 = vmatpush1.bf16.msra.mxu0 0
        %2180 = vmatprep.subr.bf16.mxu0 0
        %2181 = vmatpush1.bf16.msra.mxu0 0
        %2182 = vmatprep.subr.bf16.mxu0 0
        %2183 = vmatpush1.bf16.msra.mxu0 0
        %2184 = vmatprep.mubr.bf16.mxu0 0
        %2185 = vmatmul.mubr.bf16.gmra.mrb[0].mxu0 %v2146
        %v2186 = vpop.f32.mrb[0].mxu0
        %v2187 = vadd.f32 0.0, %v2186
        %v2188 = vpop.f32.mrb[0].mxu0
        %v2189 = vpop.f32.mrb[0].mxu0
        %v2190 = vpop.f32.mrb[0].mxu0
        %2191 = vdwg.mxu0
        %v2193 = vsel %vm1665, %v2138, 0
        %v2196 = vsel %vm2148, %v1646, 0
        %2198 = vmatprep.subr.bf16.mxu0 0
        %2199 = vmatpush1.bf16.msra.mxu0 %v2196
        %2200 = vmatprep.subr.bf16.mxu0 0
        %2201 = vmatpush1.bf16.msra.mxu0 0
        %2202 = vmatprep.subr.bf16.mxu0 0
        %2203 = vmatpush1.bf16.msra.mxu0 0
        %2204 = vmatprep.subr.bf16.mxu0 0
        %2205 = vmatpush1.bf16.msra.mxu0 0
        %2206 = vmatprep.subr.bf16.mxu0 0
        %2207 = vmatpush1.bf16.msra.mxu0 0
        %2208 = vmatprep.subr.bf16.mxu0 0
        %2209 = vmatpush1.bf16.msra.mxu0 0
        %2210 = vmatprep.subr.bf16.mxu0 0
        %2211 = vmatpush1.bf16.msra.mxu0 0
        %2212 = vmatprep.subr.bf16.mxu0 0
        %2213 = vmatpush1.bf16.msra.mxu0 0
        %2214 = vmatprep.subr.bf16.mxu0 0
        %2215 = vmatpush1.bf16.msra.mxu0 0
        %2216 = vmatprep.subr.bf16.mxu0 0
        %2217 = vmatpush1.bf16.msra.mxu0 0
        %2218 = vmatprep.subr.bf16.mxu0 0
        %2219 = vmatpush1.bf16.msra.mxu0 0
        %2220 = vmatprep.subr.bf16.mxu0 0
        %2221 = vmatpush1.bf16.msra.mxu0 0
        %2222 = vmatprep.subr.bf16.mxu0 0
        %2223 = vmatpush1.bf16.msra.mxu0 0
        %2224 = vmatprep.subr.bf16.mxu0 0
        %2225 = vmatpush1.bf16.msra.mxu0 0
        %2226 = vmatprep.subr.bf16.mxu0 0
        %2227 = vmatpush1.bf16.msra.mxu0 0
        %2228 = vmatprep.subr.bf16.mxu0 0
        %2229 = vmatpush1.bf16.msra.mxu0 0
        %2230 = vmatprep.mubr.bf16.mxu0 0
        %2231 = vmatmul.mubr.bf16.gmra.mrb[0].mxu0 %v2193
        %v2232 = vpop.f32.mrb[0].mxu0
        %v2233 = vadd.f32 0.0, %v2232
        %v2234 = vpop.f32.mrb[0].mxu0
        %v2235 = vpop.f32.mrb[0].mxu0
        %v2236 = vpop.f32.mrb[0].mxu0
        %2237 = vdwg.mxu0
        %v2239 = vsel %vm1665, %v2139, 0
        %v2242 = vsel %vm2148, %v1649, 0
        %2244 = vmatprep.subr.bf16.mxu0 0
        %2245 = vmatpush1.bf16.msra.mxu0 %v2242
        %2246 = vmatprep.subr.bf16.mxu0 0
        %2247 = vmatpush1.bf16.msra.mxu0 0
        %2248 = vmatprep.subr.bf16.mxu0 0
        %2249 = vmatpush1.bf16.msra.mxu0 0
        %2250 = vmatprep.subr.bf16.mxu0 0
        %2251 = vmatpush1.bf16.msra.mxu0 0
        %2252 = vmatprep.subr.bf16.mxu0 0
        %2253 = vmatpush1.bf16.msra.mxu0 0
        %2254 = vmatprep.subr.bf16.mxu0 0
        %2255 = vmatpush1.bf16.msra.mxu0 0
        %2256 = vmatprep.subr.bf16.mxu0 0
        %2257 = vmatpush1.bf16.msra.mxu0 0
        %2258 = vmatprep.subr.bf16.mxu0 0
        %2259 = vmatpush1.bf16.msra.mxu0 0
        %2260 = vmatprep.subr.bf16.mxu0 0
        %2261 = vmatpush1.bf16.msra.mxu0 0
        %2262 = vmatprep.subr.bf16.mxu0 0
        %2263 = vmatpush1.bf16.msra.mxu0 0
        %2264 = vmatprep.subr.bf16.mxu0 0
        %2265 = vmatpush1.bf16.msra.mxu0 0
        %2266 = vmatprep.subr.bf16.mxu0 0
        %2267 = vmatpush1.bf16.msra.mxu0 0
        %2268 = vmatprep.subr.bf16.mxu0 0
        %2269 = vmatpush1.bf16.msra.mxu0 0
        %2270 = vmatprep.subr.bf16.mxu0 0
        %2271 = vmatpush1.bf16.msra.mxu0 0
        %2272 = vmatprep.subr.bf16.mxu0 0
        %2273 = vmatpush1.bf16.msra.mxu0 0
        %2274 = vmatprep.subr.bf16.mxu0 0
        %2275 = vmatpush1.bf16.msra.mxu0 0
        %2276 = vmatprep.mubr.bf16.mxu0 0
        %2277 = vmatmul.mubr.bf16.gmra.mrb[0].mxu0 %v2239
        %v2278 = vpop.f32.mrb[0].mxu0
        %v2279 = vadd.f32 0.0, %v2278
        %v2280 = vpop.f32.mrb[0].mxu0
        %v2281 = vpop.f32.mrb[0].mxu0
        %v2282 = vpop.f32.mrb[0].mxu0
        %2283 = vdwg.mxu0
        %v2285 = vsel %vm1665, %v2140, 0
        %v2288 = vsel %vm2148, %v1652, 0
        %2290 = vmatprep.subr.bf16.mxu0 0
        %2291 = vmatpush1.bf16.msra.mxu0 %v2288
        %2292 = vmatprep.subr.bf16.mxu0 0
        %2293 = vmatpush1.bf16.msra.mxu0 0
        %2294 = vmatprep.subr.bf16.mxu0 0
        %2295 = vmatpush1.bf16.msra.mxu0 0
        %2296 = vmatprep.subr.bf16.mxu0 0
        %2297 = vmatpush1.bf16.msra.mxu0 0
        %2298 = vmatprep.subr.bf16.mxu0 0
        %2299 = vmatpush1.bf16.msra.mxu0 0
        %2300 = vmatprep.subr.bf16.mxu0 0
        %2301 = vmatpush1.bf16.msra.mxu0 0
        %2302 = vmatprep.subr.bf16.mxu0 0
        %2303 = vmatpush1.bf16.msra.mxu0 0
        %2304 = vmatprep.subr.bf16.mxu0 0
        %2305 = vmatpush1.bf16.msra.mxu0 0
        %2306 = vmatprep.subr.bf16.mxu0 0
        %2307 = vmatpush1.bf16.msra.mxu0 0
        %2308 = vmatprep.subr.bf16.mxu0 0
        %2309 = vmatpush1.bf16.msra.mxu0 0
        %2310 = vmatprep.subr.bf16.mxu0 0
        %2311 = vmatpush1.bf16.msra.mxu0 0
        %2312 = vmatprep.subr.bf16.mxu0 0
        %2313 = vmatpush1.bf16.msra.mxu0 0
        %2314 = vmatprep.subr.bf16.mxu0 0
        %2315 = vmatpush1.bf16.msra.mxu0 0
        %2316 = vmatprep.subr.bf16.mxu0 0
        %2317 = vmatpush1.bf16.msra.mxu0 0
        %2318 = vmatprep.subr.bf16.mxu0 0
        %2319 = vmatpush1.bf16.msra.mxu0 0
        %2320 = vmatprep.subr.bf16.mxu0 0
        %2321 = vmatpush1.bf16.msra.mxu0 0
        %2322 = vmatprep.mubr.bf16.mxu0 0
        %2323 = vmatmul.mubr.bf16.gmra.mrb[0].mxu0 %v2285
        %v2324 = vpop.f32.mrb[0].mxu0
        %v2325 = vadd.f32 0.0, %v2324
        %v2326 = vpop.f32.mrb[0].mxu0
        %v2327 = vpop.f32.mrb[0].mxu0
        %v2328 = vpop.f32.mrb[0].mxu0
        %2329 = vdwg.mxu0
        %v2331 = vsel %vm1665, %v2141, 0
        %v2334 = vsel %vm2148, %v1655, 0
        %2336 = vmatprep.subr.bf16.mxu0 0
        %2337 = vmatpush1.bf16.msra.mxu0 %v2334
        %2338 = vmatprep.subr.bf16.mxu0 0
        %2339 = vmatpush1.bf16.msra.mxu0 0
        %2340 = vmatprep.subr.bf16.mxu0 0
        %2341 = vmatpush1.bf16.msra.mxu0 0
        %2342 = vmatprep.subr.bf16.mxu0 0
        %2343 = vmatpush1.bf16.msra.mxu0 0
        %2344 = vmatprep.subr.bf16.mxu0 0
        %2345 = vmatpush1.bf16.msra.mxu0 0
        %2346 = vmatprep.subr.bf16.mxu0 0
        %2347 = vmatpush1.bf16.msra.mxu0 0
        %2348 = vmatprep.subr.bf16.mxu0 0
        %2349 = vmatpush1.bf16.msra.mxu0 0
        %2350 = vmatprep.subr.bf16.mxu0 0
        %2351 = vmatpush1.bf16.msra.mxu0 0
        %2352 = vmatprep.subr.bf16.mxu0 0
        %2353 = vmatpush1.bf16.msra.mxu0 0
        %2354 = vmatprep.subr.bf16.mxu0 0
        %2355 = vmatpush1.bf16.msra.mxu0 0
        %2356 = vmatprep.subr.bf16.mxu0 0
        %2357 = vmatpush1.bf16.msra.mxu0 0
        %2358 = vmatprep.subr.bf16.mxu0 0
        %2359 = vmatpush1.bf16.msra.mxu0 0
        %2360 = vmatprep.subr.bf16.mxu0 0
        %2361 = vmatpush1.bf16.msra.mxu0 0
        %2362 = vmatprep.subr.bf16.mxu0 0
        %2363 = vmatpush1.bf16.msra.mxu0 0
        %2364 = vmatprep.subr.bf16.mxu0 0
        %2365 = vmatpush1.bf16.msra.mxu0 0
        %2366 = vmatprep.subr.bf16.mxu0 0
        %2367 = vmatpush1.bf16.msra.mxu0 0
        %2368 = vmatprep.mubr.bf16.mxu0 0
        %2369 = vmatmul.mubr.bf16.gmra.mrb[0].mxu0 %v2331
        %v2370 = vpop.f32.mrb[0].mxu0
        %v2371 = vadd.f32 0.0, %v2370
        %v2372 = vpop.f32.mrb[0].mxu0
        %v2373 = vpop.f32.mrb[0].mxu0
        %v2374 = vpop.f32.mrb[0].mxu0
        %2375 = vdwg.mxu0
        %v2377 = vsel %vm1665, %v2142, 0
        %v2380 = vsel %vm2148, %v1658, 0
        %2382 = vmatprep.subr.bf16.mxu0 0
        %2383 = vmatpush1.bf16.msra.mxu0 %v2380
        %2384 = vmatprep.subr.bf16.mxu0 0
        %2385 = vmatpush1.bf16.msra.mxu0 0
        %2386 = vmatprep.subr.bf16.mxu0 0
        %2387 = vmatpush1.bf16.msra.mxu0 0
        %2388 = vmatprep.subr.bf16.mxu0 0
        %2389 = vmatpush1.bf16.msra.mxu0 0
        %2390 = vmatprep.subr.bf16.mxu0 0
        %2391 = vmatpush1.bf16.msra.mxu0 0
        %2392 = vmatprep.subr.bf16.mxu0 0
        %2393 = vmatpush1.bf16.msra.mxu0 0
        %2394 = vmatprep.subr.bf16.mxu0 0
        %2395 = vmatpush1.bf16.msra.mxu0 0
        %2396 = vmatprep.subr.bf16.mxu0 0
        %2397 = vmatpush1.bf16.msra.mxu0 0
        %2398 = vmatprep.subr.bf16.mxu0 0
        %2399 = vmatpush1.bf16.msra.mxu0 0
        %2400 = vmatprep.subr.bf16.mxu0 0
        %2401 = vmatpush1.bf16.msra.mxu0 0
        %2402 = vmatprep.subr.bf16.mxu0 0
        %2403 = vmatpush1.bf16.msra.mxu0 0
        %2404 = vmatprep.subr.bf16.mxu0 0
        %2405 = vmatpush1.bf16.msra.mxu0 0
        %2406 = vmatprep.subr.bf16.mxu0 0
        %2407 = vmatpush1.bf16.msra.mxu0 0
        %2408 = vmatprep.subr.bf16.mxu0 0
        %2409 = vmatpush1.bf16.msra.mxu0 0
        %2410 = vmatprep.subr.bf16.mxu0 0
        %2411 = vmatpush1.bf16.msra.mxu0 0
        %2412 = vmatprep.subr.bf16.mxu0 0
        %2413 = vmatpush1.bf16.msra.mxu0 0
        %2414 = vmatprep.mubr.bf16.mxu0 0
        %2415 = vmatmul.mubr.bf16.gmra.mrb[0].mxu0 %v2377
        %v2416 = vpop.f32.mrb[0].mxu0
        %v2417 = vadd.f32 0.0, %v2416
        %v2418 = vpop.f32.mrb[0].mxu0
        %v2419 = vpop.f32.mrb[0].mxu0
        %v2420 = vpop.f32.mrb[0].mxu0
        %2421 = vdwg.mxu0
        %v2423 = vsel %vm1665, %v2143, 0
        %v2426 = vsel %vm2148, %v1661, 0
        %2428 = vmatprep.subr.bf16.mxu0 0
        %2429 = vmatpush1.bf16.msra.mxu0 %v2426
        %2430 = vmatprep.subr.bf16.mxu0 0
        %2431 = vmatpush1.bf16.msra.mxu0 0
        %2432 = vmatprep.subr.bf16.mxu0 0
        %2433 = vmatpush1.bf16.msra.mxu0 0
        %2434 = vmatprep.subr.bf16.mxu0 0
        %2435 = vmatpush1.bf16.msra.mxu0 0
        %2436 = vmatprep.subr.bf16.mxu0 0
        %2437 = vmatpush1.bf16.msra.mxu0 0
        %2438 = vmatprep.subr.bf16.mxu0 0
        %2439 = vmatpush1.bf16.msra.mxu0 0
        %2440 = vmatprep.subr.bf16.mxu0 0
        %2441 = vmatpush1.bf16.msra.mxu0 0
        %2442 = vmatprep.subr.bf16.mxu0 0
        %2443 = vmatpush1.bf16.msra.mxu0 0
        %2444 = vmatprep.subr.bf16.mxu0 0
        %2445 = vmatpush1.bf16.msra.mxu0 0
        %2446 = vmatprep.subr.bf16.mxu0 0
        %2447 = vmatpush1.bf16.msra.mxu0 0
        %2448 = vmatprep.subr.bf16.mxu0 0
        %2449 = vmatpush1.bf16.msra.mxu0 0
        %2450 = vmatprep.subr.bf16.mxu0 0
        %2451 = vmatpush1.bf16.msra.mxu0 0
        %2452 = vmatprep.subr.bf16.mxu0 0
        %2453 = vmatpush1.bf16.msra.mxu0 0
        %2454 = vmatprep.subr.bf16.mxu0 0
        %2455 = vmatpush1.bf16.msra.mxu0 0
        %2456 = vmatprep.subr.bf16.mxu0 0
        %2457 = vmatpush1.bf16.msra.mxu0 0
        %2458 = vmatprep.subr.bf16.mxu0 0
        %2459 = vmatpush1.bf16.msra.mxu0 0
        %2460 = vmatprep.mubr.bf16.mxu0 0
        %2461 = vmatmul.mubr.bf16.gmra.mrb[0].mxu0 %v2423
        %v2462 = vpop.f32.mrb[0].mxu0
        %v2463 = vadd.f32 0.0, %v2462
        %v2464 = vpop.f32.mrb[0].mxu0
        %v2465 = vpop.f32.mrb[0].mxu0
        %v2466 = vpop.f32.mrb[0].mxu0
        %2467 = vdwg.mxu0
        %v2469 = vsel %vm1665, %v2144, 0
        %v2472 = vsel %vm2148, %v1664, 0
        %2474 = vmatprep.subr.bf16.mxu0 0
        %2475 = vmatpush1.bf16.msra.mxu0 %v2472
        %2476 = vmatprep.subr.bf16.mxu0 0
        %2477 = vmatpush1.bf16.msra.mxu0 0
        %2478 = vmatprep.subr.bf16.mxu0 0
        %2479 = vmatpush1.bf16.msra.mxu0 0
        %2480 = vmatprep.subr.bf16.mxu0 0
        %2481 = vmatpush1.bf16.msra.mxu0 0
        %2482 = vmatprep.subr.bf16.mxu0 0
        %2483 = vmatpush1.bf16.msra.mxu0 0
        %2484 = vmatprep.subr.bf16.mxu0 0
        %2485 = vmatpush1.bf16.msra.mxu0 0
        %2486 = vmatprep.subr.bf16.mxu0 0
        %2487 = vmatpush1.bf16.msra.mxu0 0
        %2488 = vmatprep.subr.bf16.mxu0 0
        %2489 = vmatpush1.bf16.msra.mxu0 0
        %2490 = vmatprep.subr.bf16.mxu0 0
        %2491 = vmatpush1.bf16.msra.mxu0 0
        %2492 = vmatprep.subr.bf16.mxu0 0
        %2493 = vmatpush1.bf16.msra.mxu0 0
        %2494 = vmatprep.subr.bf16.mxu0 0
        %2495 = vmatpush1.bf16.msra.mxu0 0
        %2496 = vmatprep.subr.bf16.mxu0 0
        %2497 = vmatpush1.bf16.msra.mxu0 0
        %2498 = vmatprep.subr.bf16.mxu0 0
        %2499 = vmatpush1.bf16.msra.mxu0 0
        %2500 = vmatprep.subr.bf16.mxu0 0
        %2501 = vmatpush1.bf16.msra.mxu0 0
        %2502 = vmatprep.subr.bf16.mxu0 0
        %2503 = vmatpush1.bf16.msra.mxu0 0
        %2504 = vmatprep.subr.bf16.mxu0 0
        %2505 = vmatpush1.bf16.msra.mxu0 0
        %2506 = vmatprep.mubr.bf16.mxu0 0
        %2507 = vmatmul.mubr.bf16.gmra.mrb[0].mxu0 %v2469
        %v2508 = vpop.f32.mrb[0].mxu0
        %v2509 = vadd.f32 0.0, %v2508
        %v2510 = vpop.f32.mrb[0].mxu0
        %v2511 = vpop.f32.mrb[0].mxu0
        %v2512 = vpop.f32.mrb[0].mxu0
        %2513 = vdwg.mxu0
        %v2514 = vcombine.low %v2187, %v2279
        %v2515 = vcombine.high %v2187, %v2279
        %v2517 = vunpack.c.l.s4 1983009808
        %v2518 = vunpack.c.0.s8 %v2517
        %v2519 = vlaneseq
        %v2520 = vshrl.u32 %v2519, 7
        %v2521 = vsub.s32 %v2518, %v2520
        %v2522 = vrot.slane %v2514, %v2521
        %v2524 = vunpack.c.l.s4 1983009808
        %v2525 = vunpack.c.0.s8 %v2524
        %v2526 = vlaneseq
        %v2527 = vshrl.u32 %v2526, 7
        %v2528 = vsub.s32 %v2525, %v2527
        %v2529 = vrot.slane %v2515, %v2528
        %v2530 = vcombine.low %v2233, %v2325
        %v2531 = vcombine.high %v2233, %v2325
        %v2533 = vunpack.c.l.s4 1983009808
        %v2534 = vunpack.c.0.s8 %v2533
        %v2535 = vlaneseq
        %v2536 = vshrl.u32 %v2535, 7
        %v2537 = vsub.s32 %v2534, %v2536
        %v2538 = vrot.slane %v2530, %v2537
        %v2540 = vunpack.c.l.s4 1983009808
        %v2541 = vunpack.c.0.s8 %v2540
        %v2542 = vlaneseq
        %v2543 = vshrl.u32 %v2542, 7
        %v2544 = vsub.s32 %v2541, %v2543
        %v2545 = vrot.slane %v2531, %v2544
        %v2546 = vcombine.low %v2522, %v2538
        %v2547 = vcombine.high %v2522, %v2538
        %v2549 = vunpack.c.l.s4 1934713408
        %v2550 = vunpack.c.0.s8 %v2549
        %v2551 = vlaneseq
        %v2552 = vshrl.u32 %v2551, 7
        %v2553 = vsub.s32 %v2550, %v2552
        %v2554 = vrot.slane %v2546, %v2553
        %v2556 = vunpack.c.l.s4 1934713408
        %v2557 = vunpack.c.0.s8 %v2556
        %v2558 = vlaneseq
        %v2559 = vshrl.u32 %v2558, 7
        %v2560 = vsub.s32 %v2557, %v2559
        %v2561 = vrot.slane %v2547, %v2560
        %v2562 = vcombine.low %v2529, %v2545
        %v2563 = vcombine.high %v2529, %v2545
        %v2565 = vunpack.c.l.s4 1934713408
        %v2566 = vunpack.c.0.s8 %v2565
        %v2567 = vlaneseq
        %v2568 = vshrl.u32 %v2567, 7
        %v2569 = vsub.s32 %v2566, %v2568
        %v2570 = vrot.slane %v2562, %v2569
        %v2572 = vunpack.c.l.s4 1934713408
        %v2573 = vunpack.c.0.s8 %v2572
        %v2574 = vlaneseq
        %v2575 = vshrl.u32 %v2574, 7
        %v2576 = vsub.s32 %v2573, %v2575
        %v2577 = vrot.slane %v2563, %v2576
        %v2578 = vcombine.high %v2554, 0.0
        %v2579 = vcombine.high %v2561, 0.0
        %v2580 = vcombine.high %v2570, 0.0
        %v2581 = vcombine.high %v2577, 0.0
        %v2582 = vcombine.low %v2371, %v2463
        %v2583 = vcombine.high %v2371, %v2463
        %v2585 = vunpack.c.l.s4 1983009808
        %v2586 = vunpack.c.0.s8 %v2585
        %v2587 = vlaneseq
        %v2588 = vshrl.u32 %v2587, 7
        %v2589 = vsub.s32 %v2586, %v2588
        %v2590 = vrot.slane %v2582, %v2589
        %v2592 = vunpack.c.l.s4 1983009808
        %v2593 = vunpack.c.0.s8 %v2592
        %v2594 = vlaneseq
        %v2595 = vshrl.u32 %v2594, 7
        %v2596 = vsub.s32 %v2593, %v2595
        %v2597 = vrot.slane %v2583, %v2596
        %v2598 = vcombine.low %v2417, %v2509
        %v2599 = vcombine.high %v2417, %v2509
        %v2601 = vunpack.c.l.s4 1983009808
        %v2602 = vunpack.c.0.s8 %v2601
        %v2603 = vlaneseq
        %v2604 = vshrl.u32 %v2603, 7
        %v2605 = vsub.s32 %v2602, %v2604
        %v2606 = vrot.slane %v2598, %v2605
        %v2608 = vunpack.c.l.s4 1983009808
        %v2609 = vunpack.c.0.s8 %v2608
        %v2610 = vlaneseq
        %v2611 = vshrl.u32 %v2610, 7
        %v2612 = vsub.s32 %v2609, %v2611
        %v2613 = vrot.slane %v2599, %v2612
        %v2614 = vcombine.low %v2590, %v2606
        %v2615 = vcombine.high %v2590, %v2606
        %v2617 = vunpack.c.l.s4 1934713408
        %v2618 = vunpack.c.0.s8 %v2617
        %v2619 = vlaneseq
        %v2620 = vshrl.u32 %v2619, 7
        %v2621 = vsub.s32 %v2618, %v2620
        %v2622 = vrot.slane %v2614, %v2621
        %v2624 = vunpack.c.l.s4 1934713408
        %v2625 = vunpack.c.0.s8 %v2624
        %v2626 = vlaneseq
        %v2627 = vshrl.u32 %v2626, 7
        %v2628 = vsub.s32 %v2625, %v2627
        %v2629 = vrot.slane %v2615, %v2628
        %v2630 = vcombine.low %v2597, %v2613
        %v2631 = vcombine.high %v2597, %v2613
        %v2633 = vunpack.c.l.s4 1934713408
        %v2634 = vunpack.c.0.s8 %v2633
        %v2635 = vlaneseq
        %v2636 = vshrl.u32 %v2635, 7
        %v2637 = vsub.s32 %v2634, %v2636
        %v2638 = vrot.slane %v2630, %v2637
        %v2640 = vunpack.c.l.s4 1934713408
        %v2641 = vunpack.c.0.s8 %v2640
        %v2642 = vlaneseq
        %v2643 = vshrl.u32 %v2642, 7
        %v2644 = vsub.s32 %v2641, %v2643
        %v2645 = vrot.slane %v2631, %v2644
        %v2646 = vcombine.high %v2622, 0.0
        %v2647 = vcombine.high %v2629, 0.0
        %v2648 = vcombine.high %v2638, 0.0
        %v2649 = vcombine.high %v2645, 0.0
        %v2650 = vcombine.low %v2554, %v2561
        %v2652 = vunpack.c.l.s4 1983009808
        %v2653 = vunpack.c.0.s8 %v2652
        %v2654 = vlaneseq
        %v2655 = vshrl.u32 %v2654, 7
        %v2656 = vsub.s32 %v2653, %v2655
        %v2657 = vrot.slane %v2650, %v2656
        %v2658 = vcombine.low %v2578, %v2579
        %v2660 = vunpack.c.l.s4 1983009808
        %v2661 = vunpack.c.0.s8 %v2660
        %v2662 = vlaneseq
        %v2663 = vshrl.u32 %v2662, 7
        %v2664 = vsub.s32 %v2661, %v2663
        %v2665 = vrot.slane %v2658, %v2664
        %v2666 = vcombine.low %v2570, %v2577
        %v2668 = vunpack.c.l.s4 1983009808
        %v2669 = vunpack.c.0.s8 %v2668
        %v2670 = vlaneseq
        %v2671 = vshrl.u32 %v2670, 7
        %v2672 = vsub.s32 %v2669, %v2671
        %v2673 = vrot.slane %v2666, %v2672
        %v2674 = vcombine.low %v2580, %v2581
        %v2676 = vunpack.c.l.s4 1983009808
        %v2677 = vunpack.c.0.s8 %v2676
        %v2678 = vlaneseq
        %v2679 = vshrl.u32 %v2678, 7
        %v2680 = vsub.s32 %v2677, %v2679
        %v2681 = vrot.slane %v2674, %v2680
        %v2682 = vcombine.low %v2657, %v2665
        %v2683 = vcombine.high %v2657, %v2665
        %v2685 = vunpack.c.l.s4 1934713408
        %v2686 = vunpack.c.0.s8 %v2685
        %v2687 = vlaneseq
        %v2688 = vshrl.u32 %v2687, 7
        %v2689 = vsub.s32 %v2686, %v2688
        %v2690 = vrot.slane %v2682, %v2689
        %v2692 = vunpack.c.l.s4 1934713408
        %v2693 = vunpack.c.0.s8 %v2692
        %v2694 = vlaneseq
        %v2695 = vshrl.u32 %v2694, 7
        %v2696 = vsub.s32 %v2693, %v2695
        %v2697 = vrot.slane %v2683, %v2696
        %v2698 = vcombine.low %v2673, %v2681
        %v2699 = vcombine.high %v2673, %v2681
        %v2701 = vunpack.c.l.s4 1934713408
        %v2702 = vunpack.c.0.s8 %v2701
        %v2703 = vlaneseq
        %v2704 = vshrl.u32 %v2703, 7
        %v2705 = vsub.s32 %v2702, %v2704
        %v2706 = vrot.slane %v2698, %v2705
        %v2708 = vunpack.c.l.s4 1934713408
        %v2709 = vunpack.c.0.s8 %v2708
        %v2710 = vlaneseq
        %v2711 = vshrl.u32 %v2710, 7
        %v2712 = vsub.s32 %v2709, %v2711
        %v2713 = vrot.slane %v2699, %v2712
        %v2714 = vcombine.low %v2690, %v2706
        %v2715 = vcombine.high %v2690, %v2706
        %v2716 = vcombine.low %v2697, %v2713
        %v2717 = vcombine.high %v2697, %v2713
        %v2718 = vcombine.low %v2622, %v2629
        %v2720 = vunpack.c.l.s4 1983009808
        %v2721 = vunpack.c.0.s8 %v2720
        %v2722 = vlaneseq
        %v2723 = vshrl.u32 %v2722, 7
        %v2724 = vsub.s32 %v2721, %v2723
        %v2725 = vrot.slane %v2718, %v2724
        %v2726 = vcombine.low %v2646, %v2647
        %v2728 = vunpack.c.l.s4 1983009808
        %v2729 = vunpack.c.0.s8 %v2728
        %v2730 = vlaneseq
        %v2731 = vshrl.u32 %v2730, 7
        %v2732 = vsub.s32 %v2729, %v2731
        %v2733 = vrot.slane %v2726, %v2732
        %v2734 = vcombine.low %v2638, %v2645
        %v2736 = vunpack.c.l.s4 1983009808
        %v2737 = vunpack.c.0.s8 %v2736
        %v2738 = vlaneseq
        %v2739 = vshrl.u32 %v2738, 7
        %v2740 = vsub.s32 %v2737, %v2739
        %v2741 = vrot.slane %v2734, %v2740
        %v2742 = vcombine.low %v2648, %v2649
        %v2744 = vunpack.c.l.s4 1983009808
        %v2745 = vunpack.c.0.s8 %v2744
        %v2746 = vlaneseq
        %v2747 = vshrl.u32 %v2746, 7
        %v2748 = vsub.s32 %v2745, %v2747
        %v2749 = vrot.slane %v2742, %v2748
        %v2750 = vcombine.low %v2725, %v2733
        %v2751 = vcombine.high %v2725, %v2733
        %v2753 = vunpack.c.l.s4 1934713408
        %v2754 = vunpack.c.0.s8 %v2753
        %v2755 = vlaneseq
        %v2756 = vshrl.u32 %v2755, 7
        %v2757 = vsub.s32 %v2754, %v2756
        %v2758 = vrot.slane %v2750, %v2757
        %v2760 = vunpack.c.l.s4 1934713408
        %v2761 = vunpack.c.0.s8 %v2760
        %v2762 = vlaneseq
        %v2763 = vshrl.u32 %v2762, 7
        %v2764 = vsub.s32 %v2761, %v2763
        %v2765 = vrot.slane %v2751, %v2764
        %v2766 = vcombine.low %v2741, %v2749
        %v2767 = vcombine.high %v2741, %v2749
        %v2769 = vunpack.c.l.s4 1934713408
        %v2770 = vunpack.c.0.s8 %v2769
        %v2771 = vlaneseq
        %v2772 = vshrl.u32 %v2771, 7
        %v2773 = vsub.s32 %v2770, %v2772
        %v2774 = vrot.slane %v2766, %v2773
        %v2776 = vunpack.c.l.s4 1934713408
        %v2777 = vunpack.c.0.s8 %v2776
        %v2778 = vlaneseq
        %v2779 = vshrl.u32 %v2778, 7
        %v2780 = vsub.s32 %v2777, %v2779
        %v2781 = vrot.slane %v2767, %v2780
        %v2782 = vcombine.low %v2758, %v2774
        %v2783 = vcombine.high %v2758, %v2774
        %v2784 = vcombine.low %v2765, %v2781
        %v2785 = vcombine.high %v2765, %v2781
        %2788 = vrot.lane.b32.xlu0 %v2715, 8
        %v2789 = vpop.permute.xlu0 %2788
        %2790 = vrot.lane.b32.xlu0 %v2783, 8
        %v2791 = vpop.permute.xlu0 %2790
        %2796 = vrot.lane.b32.xlu0 %v2716, 16
        %v2797 = vpop.permute.xlu0 %2796
        %2798 = vrot.lane.b32.xlu0 %v2784, 16
        %v2799 = vpop.permute.xlu0 %2798
        %2804 = vrot.lane.b32.xlu0 %v2717, 24
        %v2805 = vpop.permute.xlu0 %2804
        %2806 = vrot.lane.b32.xlu0 %v2785, 24
        %v2807 = vpop.permute.xlu0 %2806
        %v2810 = vsel %vm1665, %v2714, %v2789
        %v2811 = vsel %vm1665, %v2782, %v2791
        %vm2812 = vcmask 130048
        %v2813 = vsel %vm2812, %v2810, %v2797
        %v2814 = vsel %vm2812, %v2811, %v2799
        %vm2815 = vcmask 195584
        %v2816 = vsel %vm2815, %v2813, %v2805
        %v2817 = vsel %vm2815, %v2814, %v2807
        %v2818 = vpack.c.bf16 %v2817, %v2816
        %v2819 = vld [vmem:[%s654] sm:$0xf]
        %v2820 = vld [vmem:[%s654 + $0x4] sm:$0xf]
        %v2821 = vld [vmem:[%s654 + $0x8] sm:$0xf]
        %v2822 = vld [vmem:[%s654 + $0xc] sm:$0xf]
        %v2823 = vld [vmem:[%s657] sm:$0x1]
        %v2825 = vlaneseq
        %v2826 = vshrl.u32 %v2825, 7
        %v2827 = vsub.s32 0, %v2826
        %v2828 = vrot.slane %v2823, %v2827
        %v2834 = vunpack.c.l.b16 %v2819
        %v2835 = vunpack.c.l.b16 %v2820
        %v2836 = vunpack.c.l.b16 %v2821
        %v2837 = vunpack.c.l.b16 %v2822
        %v2838 = vpack.c.b16 %v2835, %v2834
        %v2839 = vpack.c.b16 %v2837, %v2836
        %v2843 = vsel %vm697, %v2818, 0
        %2845 = vmatprep.subr.bf16.mxu0 0
        %2846 = vmatpush1.bf16.msra.mxu0 %v2838
        %2847 = vmatprep.subr.bf16.mxu0 0
        %2848 = vmatpush1.bf16.msra.mxu0 %v2839
        %2849 = vmatprep.subr.bf16.mxu0 0
        %2850 = vmatpush1.bf16.msra.mxu0 0
        %2851 = vmatprep.subr.bf16.mxu0 0
        %2852 = vmatpush1.bf16.msra.mxu0 0
        %2853 = vmatprep.subr.bf16.mxu0 0
        %2854 = vmatpush1.bf16.msra.mxu0 0
        %2855 = vmatprep.subr.bf16.mxu0 0
        %2856 = vmatpush1.bf16.msra.mxu0 0
        %2857 = vmatprep.subr.bf16.mxu0 0
        %2858 = vmatpush1.bf16.msra.mxu0 0
        %2859 = vmatprep.subr.bf16.mxu0 0
        %2860 = vmatpush1.bf16.msra.mxu0 0
        %2861 = vmatprep.subr.bf16.mxu0 0
        %2862 = vmatpush1.bf16.msra.mxu0 0
        %2863 = vmatprep.subr.bf16.mxu0 0
        %2864 = vmatpush1.bf16.msra.mxu0 0
        %2865 = vmatprep.subr.bf16.mxu0 0
        %2866 = vmatpush1.bf16.msra.mxu0 0
        %2867 = vmatprep.subr.bf16.mxu0 0
        %2868 = vmatpush1.bf16.msra.mxu0 0
        %2869 = vmatprep.subr.bf16.mxu0 0
        %2870 = vmatpush1.bf16.msra.mxu0 0
        %2871 = vmatprep.subr.bf16.mxu0 0
        %2872 = vmatpush1.bf16.msra.mxu0 0
        %2873 = vmatprep.subr.bf16.mxu0 0
        %2874 = vmatpush1.bf16.msra.mxu0 0
        %2875 = vmatprep.subr.bf16.mxu0 0
        %2876 = vmatpush1.bf16.msra.mxu0 0
        %2877 = vmatprep.mubr.bf16.mxu0 0
        %2878 = vmatmul.mubr.bf16.gmra.mrb[0].mxu0 %v2843
        %v2879 = vpop.f32.mrb[0].mxu0
        %v2880 = vadd.f32 %v2828, %v2879
        %v2881 = vpop.f32.mrb[0].mxu0
        %v2882 = vpop.f32.mrb[0].mxu0
        %v2883 = vadd.f32 %v2828, %v2882
        %v2884 = vpop.f32.mrb[0].mxu0
        %2885 = vdwg.mxu0
        %v2886 = vadd.f32 %v2880, %v693
        %v2887 = vadd.f32 %v2883, %v694
        %v2888 = vld [vmem:[%s660] sm:$0x1]
        %v2889 = vld [vmem:[%s663] sm:$0x1]
        %v2890 = vsel %vm697, %v2886, 0.0
        %2891 = vadd.xlane.f32.xlu0 %v2890
        %v2892 = vpop.xlane.xlu0 %2891
        %v2893 = vsel %vm697, %v2887, 0.0
        %2894 = vadd.xlane.f32.xlu0 %v2893
        %v2895 = vpop.xlane.xlu0 %2894
        %v2896 = vmul.f32 %v2892, %v704
        %v2897 = vmul.f32 %v2895, %v704
        %v2898 = vsub.f32 %v2886, %v2896
        %v2899 = vsub.f32 %v2887, %v2897
        %v2900 = vmul.f32 %v2898, %v2898
        %v2901 = vmul.f32 %v2899, %v2899
        %v2902 = vsel %vm697, %v2900, 0.0
        %2903 = vadd.xlane.f32.xlu0 %v2902
        %v2904 = vpop.xlane.xlu0 %2903
        %v2905 = vsel %vm697, %v2901, 0.0
        %2906 = vadd.xlane.f32.xlu0 %v2905
        %v2907 = vpop.xlane.xlu0 %2906
        %v2908 = vmul.f32 %v2904, %v704
        %v2909 = vmul.f32 %v2907, %v704
        %v2910 = vadd.f32 %v2908, 1e-05
        %v2911 = vadd.f32 %v2909, 1e-05
        %v2912 = vrsqrt.pop %v2910
        %v2913 = vrsqrt.pop %v2911
        %v2914 = vmul.f32 %v2898, %v2912
        %v2915 = vmul.f32 %v2899, %v2913
        %v2917 = vlaneseq
        %v2918 = vshrl.u32 %v2917, 7
        %v2919 = vsub.s32 0, %v2918
        %v2920 = vrot.slane %v2888, %v2919
        %v2922 = vmul.f32 %v2914, %v2920
        %v2923 = vmul.f32 %v2915, %v2920
        %v2925 = vlaneseq
        %v2926 = vshrl.u32 %v2925, 7
        %v2927 = vsub.s32 0, %v2926
        %v2928 = vrot.slane %v2889, %v2927
        %v2930 = vadd.f32 %v2922, %v2928
        %v2931 = vadd.f32 %v2923, %v2928
        %v2932 = vpack.c.bf16 %v2931, %v2930
        %v2933 = vld [vmem:[%s668] sm:$0xf]
        %v2934 = vld [vmem:[%s668 + $0x4] sm:$0xf]
        %v2935 = vld [vmem:[%s668 + $0x8] sm:$0xf]
        %v2936 = vld [vmem:[%s668 + $0xc] sm:$0xf]
        %v2937 = vld [vmem:[%s671] sm:$0x1]
        %v2939 = vlaneseq
        %v2940 = vshrl.u32 %v2939, 7
        %v2941 = vsub.s32 0, %v2940
        %v2942 = vrot.slane %v2937, %v2941
        %v2948 = vunpack.c.l.b16 %v2933
        %v2949 = vunpack.c.l.b16 %v2934
        %v2950 = vunpack.c.l.b16 %v2935
        %v2951 = vunpack.c.l.b16 %v2936
        %v2952 = vpack.c.b16 %v2949, %v2948
        %v2953 = vpack.c.b16 %v2951, %v2950
        %v2957 = vsel %vm697, %v2932, 0
        %2959 = vmatprep.subr.bf16.mxu0 0
        %2960 = vmatpush1.bf16.msra.mxu0 %v2952
        %2961 = vmatprep.subr.bf16.mxu0 0
        %2962 = vmatpush1.bf16.msra.mxu0 %v2953
        %2963 = vmatprep.subr.bf16.mxu0 0
        %2964 = vmatpush1.bf16.msra.mxu0 0
        %2965 = vmatprep.subr.bf16.mxu0 0
        %2966 = vmatpush1.bf16.msra.mxu0 0
        %2967 = vmatprep.subr.bf16.mxu0 0
        %2968 = vmatpush1.bf16.msra.mxu0 0
        %2969 = vmatprep.subr.bf16.mxu0 0
        %2970 = vmatpush1.bf16.msra.mxu0 0
        %2971 = vmatprep.subr.bf16.mxu0 0
        %2972 = vmatpush1.bf16.msra.mxu0 0
        %2973 = vmatprep.subr.bf16.mxu0 0
        %2974 = vmatpush1.bf16.msra.mxu0 0
        %2975 = vmatprep.subr.bf16.mxu0 0
        %2976 = vmatpush1.bf16.msra.mxu0 0
        %2977 = vmatprep.subr.bf16.mxu0 0
        %2978 = vmatpush1.bf16.msra.mxu0 0
        %2979 = vmatprep.subr.bf16.mxu0 0
        %2980 = vmatpush1.bf16.msra.mxu0 0
        %2981 = vmatprep.subr.bf16.mxu0 0
        %2982 = vmatpush1.bf16.msra.mxu0 0
        %2983 = vmatprep.subr.bf16.mxu0 0
        %2984 = vmatpush1.bf16.msra.mxu0 0
        %2985 = vmatprep.subr.bf16.mxu0 0
        %2986 = vmatpush1.bf16.msra.mxu0 0
        %2987 = vmatprep.subr.bf16.mxu0 0
        %2988 = vmatpush1.bf16.msra.mxu0 0
        %2989 = vmatprep.subr.bf16.mxu0 0
        %2990 = vmatpush1.bf16.msra.mxu0 0
        %2991 = vmatprep.mubr.bf16.mxu0 0
        %2992 = vmatmul.mubr.bf16.gmra.mrb[0].mxu0 %v2957
        %v2993 = vpop.f32.mrb[0].mxu0
        %v2994 = vadd.f32 %v2942, %v2993
        %v2995 = vpop.f32.mrb[0].mxu0
        %v2996 = vpop.f32.mrb[0].mxu0
        %v2997 = vadd.f32 %v2942, %v2996
        %v2998 = vpop.f32.mrb[0].mxu0
        %2999 = vdwg.mxu0
        %v3000 = vmul.f32 %v2994, 1.702
        %v3001 = vmul.f32 %v2997, 1.702
        %v3002 = vxor.u32 %v3000, 2147483648
        %v3003 = vxor.u32 %v3001, 2147483648
        %v3004 = vmul.f32 %v3002, 1.442695
        %v3005 = vpow.pop %v3004
        %v3006 = vmul.f32 %v3003, 1.442695
        %v3007 = vpow.pop %v3006
        %v3008 = vadd.f32 %v3005, 1.0
        %v3009 = vadd.f32 %v3007, 1.0
        %v3010 = vrcp.pop %v3008
        %v3011 = vmul.f32 1.0, %v3010
        %v3012 = vrcp.pop %v3009
        %v3013 = vmul.f32 1.0, %v3012
        %v3014 = vmul.f32 %v2994, %v3011
        %v3015 = vmul.f32 %v2997, %v3013
        %v3016 = vpack.c.bf16 %v3015, %v3014
        %v3017 = vld [vmem:[%s676] sm:$0xf]
        %v3018 = vld [vmem:[%s676 + $0x4] sm:$0xf]
        %v3019 = vld [vmem:[%s676 + $0x8] sm:$0xf]
        %v3020 = vld [vmem:[%s676 + $0xc] sm:$0xf]
        %v3021 = vld [vmem:[%s676 + $0x10] sm:$0xf]
        %v3022 = vld [vmem:[%s676 + $0x14] sm:$0xf]
        %v3023 = vld [vmem:[%s676 + $0x18] sm:$0xf]
        %v3024 = vld [vmem:[%s676 + $0x1c] sm:$0xf]
        %v3025 = vld [vmem:[%s676 + $0x20] sm:$0xf]
        %v3026 = vld [vmem:[%s676 + $0x24] sm:$0xf]
        %v3027 = vld [vmem:[%s676 + $0x28] sm:$0xf]
        %v3028 = vld [vmem:[%s676 + $0x2c] sm:$0xf]
        %v3029 = vld [vmem:[%s676 + $0x30] sm:$0xf]
        %v3030 = vld [vmem:[%s676 + $0x34] sm:$0xf]
        %v3031 = vld [vmem:[%s676 + $0x38] sm:$0xf]
        %v3032 = vld [vmem:[%s676 + $0x3c] sm:$0xf]
        %v3033 = vld [vmem:[%s679] sm:$0x1]
        %v3035 = vlaneseq
        %v3036 = vshrl.u32 %v3035, 7
        %v3037 = vsub.s32 0, %v3036
        %v3038 = vrot.slane %v3033, %v3037
        %v3056 = vunpack.c.l.b16 %v3017
        %v3057 = vunpack.c.l.b16 %v3018
        %v3058 = vunpack.c.l.b16 %v3019
        %v3059 = vunpack.c.l.b16 %v3020
        %v3060 = vunpack.c.l.b16 %v3021
        %v3061 = vunpack.c.l.b16 %v3022
        %v3062 = vunpack.c.l.b16 %v3023
        %v3063 = vunpack.c.l.b16 %v3024
        %v3064 = vunpack.c.l.b16 %v3025
        %v3065 = vunpack.c.l.b16 %v3026
        %v3066 = vunpack.c.l.b16 %v3027
        %v3067 = vunpack.c.l.b16 %v3028
        %v3068 = vunpack.c.l.b16 %v3029
        %v3069 = vunpack.c.l.b16 %v3030
        %v3070 = vunpack.c.l.b16 %v3031
        %v3071 = vunpack.c.l.b16 %v3032
        %v3072 = vpack.c.b16 %v3057, %v3056
        %v3073 = vpack.c.b16 %v3059, %v3058
        %v3074 = vpack.c.b16 %v3061, %v3060
        %v3075 = vpack.c.b16 %v3063, %v3062
        %v3076 = vpack.c.b16 %v3065, %v3064
        %v3077 = vpack.c.b16 %v3067, %v3066
        %v3078 = vpack.c.b16 %v3069, %v3068
        %v3079 = vpack.c.b16 %v3071, %v3070
        %3088 = vmatprep.subr.bf16.mxu0 0
        %3089 = vmatpush1.bf16.msra.mxu0 %v3072
        %3090 = vmatprep.subr.bf16.mxu0 0
        %3091 = vmatpush1.bf16.msra.mxu0 %v3073
        %3092 = vmatprep.subr.bf16.mxu0 0
        %3093 = vmatpush1.bf16.msra.mxu0 %v3074
        %3094 = vmatprep.subr.bf16.mxu0 0
        %3095 = vmatpush1.bf16.msra.mxu0 %v3075
        %3096 = vmatprep.subr.bf16.mxu0 0
        %3097 = vmatpush1.bf16.msra.mxu0 %v3076
        %3098 = vmatprep.subr.bf16.mxu0 0
        %3099 = vmatpush1.bf16.msra.mxu0 %v3077
        %3100 = vmatprep.subr.bf16.mxu0 0
        %3101 = vmatpush1.bf16.msra.mxu0 %v3078
        %3102 = vmatprep.subr.bf16.mxu0 0
        %3103 = vmatpush1.bf16.msra.mxu0 %v3079
        %3104 = vmatprep.subr.bf16.mxu0 0
        %3105 = vmatpush1.bf16.msra.mxu0 0
        %3106 = vmatprep.subr.bf16.mxu0 0
        %3107 = vmatpush1.bf16.msra.mxu0 0
        %3108 = vmatprep.subr.bf16.mxu0 0
        %3109 = vmatpush1.bf16.msra.mxu0 0
        %3110 = vmatprep.subr.bf16.mxu0 0
        %3111 = vmatpush1.bf16.msra.mxu0 0
        %3112 = vmatprep.subr.bf16.mxu0 0
        %3113 = vmatpush1.bf16.msra.mxu0 0
        %3114 = vmatprep.subr.bf16.mxu0 0
        %3115 = vmatpush1.bf16.msra.mxu0 0
        %3116 = vmatprep.subr.bf16.mxu0 0
        %3117 = vmatpush1.bf16.msra.mxu0 0
        %3118 = vmatprep.subr.bf16.mxu0 0
        %3119 = vmatpush1.bf16.msra.mxu0 0
        %3120 = vmatprep.mubr.bf16.mxu0 0
        %3121 = vmatmul.mubr.bf16.gmra.mrb[0].mxu0 %v3016
        %v3122 = vpop.f32.mrb[0].mxu0
        %v3123 = vadd.f32 %v3038, %v3122
        %v3124 = vpop.f32.mrb[0].mxu0
        %v3125 = vpop.f32.mrb[0].mxu0
        %v3126 = vadd.f32 %v3038, %v3125
        %v3127 = vpop.f32.mrb[0].mxu0
        %3128 = vdwg.mxu0
        %v3129 = vadd.f32 %v3123, %v2886
        %v3130 = vadd.f32 %v3126, %v2887
        %3131 = vst.msk [vmem:[#allocation2] sm:$0xff] %vm697, %v3129
        %3132 = vst.msk [vmem:[#allocation2 + $0x8] sm:$0xff] %vm697, %v3130
        %p3133 = scmp.eq.s32.totalorder %s28, 11
        // Predicated region
        $region89: #{forward.1} parent=83 // pred_check
          %p3134 = pneg %p3133
        $region90: #{forward.1} parent=83 // pred_check_branch
          %3136 = sbr.rel (%p3134) target = $region92
        $region91: #{forward.1} parent=83 // pred_region
          %v3137 = vld [vmem:[%s14] sm:$0x1]
          %v3138 = vld [vmem:[%s15] sm:$0x1]
          %v3139 = vsel %vm697, %v3129, 0.0
          %3140 = vadd.xlane.f32.xlu0 %v3139
          %v3141 = vpop.xlane.xlu0 %3140
          %v3142 = vsel %vm697, %v3130, 0.0
          %3143 = vadd.xlane.f32.xlu0 %v3142
          %v3144 = vpop.xlane.xlu0 %3143
          %v3145 = vmul.f32 %v3141, %v704
          %v3146 = vmul.f32 %v3144, %v704
          %v3147 = vsub.f32 %v3129, %v3145
          %v3148 = vsub.f32 %v3130, %v3146
          %v3149 = vmul.f32 %v3147, %v3147
          %v3150 = vmul.f32 %v3148, %v3148
          %v3151 = vsel %vm697, %v3149, 0.0
          %3152 = vadd.xlane.f32.xlu0 %v3151
          %v3153 = vpop.xlane.xlu0 %3152
          %v3154 = vsel %vm697, %v3150, 0.0
          %3155 = vadd.xlane.f32.xlu0 %v3154
          %v3156 = vpop.xlane.xlu0 %3155
          %v3157 = vmul.f32 %v3153, %v704
          %v3158 = vmul.f32 %v3156, %v704
          %v3159 = vadd.f32 %v3157, 1e-05
          %v3160 = vadd.f32 %v3158, 1e-05
          %v3161 = vrsqrt.pop %v3159
          %v3162 = vrsqrt.pop %v3160
          %v3163 = vmul.f32 %v3147, %v3161
          %v3164 = vmul.f32 %v3148, %v3162
          %v3166 = vlaneseq
          %v3167 = vshrl.u32 %v3166, 7
          %v3168 = vsub.s32 0, %v3167
          %v3169 = vrot.slane %v3137, %v3168
          %v3171 = vmul.f32 %v3163, %v3169
          %v3172 = vmul.f32 %v3164, %v3169
          %v3174 = vlaneseq
          %v3175 = vshrl.u32 %v3174, 7
          %v3176 = vsub.s32 0, %v3175
          %v3177 = vrot.slane %v3138, %v3176
          %v3179 = vadd.f32 %v3171, %v3177
          %v3180 = vadd.f32 %v3172, %v3177
          %3181 = vst.msk [vmem:[#allocation3] sm:$0xff] %vm697, %v3179
          %3182 = vst.msk [vmem:[#allocation3 + $0x8] sm:$0xff] %vm697, %v3180
        $region92: #{forward.1} parent=83 // pred_fallthru
          _
        // Predicated region
        $region93: #{forward.1} parent=83 // pred_check
          %p3183 = pneg %p437
        $region94: #{forward.1} parent=83 // pred_check_branch
          %3185 = sbr.rel (%p3183) target = $region96
        $region95: #{forward.1} parent=83 // pred_region
          %s3187 = ssub.s32 256, 256
          %3188 = vsyncadd [#allocation4], %s3187
          %s3189 = sshll.u32 [#allocation3], 4
          %s3190 = int_to_ptr.vmem [resolvable:$true] %s3189
          %3195 = dma.vmem_to_hbm [thread:$0]  %s3190, 256, %s16, [#allocation4], 128, 128, 8
        $region96: #{forward.1} parent=83 // pred_fallthru
          _
        // Predicated region
        $region97: #{forward.1} parent=83 // pred_check
          %p3196 = pneg %p437
        $region98: #{forward.1} parent=83 // pred_check_branch
          %3198 = sbr.rel (%p3196) target = $region100
        $region99: #{forward.1} parent=83 // pred_region
          %3199 = dma.done [#allocation4], 256
        $region100: #{forward.1} parent=83 // pred_fallthru
          _
      $region84: #{forward.1} parent=5 // pred_fallthru
        _
      %p3200 = scmp.le.s32.totalorder 2, %s23
      // Predicated region
      $region101: #{forward.1} parent=5 // pred_check
        %p3201 = pneg %p3200
      $region102: #{forward.1} parent=5 // pred_check_branch
        %3203 = sbr.rel (%p3201) target = $region104
      $region103: #{forward.1} parent=5 // pred_region
        %s3204 = ssub.s32 %s23, 2
      $region104: #{forward.1} parent=5 // pred_fallthru
        _
    $region6: #{forward.1} parent=1 // loop_footer
      %s27 = sadd.s32 1, %s23
    $region7: #{forward.1} parent=1 // loop_footer_branch
      %22 = sbr.rel target = $region3
    $region8: #{forward.1} parent=1 // loop_exit
      _
    %3205 = vsyncpa [#allocation4], 1
    %s3206 = scalar_lea.sflag [#allocation4], 1
    %3207 = vsyncpa %s3206, 1

</llo_original>
